<compile_context>
chip_gen: v6e
topology: v6e:2x2x1
jax: 0.10.0
libtpu: 0.0.40
codegen_flags: <defaults>
</compile_context>

<pallas_src>
import math

import jax
import jax.numpy as jnp
from jax.experimental import pallas as pl
from jax.experimental.pallas import tpu as pltpu

# ---------------------------------------------------------------------------
# Small synthetic "ChemBERTa" configuration
# ---------------------------------------------------------------------------
VOCAB = 64     # vocab size
B = 2          # batch
S = 8          # sequence length
H = 32         # encoder hidden size (config.hidden_size)
NH = 2         # attention heads
HD = H // NH   # head dim (16)
FF = 64        # FFN intermediate size
L = 2          # number of encoder layers
HID = 32       # ChemBERTaMultiTask hidden_dim  (== H so pooler/attn weights stack)
N_FILTER = 2   # len(filter_cols)  -> width of the 'merged' regression head
N_CLS = 3      # num_classes for the classification task
NOUT = N_FILTER + N_CLS + 1   # fused head width (merged | cls | mlr)
NOUT_PAD = 128                # lane-dense fused-head output width

TASK_LIST = ["logP", "solubility", "tox", "pKa.value"]
TASK_TYPES = {
    "logP": "regression",
    "solubility": "regression",
    "tox": "classification",
    "pKa.value": "multi_layer_regression",
}
REG_TASKS = [t for t in TASK_LIST if TASK_TYPES[t] == "regression"]

NEG_INF = -1e9

# ---------------------------------------------------------------------------
# Packed-buffer row layouts (lane width 128).
# wbuf: bf16 matmul weights, one piece per contiguous row range.
# vbuf: f32 biases / LayerNorm params / position embeddings.
# All wbuf row offsets are multiples of 16 (bf16 sublane tile aligned).
# ---------------------------------------------------------------------------
LAYER_W_ROWS = 3 * NH * H + 2 * H + FF          # 320 rows / layer
W_EMB = 0                                        # word_emb: VOCAB rows, cols :H
W_LAYERS = VOCAB


def _wq(l, h): return W_LAYERS + l * LAYER_W_ROWS + (0 * NH + h) * H   # (H,:HD)
def _wk(l, h): return W_LAYERS + l * LAYER_W_ROWS + (1 * NH + h) * H   # (H,:HD)
def _wv(l, h): return W_LAYERS + l * LAYER_W_ROWS + (2 * NH + h) * H   # (H,:HD)
def _wo(l):    return W_LAYERS + l * LAYER_W_ROWS + 3 * NH * H          # (H,:H)
def _w1(l):    return _wo(l) + H                                        # (H,:FF)
def _w2(l):    return _w1(l) + H                                        # (FF,:H)


W_POOL = W_LAYERS + L * LAYER_W_ROWS            # (H, :H)
W_ATT = W_POOL + H                              # (H, :HID)
W_HEAD = W_ATT + H                              # (HID, :NOUT_PAD)
NWROWS = W_HEAD + HID                           # 800

V_EMB_LN_G, V_EMB_LN_B, V_POOL_B, V_ATT_B, V_HEAD_B = 0, 1, 2, 3, 4
V_POS = 5                                       # S rows, cols :H
LAYER_V_ROWS = 3 * NH + 7                       # 13 rows / layer
V_LAYERS = V_POS + S                            # 13


def _bq(l, h): return V_LAYERS + l * LAYER_V_ROWS + 0 * NH + h          # :HD
def _bk(l, h): return V_LAYERS + l * LAYER_V_ROWS + 1 * NH + h          # :HD
def _bv(l, h): return V_LAYERS + l * LAYER_V_ROWS + 2 * NH + h          # :HD
def _bo(l):    return V_LAYERS + l * LAYER_V_ROWS + 3 * NH               # :H
def _b1(l):    return _bo(l) + 1                                          # :FF
def _b2(l):    return _bo(l) + 2                                          # :H
def _ln1g(l):  return _bo(l) + 3
def _ln1b(l):  return _bo(l) + 4
def _ln2g(l):  return _bo(l) + 5
def _ln2b(l):  return _bo(l) + 6


NVROWS = ((V_LAYERS + L * LAYER_V_ROWS + 7) // 8) * 8   # 40


# ---------------------------------------------------------------------------
# Pallas kernel: embeddings + encoder layers + pooler + attention_layer +
# fused task heads, all in one launch with 3 input DMAs / 1 output DMA.
# ---------------------------------------------------------------------------
def chemberta_kernel(
    io_ref,      # (2, B, S)      int32: [input_ids ; attention_mask]
    wbuf_ref,    # (NWROWS, 128)  bf16 packed matmul weights
    vbuf_ref,    # (NVROWS, 128)  f32 packed biases / LN params / pos emb
    out_ref,     # (B, NOUT_PAD)  f32 fused task-head output (lane-dense)
):
    f32 = jnp.float32
    bf16 = jnp.bfloat16

    def vrow(r, n):
        # single packed vector row -> (1, n) f32, broadcasts over rows
        return vbuf_ref[r:r + 1, :n]

    def layer_norm(x, g, b):
        mu = jnp.mean(x, axis=-1, keepdims=True)
        var = jnp.mean(jnp.square(x - mu), axis=-1, keepdims=True)
        return (x - mu) * jax.lax.rsqrt(var + 1e-12) * g + b

    ids = io_ref[0]                                   # (B, S) int32
    mask = io_ref[1].astype(f32)                      # (B, S)

    # --- embeddings: one-hot over VOCAB only; positions added by broadcast --
    col = jax.lax.broadcasted_iota(jnp.int32, (B, S, VOCAB), 2)
    onehot = (col == ids[:, :, None]).astype(bf16).reshape(B * S, VOCAB)
    x = jnp.dot(onehot, wbuf_ref[W_EMB:W_EMB + VOCAB, :H],
                preferred_element_type=f32)           # (B*S, H) f32
    pos = vbuf_ref[V_POS:V_POS + S, :H]               # (S, H) f32 (static)
    x = x + jnp.tile(pos, (B, 1))
    # TODO(synk): real RoBERTa offsets position ids by padding_idx+1 and adds
    #             token_type embeddings; skipped for the synthetic encoder.
    x = layer_norm(x, vrow(V_EMB_LN_G, H), vrow(V_EMB_LN_B, H))

    mask_bias = ((1.0 - mask) * NEG_INF)[:, None, :]  # (B, 1, S)
    inv_sqrt_hd = 1.0 / math.sqrt(HD)

    for l in range(L):                 # static unrolled loop over layers
        xb = x.astype(bf16)            # MXU operand; VPU math stays f32

        # --- self-attention: per-head GEMMs, no lane slices / lane concat ---
        attn = jnp.zeros((B * S, H), f32)
        for h in range(NH):            # NH=2, statically unrolled
            qh = jnp.dot(xb, wbuf_ref[_wq(l, h):_wq(l, h) + H, :HD],
                         preferred_element_type=f32) + vrow(_bq(l, h), HD)
            kh = jnp.dot(xb, wbuf_ref[_wk(l, h):_wk(l, h) + H, :HD],
                         preferred_element_type=f32) + vrow(_bk(l, h), HD)
            vh = jnp.dot(xb, wbuf_ref[_wv(l, h):_wv(l, h) + H, :HD],
                         preferred_element_type=f32) + vrow(_bv(l, h), HD)
            q3 = qh.reshape(B, S, HD)
            k3 = kh.reshape(B, S, HD)
            v3 = vh.reshape(B, S, HD)

            s = jnp.einsum("bqd,bkd->bqk", q3, k3,
                           preferred_element_type=f32) * inv_sqrt_hd
            s = s + mask_bias
            s = s - jnp.max(s, axis=-1, keepdims=True)
            p = jnp.exp(s)
            p = p / jnp.sum(p, axis=-1, keepdims=True)   # exact divide
            ctx = jnp.einsum("bqk,bkd->bqd", p, v3,
                             preferred_element_type=f32).reshape(B * S, HD)

            # output projection accumulated per head against a row-sliced
            # (sublane-aligned, HD rows) slab of WO.
            wo_h = wbuf_ref[_wo(l) + h * HD:_wo(l) + (h + 1) * HD, :H]
            attn = attn + jnp.dot(ctx.astype(bf16), wo_h,
                                  preferred_element_type=f32)

        attn = attn + vrow(_bo(l), H)
        x = layer_norm(x + attn, vrow(_ln1g(l), H), vrow(_ln1b(l), H))

        # --- feed-forward ---------------------------------------------------
        ff = jnp.dot(x.astype(bf16), wbuf_ref[_w1(l):_w1(l) + H, :FF],
                     preferred_element_type=f32) + vrow(_b1(l), FF)
        # TODO(synk): HF RoBERTa uses erf-based GELU; tanh approximation here.
        ff = jax.nn.gelu(ff, approximate=True)
        ff = jnp.dot(ff.astype(bf16), wbuf_ref[_w2(l):_w2(l) + FF, :H],
                     preferred_element_type=f32) + vrow(_b2(l), H)
        x = layer_norm(x + ff, vrow(_ln2g(l), H), vrow(_ln2b(l), H))

    # --- pooler: tanh(W_p @ h[:, 0] + b_p) -> pooler_output -----------------
    cls_tok = x.reshape(B, S, H)[:, 0, :]             # (B, H)
    pooled = jnp.tanh(
        jnp.dot(cls_tok.astype(bf16), wbuf_ref[W_POOL:W_POOL + H, :H],
                preferred_element_type=f32) + vrow(V_POOL_B, H))

    # --- attention_layer: Linear(encoder_hidden -> hidden_dim) --------------
    feat = (jnp.dot(pooled.astype(bf16), wbuf_ref[W_ATT:W_ATT + H, :HID],
                    preferred_element_type=f32) + vrow(V_ATT_B, HID))

    # --- fused task heads (merged | classification | mlr), lane-dense -------
    out_ref[...] = (jnp.dot(feat.astype(bf16), wbuf_ref[W_HEAD:W_HEAD + HID, :],
                            preferred_element_type=f32)
                    + vrow(V_HEAD_B, NOUT_PAD))


# ---------------------------------------------------------------------------
# Parameter initialization (deterministic, synthetic, pre-packed)
# ---------------------------------------------------------------------------
def init_params():
    key = jax.random.PRNGKey(42)
    ks = iter(jax.random.split(key, 32))

    def nrm(shape, scale=0.02):
        return (scale * jax.random.normal(next(ks), shape)).astype(jnp.float32)

    word_emb = nrm((VOCAB, H))
    pos_emb = nrm((S, H))

    wq, wk, wv = nrm((L, H, H)), nrm((L, H, H)), nrm((L, H, H))
    wo = nrm((L, H, H))
    w1 = nrm((L, H, FF))
    w2 = nrm((L, FF, H))
    bq, bk, bv = nrm((L, H)), nrm((L, H)), nrm((L, H))
    bo = nrm((L, H))
    b1 = nrm((L, FF))
    b2 = nrm((L, H))

    assert H == HID
    pool_w, pool_b = nrm((H, H)), nrm((H,))
    att_w, att_b = nrm((H, HID)), nrm((HID,))
    merged_w, merged_b = nrm((HID, N_FILTER)), nrm((N_FILTER,))
    cls_w, cls_b = nrm((HID, N_CLS)), nrm((N_CLS,))
    mlr_w, mlr_b = nrm((HID, 1)), nrm((1,))

    # ---- single packed bf16 weight buffer (one HBM->VMEM DMA) -------------
    wbuf = jnp.zeros((NWROWS, 128), jnp.float32)
    wbuf = wbuf.at[W_EMB:W_EMB + VOCAB, :H].set(word_emb)
    for l in range(L):
        for h in range(NH):
            wbuf = wbuf.at[_wq(l, h):_wq(l, h) + H, :HD].set(wq[l, :, h * HD:(h + 1) * HD])
            wbuf = wbuf.at[_wk(l, h):_wk(l, h) + H, :HD].set(wk[l, :, h * HD:(h + 1) * HD])
            wbuf = wbuf.at[_wv(l, h):_wv(l, h) + H, :HD].set(wv[l, :, h * HD:(h + 1) * HD])
        wbuf = wbuf.at[_wo(l):_wo(l) + H, :H].set(wo[l])
        wbuf = wbuf.at[_w1(l):_w1(l) + H, :FF].set(w1[l])
        wbuf = wbuf.at[_w2(l):_w2(l) + FF, :H].set(w2[l])
    wbuf = wbuf.at[W_POOL:W_POOL + H, :H].set(pool_w)
    wbuf = wbuf.at[W_ATT:W_ATT + H, :HID].set(att_w)
    wbuf = wbuf.at[W_HEAD:W_HEAD + HID, :N_FILTER].set(merged_w)
    wbuf = wbuf.at[W_HEAD:W_HEAD + HID, N_FILTER:N_FILTER + N_CLS].set(cls_w)
    wbuf = wbuf.at[W_HEAD:W_HEAD + HID, N_FILTER + N_CLS:NOUT].set(mlr_w)
    wbuf = wbuf.astype(jnp.bfloat16)

    # ---- single packed f32 vector buffer (one HBM->VMEM DMA) --------------
    vbuf = jnp.zeros((NVROWS, 128), jnp.float32)
    vbuf = vbuf.at[V_EMB_LN_G, :H].set(1.0)            # emb LN gamma (beta stays 0)
    vbuf = vbuf.at[V_POOL_B, :H].set(pool_b)
    vbuf = vbuf.at[V_ATT_B, :HID].set(att_b)
    vbuf = vbuf.at[V_HEAD_B, :N_FILTER].set(merged_b)
    vbuf = vbuf.at[V_HEAD_B, N_FILTER:N_FILTER + N_CLS].set(cls_b)
    vbuf = vbuf.at[V_HEAD_B, N_FILTER + N_CLS:NOUT].set(mlr_b)
    vbuf = vbuf.at[V_POS:V_POS + S, :H].set(pos_emb)
    for l in range(L):
        for h in range(NH):
            vbuf = vbuf.at[_bq(l, h), :HD].set(bq[l, h * HD:(h + 1) * HD])
            vbuf = vbuf.at[_bk(l, h), :HD].set(bk[l, h * HD:(h + 1) * HD])
            vbuf = vbuf.at[_bv(l, h), :HD].set(bv[l, h * HD:(h + 1) * HD])
        vbuf = vbuf.at[_bo(l), :H].set(bo[l])
        vbuf = vbuf.at[_b1(l), :FF].set(b1[l])
        vbuf = vbuf.at[_b2(l), :H].set(b2[l])
        vbuf = vbuf.at[_ln1g(l), :H].set(1.0)          # LN gammas (betas stay 0)
        vbuf = vbuf.at[_ln2g(l), :H].set(1.0)

    return dict(wbuf=wbuf, vbuf=vbuf)


# ---------------------------------------------------------------------------
# Wrapper: single gridless pallas_call (3 input DMAs) + output-dict assembly
# ---------------------------------------------------------------------------
def chemberta_multitask_forward(input_ids, attention_mask, params):
    io = jnp.stack([input_ids.astype(jnp.int32),
                    attention_mask.astype(jnp.int32)], axis=0)   # (2, B, S)

    # Shapes are tiny -> single grid point, every operand is a full-array
    # VMEM block (full dims satisfy the tiling rule).
    # TODO(synk): on v7x add grid=(B,) with per-batch BlockSpecs and
    #             dimension_semantics=("parallel",) to use the second
    #             TensorCore (keep gridless on v5e/v6e).
    # TODO(synk): in a serving loop, keep wbuf/vbuf resident across calls
    #             (memory_space=pl.ANY + one-time copy, or a cross-call
    #             prefetch future) instead of re-DMAing them every call.
    out = pl.pallas_call(
        chemberta_kernel,
        out_shape=jax.ShapeDtypeStruct((B, NOUT_PAD), jnp.float32),
        in_specs=(
            pl.BlockSpec(memory_space=pltpu.MemorySpace.VMEM),
            pl.BlockSpec(memory_space=pltpu.MemorySpace.VMEM),
            pl.BlockSpec(memory_space=pltpu.MemorySpace.VMEM),
        ),
        out_specs=pl.BlockSpec(memory_space=pltpu.MemorySpace.VMEM),
    )(io, params["wbuf"], params["vbuf"])

    # Slice the single lane-dense output back into the three heads.
    reg_out = out[:, :N_FILTER]                         # merged regression head
    cls_out = out[:, N_FILTER:N_FILTER + N_CLS]         # classification head
    mlr_out = out[:, N_FILTER + N_CLS:NOUT]             # multi_layer_regression

    # Assemble the task_outputs dict exactly like the PyTorch forward.
    task_outputs = {}
    for i, task in enumerate(REG_TASKS):
        task_outputs[task] = reg_out[:, i]              # (B,)
    for task in TASK_LIST:
        if TASK_TYPES[task] == "classification":
            task_outputs[task] = cls_out                # (B, num_classes)
        elif TASK_TYPES[task] == "multi_layer_regression":
            task_outputs[task] = mlr_out[:, 0]          # squeeze(-1) -> (B,)
    return task_outputs


# ---------------------------------------------------------------------------
if __name__ == "__main__":
    params = init_params()

    key = jax.random.PRNGKey(0)
    input_ids = jax.random.randint(key, (B, S), 0, VOCAB, dtype=jnp.int32)
    attention_mask = jnp.array(
        [[1, 1, 1, 1, 1, 1, 1, 1],
         [1, 1, 1, 1, 1, 1, 0, 0]], dtype=jnp.int32)

    outputs = chemberta_multitask_forward(input_ids, attention_mask, params)
    outputs = jax.block_until_ready(outputs)

    # Sanity on shapes implied by the PyTorch forward.
    assert outputs["logP"].shape == (B,)
    assert outputs["solubility"].shape == (B,)
    assert outputs["tox"].shape == (B, N_CLS)
    assert outputs["pKa.value"].shape == (B,)
    for v in outputs.values():
        assert bool(jnp.all(jnp.isfinite(v)))

    print("KERNEL_OK")
</pallas_src>

<mosaic_0001>
module attributes {stable_mosaic.version = 11 : i64} {
  func.func @chemberta_kernel(%arg0: memref<2x2x8xi32, #tpu.memory_space<vmem>>, %arg1: memref<800x128xbf16, #tpu.memory_space<vmem>>, %arg2: memref<40x128xf32, #tpu.memory_space<vmem>>, %arg3: memref<2x128xf32, #tpu.memory_space<vmem>>) attributes {dimension_semantics = [], scalar_prefetch = 0 : i64, scratch_operands = 0 : i64, tpu.core_type = #tpu.core_type<tc>} {
    %c0 = arith.constant 0 : index
    %c0_0 = arith.constant 0 : index
    %c0_1 = arith.constant 0 : index
    %0 = vector.load %arg0[%c0, %c0_0, %c0_1] : memref<2x2x8xi32, #tpu.memory_space<vmem>>, vector<1x2x8xi32>
    %1 = vector.shape_cast %0 : vector<1x2x8xi32> to vector<2x8xi32>
    %c1 = arith.constant 1 : index
    %c0_2 = arith.constant 0 : index
    %c0_3 = arith.constant 0 : index
    %2 = vector.load %arg0[%c1, %c0_2, %c0_3] : memref<2x2x8xi32, #tpu.memory_space<vmem>>, vector<1x2x8xi32>
    %3 = vector.shape_cast %2 : vector<1x2x8xi32> to vector<2x8xi32>
    %4 = arith.sitofp %3 : vector<2x8xi32> to vector<2x8xf32>
    %5 = tpu.iota {dimensions = array<i32: 2>} : vector<2x8x64xi32>
    %6 = vector.shape_cast %1 : vector<2x8xi32> to vector<2x8x1xi32>
    %7 = vector.broadcast %6 : vector<2x8x1xi32> to vector<2x8x64xi32>
    %8 = arith.cmpi eq, %5, %7 : vector<2x8x64xi32>
    %9 = arith.extui %8 : vector<2x8x64xi1> to vector<2x8x64xi32>
    %10 = arith.sitofp %9 : vector<2x8x64xi32> to vector<2x8x64xf32>
    %11 = arith.truncf %10 : vector<2x8x64xf32> to vector<2x8x64xbf16>
    %12 = vector.shape_cast %11 : vector<2x8x64xbf16> to vector<16x64xbf16>
    %c0_4 = arith.constant 0 : index
    %c0_5 = arith.constant 0 : index
    %13 = vector.load %arg1[%c0_4, %c0_5] : memref<800x128xbf16, #tpu.memory_space<vmem>>, vector<64x32xbf16>
    %cst = arith.constant dense<0.000000e+00> : vector<16x32xf32>
    %14 = tpu.matmul %12, %13, %cst {dimension_numbers = #tpu.dot_dimension_numbers<[1], [0], [0], [1], [0, 0, 1, 1], [], []>} : vector<16x64xbf16>, vector<64x32xbf16>, vector<16x32xf32> -> vector<16x32xf32>
    %c5 = arith.constant 5 : index
    %c0_6 = arith.constant 0 : index
    %15 = vector.load %arg2[%c5, %c0_6] : memref<40x128xf32, #tpu.memory_space<vmem>>, vector<8x32xf32>
    %16 = tpu.concatenate %15, %15 in 0 : vector<8x32xf32>, vector<8x32xf32> -> vector<16x32xf32>
    %17 = arith.addf %14, %16 : vector<16x32xf32>
    %c0_7 = arith.constant 0 : index
    %c0_8 = arith.constant 0 : index
    %18 = vector.load %arg2[%c0_7, %c0_8] : memref<40x128xf32, #tpu.memory_space<vmem>>, vector<1x32xf32>
    %c1_9 = arith.constant 1 : index
    %c0_10 = arith.constant 0 : index
    %19 = vector.load %arg2[%c1_9, %c0_10] : memref<40x128xf32, #tpu.memory_space<vmem>>, vector<1x32xf32>
    %cst_11 = arith.constant dense<0.000000e+00> : vector<16xf32>
    %20 = vector.multi_reduction <add>, %17, %cst_11 [1] : vector<16x32xf32> to vector<16xf32>
    %21 = vector.shape_cast %20 : vector<16xf32> to vector<16x1xf32>
    %cst_12 = arith.constant 3.200000e+01 : f32
    %22 = vector.broadcast %cst_12 : f32 to vector<16x1xf32>
    %23 = arith.divf %21, %22 : vector<16x1xf32>
    %24 = vector.broadcast %23 : vector<16x1xf32> to vector<16x32xf32>
    %25 = arith.subf %17, %24 : vector<16x32xf32>
    %26 = arith.mulf %25, %25 : vector<16x32xf32>
    %cst_13 = arith.constant dense<0.000000e+00> : vector<16xf32>
    %27 = vector.multi_reduction <add>, %26, %cst_13 [1] : vector<16x32xf32> to vector<16xf32>
    %28 = vector.shape_cast %27 : vector<16xf32> to vector<16x1xf32>
    %cst_14 = arith.constant 3.200000e+01 : f32
    %29 = vector.broadcast %cst_14 : f32 to vector<16x1xf32>
    %30 = arith.divf %28, %29 : vector<16x1xf32>
    %31 = vector.broadcast %23 : vector<16x1xf32> to vector<16x32xf32>
    %32 = arith.subf %17, %31 : vector<16x32xf32>
    %cst_15 = arith.constant 9.99999996E-13 : f32
    %33 = vector.broadcast %cst_15 : f32 to vector<16x1xf32>
    %34 = arith.addf %30, %33 : vector<16x1xf32>
    %35 = math.rsqrt %34 : vector<16x1xf32>
    %36 = vector.broadcast %35 : vector<16x1xf32> to vector<16x32xf32>
    %37 = arith.mulf %32, %36 : vector<16x32xf32>
    %38 = vector.broadcast %18 : vector<1x32xf32> to vector<16x32xf32>
    %39 = arith.mulf %37, %38 : vector<16x32xf32>
    %40 = vector.broadcast %19 : vector<1x32xf32> to vector<16x32xf32>
    %41 = arith.addf %39, %40 : vector<16x32xf32>
    %cst_16 = arith.constant 1.000000e+00 : f32
    %42 = vector.broadcast %cst_16 : f32 to vector<2x8xf32>
    %43 = arith.subf %42, %4 : vector<2x8xf32>
    %cst_17 = arith.constant -1.000000e+09 : f32
    %44 = vector.broadcast %cst_17 : f32 to vector<2x8xf32>
    %45 = arith.mulf %43, %44 : vector<2x8xf32>
    %46 = vector.shape_cast %45 : vector<2x8xf32> to vector<2x1x8xf32>
    %47 = arith.truncf %41 : vector<16x32xf32> to vector<16x32xbf16>
    %cst_18 = arith.constant 0.000000e+00 : f32
    %48 = vector.broadcast %cst_18 : f32 to vector<16x32xf32>
    %c64 = arith.constant 64 : index
    %c0_19 = arith.constant 0 : index
    %49 = vector.load %arg1[%c64, %c0_19] : memref<800x128xbf16, #tpu.memory_space<vmem>>, vector<32x16xbf16>
    %cst_20 = arith.constant dense<0.000000e+00> : vector<16x16xf32>
    %50 = tpu.matmul %47, %49, %cst_20 {dimension_numbers = #tpu.dot_dimension_numbers<[1], [0], [0], [1], [0, 0, 1, 1], [], []>} : vector<16x32xbf16>, vector<32x16xbf16>, vector<16x16xf32> -> vector<16x16xf32>
    %c13 = arith.constant 13 : index
    %c0_21 = arith.constant 0 : index
    %51 = vector.load %arg2[%c13, %c0_21] : memref<40x128xf32, #tpu.memory_space<vmem>>, vector<1x16xf32>
    %52 = vector.broadcast %51 : vector<1x16xf32> to vector<16x16xf32>
    %53 = arith.addf %50, %52 : vector<16x16xf32>
    %c128 = arith.constant 128 : index
    %c0_22 = arith.constant 0 : index
    %54 = vector.load %arg1[%c128, %c0_22] : memref<800x128xbf16, #tpu.memory_space<vmem>>, vector<32x16xbf16>
    %cst_23 = arith.constant dense<0.000000e+00> : vector<16x16xf32>
    %55 = tpu.matmul %47, %54, %cst_23 {dimension_numbers = #tpu.dot_dimension_numbers<[1], [0], [0], [1], [0, 0, 1, 1], [], []>} : vector<16x32xbf16>, vector<32x16xbf16>, vector<16x16xf32> -> vector<16x16xf32>
    %c15 = arith.constant 15 : index
    %c0_24 = arith.constant 0 : index
    %56 = vector.load %arg2[%c15, %c0_24] : memref<40x128xf32, #tpu.memory_space<vmem>>, vector<1x16xf32>
    %57 = vector.broadcast %56 : vector<1x16xf32> to vector<16x16xf32>
    %58 = arith.addf %55, %57 : vector<16x16xf32>
    %c192 = arith.constant 192 : index
    %c0_25 = arith.constant 0 : index
    %59 = vector.load %arg1[%c192, %c0_25] : memref<800x128xbf16, #tpu.memory_space<vmem>>, vector<32x16xbf16>
    %cst_26 = arith.constant dense<0.000000e+00> : vector<16x16xf32>
    %60 = tpu.matmul %47, %59, %cst_26 {dimension_numbers = #tpu.dot_dimension_numbers<[1], [0], [0], [1], [0, 0, 1, 1], [], []>} : vector<16x32xbf16>, vector<32x16xbf16>, vector<16x16xf32> -> vector<16x16xf32>
    %c17 = arith.constant 17 : index
    %c0_27 = arith.constant 0 : index
    %61 = vector.load %arg2[%c17, %c0_27] : memref<40x128xf32, #tpu.memory_space<vmem>>, vector<1x16xf32>
    %62 = vector.broadcast %61 : vector<1x16xf32> to vector<16x16xf32>
    %63 = arith.addf %60, %62 : vector<16x16xf32>
    %64 = vector.shape_cast %53 : vector<16x16xf32> to vector<2x8x16xf32>
    %65 = vector.shape_cast %58 : vector<16x16xf32> to vector<2x8x16xf32>
    %66 = vector.shape_cast %63 : vector<16x16xf32> to vector<2x8x16xf32>
    "tpu.trace_start"() <{level = 10 : i32, message = "bqd,bkd->bqk"}> : () -> ()
    %cst_28 = arith.constant dense<0.000000e+00> : vector<2x8x8xf32>
    %67 = tpu.matmul %64, %65, %cst_28 {dimension_numbers = #tpu.dot_dimension_numbers<[2], [2], [1], [1], [0, 0, 0, 1, 1, 1], [0], [0]>} : vector<2x8x16xf32>, vector<2x8x16xf32>, vector<2x8x8xf32> -> vector<2x8x8xf32>
    "tpu.trace_stop"() : () -> ()
    %cst_29 = arith.constant 2.500000e-01 : f32
    %68 = vector.broadcast %cst_29 : f32 to vector<2x8x8xf32>
    %69 = arith.mulf %67, %68 : vector<2x8x8xf32>
    %70 = vector.broadcast %46 : vector<2x1x8xf32> to vector<2x8x8xf32>
    %71 = arith.addf %69, %70 : vector<2x8x8xf32>
    %cst_30 = arith.constant dense<0xFF800000> : vector<2x8xf32>
    %72 = vector.multi_reduction <maximumf>, %71, %cst_30 [2] : vector<2x8x8xf32> to vector<2x8xf32>
    %73 = vector.shape_cast %72 : vector<2x8xf32> to vector<2x8x1xf32>
    %74 = vector.broadcast %73 : vector<2x8x1xf32> to vector<2x8x8xf32>
    %75 = arith.subf %71, %74 : vector<2x8x8xf32>
    %76 = math.exp %75 : vector<2x8x8xf32>
    %cst_31 = arith.constant dense<0.000000e+00> : vector<2x8xf32>
    %77 = vector.multi_reduction <add>, %76, %cst_31 [2] : vector<2x8x8xf32> to vector<2x8xf32>
    %78 = vector.shape_cast %77 : vector<2x8xf32> to vector<2x8x1xf32>
    %79 = vector.broadcast %78 : vector<2x8x1xf32> to vector<2x8x8xf32>
    %80 = arith.divf %76, %79 : vector<2x8x8xf32>
    "tpu.trace_start"() <{level = 10 : i32, message = "bqk,bkd->bqd"}> : () -> ()
    %cst_32 = arith.constant dense<0.000000e+00> : vector<2x8x16xf32>
    %81 = tpu.matmul %80, %66, %cst_32 {dimension_numbers = #tpu.dot_dimension_numbers<[2], [1], [1], [2], [0, 0, 0, 1, 1, 2], [0], [0]>} : vector<2x8x8xf32>, vector<2x8x16xf32>, vector<2x8x16xf32> -> vector<2x8x16xf32>
    "tpu.trace_stop"() : () -> ()
    %82 = vector.shape_cast %81 : vector<2x8x16xf32> to vector<16x16xf32>
    %c256 = arith.constant 256 : index
    %c0_33 = arith.constant 0 : index
    %83 = vector.load %arg1[%c256, %c0_33] : memref<800x128xbf16, #tpu.memory_space<vmem>>, vector<16x32xbf16>
    %84 = arith.truncf %82 : vector<16x16xf32> to vector<16x16xbf16>
    %cst_34 = arith.constant dense<0.000000e+00> : vector<16x32xf32>
    %85 = tpu.matmul %84, %83, %cst_34 {dimension_numbers = #tpu.dot_dimension_numbers<[1], [0], [0], [1], [0, 0, 1, 1], [], []>} : vector<16x16xbf16>, vector<16x32xbf16>, vector<16x32xf32> -> vector<16x32xf32>
    %86 = arith.addf %48, %85 : vector<16x32xf32>
    %c96 = arith.constant 96 : index
    %c0_35 = arith.constant 0 : index
    %87 = vector.load %arg1[%c96, %c0_35] : memref<800x128xbf16, #tpu.memory_space<vmem>>, vector<32x16xbf16>
    %cst_36 = arith.constant dense<0.000000e+00> : vector<16x16xf32>
    %88 = tpu.matmul %47, %87, %cst_36 {dimension_numbers = #tpu.dot_dimension_numbers<[1], [0], [0], [1], [0, 0, 1, 1], [], []>} : vector<16x32xbf16>, vector<32x16xbf16>, vector<16x16xf32> -> vector<16x16xf32>
    %c14 = arith.constant 14 : index
    %c0_37 = arith.constant 0 : index
    %89 = vector.load %arg2[%c14, %c0_37] : memref<40x128xf32, #tpu.memory_space<vmem>>, vector<1x16xf32>
    %90 = vector.broadcast %89 : vector<1x16xf32> to vector<16x16xf32>
    %91 = arith.addf %88, %90 : vector<16x16xf32>
    %c160 = arith.constant 160 : index
    %c0_38 = arith.constant 0 : index
    %92 = vector.load %arg1[%c160, %c0_38] : memref<800x128xbf16, #tpu.memory_space<vmem>>, vector<32x16xbf16>
    %cst_39 = arith.constant dense<0.000000e+00> : vector<16x16xf32>
    %93 = tpu.matmul %47, %92, %cst_39 {dimension_numbers = #tpu.dot_dimension_numbers<[1], [0], [0], [1], [0, 0, 1, 1], [], []>} : vector<16x32xbf16>, vector<32x16xbf16>, vector<16x16xf32> -> vector<16x16xf32>
    %c16 = arith.constant 16 : index
    %c0_40 = arith.constant 0 : index
    %94 = vector.load %arg2[%c16, %c0_40] : memref<40x128xf32, #tpu.memory_space<vmem>>, vector<1x16xf32>
    %95 = vector.broadcast %94 : vector<1x16xf32> to vector<16x16xf32>
    %96 = arith.addf %93, %95 : vector<16x16xf32>
    %c224 = arith.constant 224 : index
    %c0_41 = arith.constant 0 : index
    %97 = vector.load %arg1[%c224, %c0_41] : memref<800x128xbf16, #tpu.memory_space<vmem>>, vector<32x16xbf16>
    %cst_42 = arith.constant dense<0.000000e+00> : vector<16x16xf32>
    %98 = tpu.matmul %47, %97, %cst_42 {dimension_numbers = #tpu.dot_dimension_numbers<[1], [0], [0], [1], [0, 0, 1, 1], [], []>} : vector<16x32xbf16>, vector<32x16xbf16>, vector<16x16xf32> -> vector<16x16xf32>
    %c18 = arith.constant 18 : index
    %c0_43 = arith.constant 0 : index
    %99 = vector.load %arg2[%c18, %c0_43] : memref<40x128xf32, #tpu.memory_space<vmem>>, vector<1x16xf32>
    %100 = vector.broadcast %99 : vector<1x16xf32> to vector<16x16xf32>
    %101 = arith.addf %98, %100 : vector<16x16xf32>
    %102 = vector.shape_cast %91 : vector<16x16xf32> to vector<2x8x16xf32>
    %103 = vector.shape_cast %96 : vector<16x16xf32> to vector<2x8x16xf32>
    %104 = vector.shape_cast %101 : vector<16x16xf32> to vector<2x8x16xf32>
    "tpu.trace_start"() <{level = 10 : i32, message = "bqd,bkd->bqk"}> : () -> ()
    %cst_44 = arith.constant dense<0.000000e+00> : vector<2x8x8xf32>
    %105 = tpu.matmul %102, %103, %cst_44 {dimension_numbers = #tpu.dot_dimension_numbers<[2], [2], [1], [1], [0, 0, 0, 1, 1, 1], [0], [0]>} : vector<2x8x16xf32>, vector<2x8x16xf32>, vector<2x8x8xf32> -> vector<2x8x8xf32>
    "tpu.trace_stop"() : () -> ()
    %cst_45 = arith.constant 2.500000e-01 : f32
    %106 = vector.broadcast %cst_45 : f32 to vector<2x8x8xf32>
    %107 = arith.mulf %105, %106 : vector<2x8x8xf32>
    %108 = vector.broadcast %46 : vector<2x1x8xf32> to vector<2x8x8xf32>
    %109 = arith.addf %107, %108 : vector<2x8x8xf32>
    %cst_46 = arith.constant dense<0xFF800000> : vector<2x8xf32>
    %110 = vector.multi_reduction <maximumf>, %109, %cst_46 [2] : vector<2x8x8xf32> to vector<2x8xf32>
    %111 = vector.shape_cast %110 : vector<2x8xf32> to vector<2x8x1xf32>
    %112 = vector.broadcast %111 : vector<2x8x1xf32> to vector<2x8x8xf32>
    %113 = arith.subf %109, %112 : vector<2x8x8xf32>
    %114 = math.exp %113 : vector<2x8x8xf32>
    %cst_47 = arith.constant dense<0.000000e+00> : vector<2x8xf32>
    %115 = vector.multi_reduction <add>, %114, %cst_47 [2] : vector<2x8x8xf32> to vector<2x8xf32>
    %116 = vector.shape_cast %115 : vector<2x8xf32> to vector<2x8x1xf32>
    %117 = vector.broadcast %116 : vector<2x8x1xf32> to vector<2x8x8xf32>
    %118 = arith.divf %114, %117 : vector<2x8x8xf32>
    "tpu.trace_start"() <{level = 10 : i32, message = "bqk,bkd->bqd"}> : () -> ()
    %cst_48 = arith.constant dense<0.000000e+00> : vector<2x8x16xf32>
    %119 = tpu.matmul %118, %104, %cst_48 {dimension_numbers = #tpu.dot_dimension_numbers<[2], [1], [1], [2], [0, 0, 0, 1, 1, 2], [0], [0]>} : vector<2x8x8xf32>, vector<2x8x16xf32>, vector<2x8x16xf32> -> vector<2x8x16xf32>
    "tpu.trace_stop"() : () -> ()
    %120 = vector.shape_cast %119 : vector<2x8x16xf32> to vector<16x16xf32>
    %c272 = arith.constant 272 : index
    %c0_49 = arith.constant 0 : index
    %121 = vector.load %arg1[%c272, %c0_49] : memref<800x128xbf16, #tpu.memory_space<vmem>>, vector<16x32xbf16>
    %122 = arith.truncf %120 : vector<16x16xf32> to vector<16x16xbf16>
    %cst_50 = arith.constant dense<0.000000e+00> : vector<16x32xf32>
    %123 = tpu.matmul %122, %121, %cst_50 {dimension_numbers = #tpu.dot_dimension_numbers<[1], [0], [0], [1], [0, 0, 1, 1], [], []>} : vector<16x16xbf16>, vector<16x32xbf16>, vector<16x32xf32> -> vector<16x32xf32>
    %124 = arith.addf %86, %123 : vector<16x32xf32>
    %c19 = arith.constant 19 : index
    %c0_51 = arith.constant 0 : index
    %125 = vector.load %arg2[%c19, %c0_51] : memref<40x128xf32, #tpu.memory_space<vmem>>, vector<1x32xf32>
    %126 = vector.broadcast %125 : vector<1x32xf32> to vector<16x32xf32>
    %127 = arith.addf %124, %126 : vector<16x32xf32>
    %128 = arith.addf %41, %127 : vector<16x32xf32>
    %c22 = arith.constant 22 : index
    %c0_52 = arith.constant 0 : index
    %129 = vector.load %arg2[%c22, %c0_52] : memref<40x128xf32, #tpu.memory_space<vmem>>, vector<1x32xf32>
    %c23 = arith.constant 23 : index
    %c0_53 = arith.constant 0 : index
    %130 = vector.load %arg2[%c23, %c0_53] : memref<40x128xf32, #tpu.memory_space<vmem>>, vector<1x32xf32>
    %cst_54 = arith.constant dense<0.000000e+00> : vector<16xf32>
    %131 = vector.multi_reduction <add>, %128, %cst_54 [1] : vector<16x32xf32> to vector<16xf32>
    %132 = vector.shape_cast %131 : vector<16xf32> to vector<16x1xf32>
    %cst_55 = arith.constant 3.200000e+01 : f32
    %133 = vector.broadcast %cst_55 : f32 to vector<16x1xf32>
    %134 = arith.divf %132, %133 : vector<16x1xf32>
    %135 = vector.broadcast %134 : vector<16x1xf32> to vector<16x32xf32>
    %136 = arith.subf %128, %135 : vector<16x32xf32>
    %137 = arith.mulf %136, %136 : vector<16x32xf32>
    %cst_56 = arith.constant dense<0.000000e+00> : vector<16xf32>
    %138 = vector.multi_reduction <add>, %137, %cst_56 [1] : vector<16x32xf32> to vector<16xf32>
    %139 = vector.shape_cast %138 : vector<16xf32> to vector<16x1xf32>
    %cst_57 = arith.constant 3.200000e+01 : f32
    %140 = vector.broadcast %cst_57 : f32 to vector<16x1xf32>
    %141 = arith.divf %139, %140 : vector<16x1xf32>
    %142 = vector.broadcast %134 : vector<16x1xf32> to vector<16x32xf32>
    %143 = arith.subf %128, %142 : vector<16x32xf32>
    %cst_58 = arith.constant 9.99999996E-13 : f32
    %144 = vector.broadcast %cst_58 : f32 to vector<16x1xf32>
    %145 = arith.addf %141, %144 : vector<16x1xf32>
    %146 = math.rsqrt %145 : vector<16x1xf32>
    %147 = vector.broadcast %146 : vector<16x1xf32> to vector<16x32xf32>
    %148 = arith.mulf %143, %147 : vector<16x32xf32>
    %149 = vector.broadcast %129 : vector<1x32xf32> to vector<16x32xf32>
    %150 = arith.mulf %148, %149 : vector<16x32xf32>
    %151 = vector.broadcast %130 : vector<1x32xf32> to vector<16x32xf32>
    %152 = arith.addf %150, %151 : vector<16x32xf32>
    %153 = arith.truncf %152 : vector<16x32xf32> to vector<16x32xbf16>
    %c288 = arith.constant 288 : index
    %c0_59 = arith.constant 0 : index
    %154 = vector.load %arg1[%c288, %c0_59] : memref<800x128xbf16, #tpu.memory_space<vmem>>, vector<32x64xbf16>
    %cst_60 = arith.constant dense<0.000000e+00> : vector<16x64xf32>
    %155 = tpu.matmul %153, %154, %cst_60 {dimension_numbers = #tpu.dot_dimension_numbers<[1], [0], [0], [1], [0, 0, 1, 1], [], []>} : vector<16x32xbf16>, vector<32x64xbf16>, vector<16x64xf32> -> vector<16x64xf32>
    %c20 = arith.constant 20 : index
    %c0_61 = arith.constant 0 : index
    %156 = vector.load %arg2[%c20, %c0_61] : memref<40x128xf32, #tpu.memory_space<vmem>>, vector<1x64xf32>
    %157 = vector.broadcast %156 : vector<1x64xf32> to vector<16x64xf32>
    %158 = arith.addf %155, %157 : vector<16x64xf32>
    %159 = arith.mulf %158, %158 : vector<16x64xf32>
    %160 = arith.mulf %158, %159 : vector<16x64xf32>
    %cst_62 = arith.constant 4.471500e-02 : f32
    %161 = vector.broadcast %cst_62 : f32 to vector<16x64xf32>
    %162 = arith.mulf %161, %160 : vector<16x64xf32>
    %163 = arith.addf %158, %162 : vector<16x64xf32>
    %cst_63 = arith.constant 0.797884583 : f32
    %164 = vector.broadcast %cst_63 : f32 to vector<16x64xf32>
    %165 = arith.mulf %164, %163 : vector<16x64xf32>
    %166 = math.tanh %165 : vector<16x64xf32>
    %cst_64 = arith.constant 1.000000e+00 : f32
    %167 = vector.broadcast %cst_64 : f32 to vector<16x64xf32>
    %168 = arith.addf %167, %166 : vector<16x64xf32>
    %cst_65 = arith.constant 5.000000e-01 : f32
    %169 = vector.broadcast %cst_65 : f32 to vector<16x64xf32>
    %170 = arith.mulf %169, %168 : vector<16x64xf32>
    %171 = arith.mulf %158, %170 : vector<16x64xf32>
    %172 = arith.truncf %171 : vector<16x64xf32> to vector<16x64xbf16>
    %c320 = arith.constant 320 : index
    %c0_66 = arith.constant 0 : index
    %173 = vector.load %arg1[%c320, %c0_66] : memref<800x128xbf16, #tpu.memory_space<vmem>>, vector<64x32xbf16>
    %cst_67 = arith.constant dense<0.000000e+00> : vector<16x32xf32>
    %174 = tpu.matmul %172, %173, %cst_67 {dimension_numbers = #tpu.dot_dimension_numbers<[1], [0], [0], [1], [0, 0, 1, 1], [], []>} : vector<16x64xbf16>, vector<64x32xbf16>, vector<16x32xf32> -> vector<16x32xf32>
    %c21 = arith.constant 21 : index
    %c0_68 = arith.constant 0 : index
    %175 = vector.load %arg2[%c21, %c0_68] : memref<40x128xf32, #tpu.memory_space<vmem>>, vector<1x32xf32>
    %176 = vector.broadcast %175 : vector<1x32xf32> to vector<16x32xf32>
    %177 = arith.addf %174, %176 : vector<16x32xf32>
    %178 = arith.addf %152, %177 : vector<16x32xf32>
    %c24 = arith.constant 24 : index
    %c0_69 = arith.constant 0 : index
    %179 = vector.load %arg2[%c24, %c0_69] : memref<40x128xf32, #tpu.memory_space<vmem>>, vector<1x32xf32>
    %c25 = arith.constant 25 : index
    %c0_70 = arith.constant 0 : index
    %180 = vector.load %arg2[%c25, %c0_70] : memref<40x128xf32, #tpu.memory_space<vmem>>, vector<1x32xf32>
    %cst_71 = arith.constant dense<0.000000e+00> : vector<16xf32>
    %181 = vector.multi_reduction <add>, %178, %cst_71 [1] : vector<16x32xf32> to vector<16xf32>
    %182 = vector.shape_cast %181 : vector<16xf32> to vector<16x1xf32>
    %cst_72 = arith.constant 3.200000e+01 : f32
    %183 = vector.broadcast %cst_72 : f32 to vector<16x1xf32>
    %184 = arith.divf %182, %183 : vector<16x1xf32>
    %185 = vector.broadcast %184 : vector<16x1xf32> to vector<16x32xf32>
    %186 = arith.subf %178, %185 : vector<16x32xf32>
    %187 = arith.mulf %186, %186 : vector<16x32xf32>
    %cst_73 = arith.constant dense<0.000000e+00> : vector<16xf32>
    %188 = vector.multi_reduction <add>, %187, %cst_73 [1] : vector<16x32xf32> to vector<16xf32>
    %189 = vector.shape_cast %188 : vector<16xf32> to vector<16x1xf32>
    %cst_74 = arith.constant 3.200000e+01 : f32
    %190 = vector.broadcast %cst_74 : f32 to vector<16x1xf32>
    %191 = arith.divf %189, %190 : vector<16x1xf32>
    %192 = vector.broadcast %184 : vector<16x1xf32> to vector<16x32xf32>
    %193 = arith.subf %178, %192 : vector<16x32xf32>
    %cst_75 = arith.constant 9.99999996E-13 : f32
    %194 = vector.broadcast %cst_75 : f32 to vector<16x1xf32>
    %195 = arith.addf %191, %194 : vector<16x1xf32>
    %196 = math.rsqrt %195 : vector<16x1xf32>
    %197 = vector.broadcast %196 : vector<16x1xf32> to vector<16x32xf32>
    %198 = arith.mulf %193, %197 : vector<16x32xf32>
    %199 = vector.broadcast %179 : vector<1x32xf32> to vector<16x32xf32>
    %200 = arith.mulf %198, %199 : vector<16x32xf32>
    %201 = vector.broadcast %180 : vector<1x32xf32> to vector<16x32xf32>
    %202 = arith.addf %200, %201 : vector<16x32xf32>
    %203 = arith.truncf %202 : vector<16x32xf32> to vector<16x32xbf16>
    %cst_76 = arith.constant 0.000000e+00 : f32
    %204 = vector.broadcast %cst_76 : f32 to vector<16x32xf32>
    %c384 = arith.constant 384 : index
    %c0_77 = arith.constant 0 : index
    %205 = vector.load %arg1[%c384, %c0_77] : memref<800x128xbf16, #tpu.memory_space<vmem>>, vector<32x16xbf16>
    %cst_78 = arith.constant dense<0.000000e+00> : vector<16x16xf32>
    %206 = tpu.matmul %203, %205, %cst_78 {dimension_numbers = #tpu.dot_dimension_numbers<[1], [0], [0], [1], [0, 0, 1, 1], [], []>} : vector<16x32xbf16>, vector<32x16xbf16>, vector<16x16xf32> -> vector<16x16xf32>
    %c26 = arith.constant 26 : index
    %c0_79 = arith.constant 0 : index
    %207 = vector.load %arg2[%c26, %c0_79] : memref<40x128xf32, #tpu.memory_space<vmem>>, vector<1x16xf32>
    %208 = vector.broadcast %207 : vector<1x16xf32> to vector<16x16xf32>
    %209 = arith.addf %206, %208 : vector<16x16xf32>
    %c448 = arith.constant 448 : index
    %c0_80 = arith.constant 0 : index
    %210 = vector.load %arg1[%c448, %c0_80] : memref<800x128xbf16, #tpu.memory_space<vmem>>, vector<32x16xbf16>
    %cst_81 = arith.constant dense<0.000000e+00> : vector<16x16xf32>
    %211 = tpu.matmul %203, %210, %cst_81 {dimension_numbers = #tpu.dot_dimension_numbers<[1], [0], [0], [1], [0, 0, 1, 1], [], []>} : vector<16x32xbf16>, vector<32x16xbf16>, vector<16x16xf32> -> vector<16x16xf32>
    %c28 = arith.constant 28 : index
    %c0_82 = arith.constant 0 : index
    %212 = vector.load %arg2[%c28, %c0_82] : memref<40x128xf32, #tpu.memory_space<vmem>>, vector<1x16xf32>
    %213 = vector.broadcast %212 : vector<1x16xf32> to vector<16x16xf32>
    %214 = arith.addf %211, %213 : vector<16x16xf32>
    %c512 = arith.constant 512 : index
    %c0_83 = arith.constant 0 : index
    %215 = vector.load %arg1[%c512, %c0_83] : memref<800x128xbf16, #tpu.memory_space<vmem>>, vector<32x16xbf16>
    %cst_84 = arith.constant dense<0.000000e+00> : vector<16x16xf32>
    %216 = tpu.matmul %203, %215, %cst_84 {dimension_numbers = #tpu.dot_dimension_numbers<[1], [0], [0], [1], [0, 0, 1, 1], [], []>} : vector<16x32xbf16>, vector<32x16xbf16>, vector<16x16xf32> -> vector<16x16xf32>
    %c30 = arith.constant 30 : index
    %c0_85 = arith.constant 0 : index
    %217 = vector.load %arg2[%c30, %c0_85] : memref<40x128xf32, #tpu.memory_space<vmem>>, vector<1x16xf32>
    %218 = vector.broadcast %217 : vector<1x16xf32> to vector<16x16xf32>
    %219 = arith.addf %216, %218 : vector<16x16xf32>
    %220 = vector.shape_cast %209 : vector<16x16xf32> to vector<2x8x16xf32>
    %221 = vector.shape_cast %214 : vector<16x16xf32> to vector<2x8x16xf32>
    %222 = vector.shape_cast %219 : vector<16x16xf32> to vector<2x8x16xf32>
    "tpu.trace_start"() <{level = 10 : i32, message = "bqd,bkd->bqk"}> : () -> ()
    %cst_86 = arith.constant dense<0.000000e+00> : vector<2x8x8xf32>
    %223 = tpu.matmul %220, %221, %cst_86 {dimension_numbers = #tpu.dot_dimension_numbers<[2], [2], [1], [1], [0, 0, 0, 1, 1, 1], [0], [0]>} : vector<2x8x16xf32>, vector<2x8x16xf32>, vector<2x8x8xf32> -> vector<2x8x8xf32>
    "tpu.trace_stop"() : () -> ()
    %cst_87 = arith.constant 2.500000e-01 : f32
    %224 = vector.broadcast %cst_87 : f32 to vector<2x8x8xf32>
    %225 = arith.mulf %223, %224 : vector<2x8x8xf32>
    %226 = vector.broadcast %46 : vector<2x1x8xf32> to vector<2x8x8xf32>
    %227 = arith.addf %225, %226 : vector<2x8x8xf32>
    %cst_88 = arith.constant dense<0xFF800000> : vector<2x8xf32>
    %228 = vector.multi_reduction <maximumf>, %227, %cst_88 [2] : vector<2x8x8xf32> to vector<2x8xf32>
    %229 = vector.shape_cast %228 : vector<2x8xf32> to vector<2x8x1xf32>
    %230 = vector.broadcast %229 : vector<2x8x1xf32> to vector<2x8x8xf32>
    %231 = arith.subf %227, %230 : vector<2x8x8xf32>
    %232 = math.exp %231 : vector<2x8x8xf32>
    %cst_89 = arith.constant dense<0.000000e+00> : vector<2x8xf32>
    %233 = vector.multi_reduction <add>, %232, %cst_89 [2] : vector<2x8x8xf32> to vector<2x8xf32>
    %234 = vector.shape_cast %233 : vector<2x8xf32> to vector<2x8x1xf32>
    %235 = vector.broadcast %234 : vector<2x8x1xf32> to vector<2x8x8xf32>
    %236 = arith.divf %232, %235 : vector<2x8x8xf32>
    "tpu.trace_start"() <{level = 10 : i32, message = "bqk,bkd->bqd"}> : () -> ()
    %cst_90 = arith.constant dense<0.000000e+00> : vector<2x8x16xf32>
    %237 = tpu.matmul %236, %222, %cst_90 {dimension_numbers = #tpu.dot_dimension_numbers<[2], [1], [1], [2], [0, 0, 0, 1, 1, 2], [0], [0]>} : vector<2x8x8xf32>, vector<2x8x16xf32>, vector<2x8x16xf32> -> vector<2x8x16xf32>
    "tpu.trace_stop"() : () -> ()
    %238 = vector.shape_cast %237 : vector<2x8x16xf32> to vector<16x16xf32>
    %c576 = arith.constant 576 : index
    %c0_91 = arith.constant 0 : index
    %239 = vector.load %arg1[%c576, %c0_91] : memref<800x128xbf16, #tpu.memory_space<vmem>>, vector<16x32xbf16>
    %240 = arith.truncf %238 : vector<16x16xf32> to vector<16x16xbf16>
    %cst_92 = arith.constant dense<0.000000e+00> : vector<16x32xf32>
    %241 = tpu.matmul %240, %239, %cst_92 {dimension_numbers = #tpu.dot_dimension_numbers<[1], [0], [0], [1], [0, 0, 1, 1], [], []>} : vector<16x16xbf16>, vector<16x32xbf16>, vector<16x32xf32> -> vector<16x32xf32>
    %242 = arith.addf %204, %241 : vector<16x32xf32>
    %c416 = arith.constant 416 : index
    %c0_93 = arith.constant 0 : index
    %243 = vector.load %arg1[%c416, %c0_93] : memref<800x128xbf16, #tpu.memory_space<vmem>>, vector<32x16xbf16>
    %cst_94 = arith.constant dense<0.000000e+00> : vector<16x16xf32>
    %244 = tpu.matmul %203, %243, %cst_94 {dimension_numbers = #tpu.dot_dimension_numbers<[1], [0], [0], [1], [0, 0, 1, 1], [], []>} : vector<16x32xbf16>, vector<32x16xbf16>, vector<16x16xf32> -> vector<16x16xf32>
    %c27 = arith.constant 27 : index
    %c0_95 = arith.constant 0 : index
    %245 = vector.load %arg2[%c27, %c0_95] : memref<40x128xf32, #tpu.memory_space<vmem>>, vector<1x16xf32>
    %246 = vector.broadcast %245 : vector<1x16xf32> to vector<16x16xf32>
    %247 = arith.addf %244, %246 : vector<16x16xf32>
    %c480 = arith.constant 480 : index
    %c0_96 = arith.constant 0 : index
    %248 = vector.load %arg1[%c480, %c0_96] : memref<800x128xbf16, #tpu.memory_space<vmem>>, vector<32x16xbf16>
    %cst_97 = arith.constant dense<0.000000e+00> : vector<16x16xf32>
    %249 = tpu.matmul %203, %248, %cst_97 {dimension_numbers = #tpu.dot_dimension_numbers<[1], [0], [0], [1], [0, 0, 1, 1], [], []>} : vector<16x32xbf16>, vector<32x16xbf16>, vector<16x16xf32> -> vector<16x16xf32>
    %c29 = arith.constant 29 : index
    %c0_98 = arith.constant 0 : index
    %250 = vector.load %arg2[%c29, %c0_98] : memref<40x128xf32, #tpu.memory_space<vmem>>, vector<1x16xf32>
    %251 = vector.broadcast %250 : vector<1x16xf32> to vector<16x16xf32>
    %252 = arith.addf %249, %251 : vector<16x16xf32>
    %c544 = arith.constant 544 : index
    %c0_99 = arith.constant 0 : index
    %253 = vector.load %arg1[%c544, %c0_99] : memref<800x128xbf16, #tpu.memory_space<vmem>>, vector<32x16xbf16>
    %cst_100 = arith.constant dense<0.000000e+00> : vector<16x16xf32>
    %254 = tpu.matmul %203, %253, %cst_100 {dimension_numbers = #tpu.dot_dimension_numbers<[1], [0], [0], [1], [0, 0, 1, 1], [], []>} : vector<16x32xbf16>, vector<32x16xbf16>, vector<16x16xf32> -> vector<16x16xf32>
    %c31 = arith.constant 31 : index
    %c0_101 = arith.constant 0 : index
    %255 = vector.load %arg2[%c31, %c0_101] : memref<40x128xf32, #tpu.memory_space<vmem>>, vector<1x16xf32>
    %256 = vector.broadcast %255 : vector<1x16xf32> to vector<16x16xf32>
    %257 = arith.addf %254, %256 : vector<16x16xf32>
    %258 = vector.shape_cast %247 : vector<16x16xf32> to vector<2x8x16xf32>
    %259 = vector.shape_cast %252 : vector<16x16xf32> to vector<2x8x16xf32>
    %260 = vector.shape_cast %257 : vector<16x16xf32> to vector<2x8x16xf32>
    "tpu.trace_start"() <{level = 10 : i32, message = "bqd,bkd->bqk"}> : () -> ()
    %cst_102 = arith.constant dense<0.000000e+00> : vector<2x8x8xf32>
    %261 = tpu.matmul %258, %259, %cst_102 {dimension_numbers = #tpu.dot_dimension_numbers<[2], [2], [1], [1], [0, 0, 0, 1, 1, 1], [0], [0]>} : vector<2x8x16xf32>, vector<2x8x16xf32>, vector<2x8x8xf32> -> vector<2x8x8xf32>
    "tpu.trace_stop"() : () -> ()
    %cst_103 = arith.constant 2.500000e-01 : f32
    %262 = vector.broadcast %cst_103 : f32 to vector<2x8x8xf32>
    %263 = arith.mulf %261, %262 : vector<2x8x8xf32>
    %264 = vector.broadcast %46 : vector<2x1x8xf32> to vector<2x8x8xf32>
    %265 = arith.addf %263, %264 : vector<2x8x8xf32>
    %cst_104 = arith.constant dense<0xFF800000> : vector<2x8xf32>
    %266 = vector.multi_reduction <maximumf>, %265, %cst_104 [2] : vector<2x8x8xf32> to vector<2x8xf32>
    %267 = vector.shape_cast %266 : vector<2x8xf32> to vector<2x8x1xf32>
    %268 = vector.broadcast %267 : vector<2x8x1xf32> to vector<2x8x8xf32>
    %269 = arith.subf %265, %268 : vector<2x8x8xf32>
    %270 = math.exp %269 : vector<2x8x8xf32>
    %cst_105 = arith.constant dense<0.000000e+00> : vector<2x8xf32>
    %271 = vector.multi_reduction <add>, %270, %cst_105 [2] : vector<2x8x8xf32> to vector<2x8xf32>
    %272 = vector.shape_cast %271 : vector<2x8xf32> to vector<2x8x1xf32>
    %273 = vector.broadcast %272 : vector<2x8x1xf32> to vector<2x8x8xf32>
    %274 = arith.divf %270, %273 : vector<2x8x8xf32>
    "tpu.trace_start"() <{level = 10 : i32, message = "bqk,bkd->bqd"}> : () -> ()
    %cst_106 = arith.constant dense<0.000000e+00> : vector<2x8x16xf32>
    %275 = tpu.matmul %274, %260, %cst_106 {dimension_numbers = #tpu.dot_dimension_numbers<[2], [1], [1], [2], [0, 0, 0, 1, 1, 2], [0], [0]>} : vector<2x8x8xf32>, vector<2x8x16xf32>, vector<2x8x16xf32> -> vector<2x8x16xf32>
    "tpu.trace_stop"() : () -> ()
    %276 = vector.shape_cast %275 : vector<2x8x16xf32> to vector<16x16xf32>
    %c592 = arith.constant 592 : index
    %c0_107 = arith.constant 0 : index
    %277 = vector.load %arg1[%c592, %c0_107] : memref<800x128xbf16, #tpu.memory_space<vmem>>, vector<16x32xbf16>
    %278 = arith.truncf %276 : vector<16x16xf32> to vector<16x16xbf16>
    %cst_108 = arith.constant dense<0.000000e+00> : vector<16x32xf32>
    %279 = tpu.matmul %278, %277, %cst_108 {dimension_numbers = #tpu.dot_dimension_numbers<[1], [0], [0], [1], [0, 0, 1, 1], [], []>} : vector<16x16xbf16>, vector<16x32xbf16>, vector<16x32xf32> -> vector<16x32xf32>
    %280 = arith.addf %242, %279 : vector<16x32xf32>
    %c32 = arith.constant 32 : index
    %c0_109 = arith.constant 0 : index
    %281 = vector.load %arg2[%c32, %c0_109] : memref<40x128xf32, #tpu.memory_space<vmem>>, vector<1x32xf32>
    %282 = vector.broadcast %281 : vector<1x32xf32> to vector<16x32xf32>
    %283 = arith.addf %280, %282 : vector<16x32xf32>
    %284 = arith.addf %202, %283 : vector<16x32xf32>
    %c35 = arith.constant 35 : index
    %c0_110 = arith.constant 0 : index
    %285 = vector.load %arg2[%c35, %c0_110] : memref<40x128xf32, #tpu.memory_space<vmem>>, vector<1x32xf32>
    %c36 = arith.constant 36 : index
    %c0_111 = arith.constant 0 : index
    %286 = vector.load %arg2[%c36, %c0_111] : memref<40x128xf32, #tpu.memory_space<vmem>>, vector<1x32xf32>
    %cst_112 = arith.constant dense<0.000000e+00> : vector<16xf32>
    %287 = vector.multi_reduction <add>, %284, %cst_112 [1] : vector<16x32xf32> to vector<16xf32>
    %288 = vector.shape_cast %287 : vector<16xf32> to vector<16x1xf32>
    %cst_113 = arith.constant 3.200000e+01 : f32
    %289 = vector.broadcast %cst_113 : f32 to vector<16x1xf32>
    %290 = arith.divf %288, %289 : vector<16x1xf32>
    %291 = vector.broadcast %290 : vector<16x1xf32> to vector<16x32xf32>
    %292 = arith.subf %284, %291 : vector<16x32xf32>
    %293 = arith.mulf %292, %292 : vector<16x32xf32>
    %cst_114 = arith.constant dense<0.000000e+00> : vector<16xf32>
    %294 = vector.multi_reduction <add>, %293, %cst_114 [1] : vector<16x32xf32> to vector<16xf32>
    %295 = vector.shape_cast %294 : vector<16xf32> to vector<16x1xf32>
    %cst_115 = arith.constant 3.200000e+01 : f32
    %296 = vector.broadcast %cst_115 : f32 to vector<16x1xf32>
    %297 = arith.divf %295, %296 : vector<16x1xf32>
    %298 = vector.broadcast %290 : vector<16x1xf32> to vector<16x32xf32>
    %299 = arith.subf %284, %298 : vector<16x32xf32>
    %cst_116 = arith.constant 9.99999996E-13 : f32
    %300 = vector.broadcast %cst_116 : f32 to vector<16x1xf32>
    %301 = arith.addf %297, %300 : vector<16x1xf32>
    %302 = math.rsqrt %301 : vector<16x1xf32>
    %303 = vector.broadcast %302 : vector<16x1xf32> to vector<16x32xf32>
    %304 = arith.mulf %299, %303 : vector<16x32xf32>
    %305 = vector.broadcast %285 : vector<1x32xf32> to vector<16x32xf32>
    %306 = arith.mulf %304, %305 : vector<16x32xf32>
    %307 = vector.broadcast %286 : vector<1x32xf32> to vector<16x32xf32>
    %308 = arith.addf %306, %307 : vector<16x32xf32>
    %309 = arith.truncf %308 : vector<16x32xf32> to vector<16x32xbf16>
    %c608 = arith.constant 608 : index
    %c0_117 = arith.constant 0 : index
    %310 = vector.load %arg1[%c608, %c0_117] : memref<800x128xbf16, #tpu.memory_space<vmem>>, vector<32x64xbf16>
    %cst_118 = arith.constant dense<0.000000e+00> : vector<16x64xf32>
    %311 = tpu.matmul %309, %310, %cst_118 {dimension_numbers = #tpu.dot_dimension_numbers<[1], [0], [0], [1], [0, 0, 1, 1], [], []>} : vector<16x32xbf16>, vector<32x64xbf16>, vector<16x64xf32> -> vector<16x64xf32>
    %c33 = arith.constant 33 : index
    %c0_119 = arith.constant 0 : index
    %312 = vector.load %arg2[%c33, %c0_119] : memref<40x128xf32, #tpu.memory_space<vmem>>, vector<1x64xf32>
    %313 = vector.broadcast %312 : vector<1x64xf32> to vector<16x64xf32>
    %314 = arith.addf %311, %313 : vector<16x64xf32>
    %315 = arith.mulf %314, %314 : vector<16x64xf32>
    %316 = arith.mulf %314, %315 : vector<16x64xf32>
    %cst_120 = arith.constant 4.471500e-02 : f32
    %317 = vector.broadcast %cst_120 : f32 to vector<16x64xf32>
    %318 = arith.mulf %317, %316 : vector<16x64xf32>
    %319 = arith.addf %314, %318 : vector<16x64xf32>
    %cst_121 = arith.constant 0.797884583 : f32
    %320 = vector.broadcast %cst_121 : f32 to vector<16x64xf32>
    %321 = arith.mulf %320, %319 : vector<16x64xf32>
    %322 = math.tanh %321 : vector<16x64xf32>
    %cst_122 = arith.constant 1.000000e+00 : f32
    %323 = vector.broadcast %cst_122 : f32 to vector<16x64xf32>
    %324 = arith.addf %323, %322 : vector<16x64xf32>
    %cst_123 = arith.constant 5.000000e-01 : f32
    %325 = vector.broadcast %cst_123 : f32 to vector<16x64xf32>
    %326 = arith.mulf %325, %324 : vector<16x64xf32>
    %327 = arith.mulf %314, %326 : vector<16x64xf32>
    %328 = arith.truncf %327 : vector<16x64xf32> to vector<16x64xbf16>
    %c640 = arith.constant 640 : index
    %c0_124 = arith.constant 0 : index
    %329 = vector.load %arg1[%c640, %c0_124] : memref<800x128xbf16, #tpu.memory_space<vmem>>, vector<64x32xbf16>
    %cst_125 = arith.constant dense<0.000000e+00> : vector<16x32xf32>
    %330 = tpu.matmul %328, %329, %cst_125 {dimension_numbers = #tpu.dot_dimension_numbers<[1], [0], [0], [1], [0, 0, 1, 1], [], []>} : vector<16x64xbf16>, vector<64x32xbf16>, vector<16x32xf32> -> vector<16x32xf32>
    %c34 = arith.constant 34 : index
    %c0_126 = arith.constant 0 : index
    %331 = vector.load %arg2[%c34, %c0_126] : memref<40x128xf32, #tpu.memory_space<vmem>>, vector<1x32xf32>
    %332 = vector.broadcast %331 : vector<1x32xf32> to vector<16x32xf32>
    %333 = arith.addf %330, %332 : vector<16x32xf32>
    %334 = arith.addf %308, %333 : vector<16x32xf32>
    %c37 = arith.constant 37 : index
    %c0_127 = arith.constant 0 : index
    %335 = vector.load %arg2[%c37, %c0_127] : memref<40x128xf32, #tpu.memory_space<vmem>>, vector<1x32xf32>
    %c38 = arith.constant 38 : index
    %c0_128 = arith.constant 0 : index
    %336 = vector.load %arg2[%c38, %c0_128] : memref<40x128xf32, #tpu.memory_space<vmem>>, vector<1x32xf32>
    %cst_129 = arith.constant dense<0.000000e+00> : vector<16xf32>
    %337 = vector.multi_reduction <add>, %334, %cst_129 [1] : vector<16x32xf32> to vector<16xf32>
    %338 = vector.shape_cast %337 : vector<16xf32> to vector<16x1xf32>
    %cst_130 = arith.constant 3.200000e+01 : f32
    %339 = vector.broadcast %cst_130 : f32 to vector<16x1xf32>
    %340 = arith.divf %338, %339 : vector<16x1xf32>
    %341 = vector.broadcast %340 : vector<16x1xf32> to vector<16x32xf32>
    %342 = arith.subf %334, %341 : vector<16x32xf32>
    %343 = arith.mulf %342, %342 : vector<16x32xf32>
    %cst_131 = arith.constant dense<0.000000e+00> : vector<16xf32>
    %344 = vector.multi_reduction <add>, %343, %cst_131 [1] : vector<16x32xf32> to vector<16xf32>
    %345 = vector.shape_cast %344 : vector<16xf32> to vector<16x1xf32>
    %cst_132 = arith.constant 3.200000e+01 : f32
    %346 = vector.broadcast %cst_132 : f32 to vector<16x1xf32>
    %347 = arith.divf %345, %346 : vector<16x1xf32>
    %348 = vector.broadcast %340 : vector<16x1xf32> to vector<16x32xf32>
    %349 = arith.subf %334, %348 : vector<16x32xf32>
    %cst_133 = arith.constant 9.99999996E-13 : f32
    %350 = vector.broadcast %cst_133 : f32 to vector<16x1xf32>
    %351 = arith.addf %347, %350 : vector<16x1xf32>
    %352 = math.rsqrt %351 : vector<16x1xf32>
    %353 = vector.broadcast %352 : vector<16x1xf32> to vector<16x32xf32>
    %354 = arith.mulf %349, %353 : vector<16x32xf32>
    %355 = vector.broadcast %335 : vector<1x32xf32> to vector<16x32xf32>
    %356 = arith.mulf %354, %355 : vector<16x32xf32>
    %357 = vector.broadcast %336 : vector<1x32xf32> to vector<16x32xf32>
    %358 = arith.addf %356, %357 : vector<16x32xf32>
    %359 = vector.shape_cast %358 : vector<16x32xf32> to vector<2x8x32xf32>
    %360 = vector.extract_strided_slice %359 {offsets = [0, 0, 0], sizes = [2, 1, 32], strides = [1, 1, 1]} : vector<2x8x32xf32> to vector<2x1x32xf32>
    %361 = vector.shape_cast %360 : vector<2x1x32xf32> to vector<2x32xf32>
    %362 = arith.truncf %361 : vector<2x32xf32> to vector<2x32xbf16>
    %c704 = arith.constant 704 : index
    %c0_134 = arith.constant 0 : index
    %363 = vector.load %arg1[%c704, %c0_134] : memref<800x128xbf16, #tpu.memory_space<vmem>>, vector<32x32xbf16>
    %cst_135 = arith.constant dense<0.000000e+00> : vector<2x32xf32>
    %364 = tpu.matmul %362, %363, %cst_135 {dimension_numbers = #tpu.dot_dimension_numbers<[1], [0], [0], [1], [0, 0, 1, 1], [], []>} : vector<2x32xbf16>, vector<32x32xbf16>, vector<2x32xf32> -> vector<2x32xf32>
    %c2 = arith.constant 2 : index
    %c0_136 = arith.constant 0 : index
    %365 = vector.load %arg2[%c2, %c0_136] : memref<40x128xf32, #tpu.memory_space<vmem>>, vector<1x32xf32>
    %366 = vector.broadcast %365 : vector<1x32xf32> to vector<2x32xf32>
    %367 = arith.addf %364, %366 : vector<2x32xf32>
    %368 = math.tanh %367 : vector<2x32xf32>
    %369 = arith.truncf %368 : vector<2x32xf32> to vector<2x32xbf16>
    %c736 = arith.constant 736 : index
    %c0_137 = arith.constant 0 : index
    %370 = vector.load %arg1[%c736, %c0_137] : memref<800x128xbf16, #tpu.memory_space<vmem>>, vector<32x32xbf16>
    %cst_138 = arith.constant dense<0.000000e+00> : vector<2x32xf32>
    %371 = tpu.matmul %369, %370, %cst_138 {dimension_numbers = #tpu.dot_dimension_numbers<[1], [0], [0], [1], [0, 0, 1, 1], [], []>} : vector<2x32xbf16>, vector<32x32xbf16>, vector<2x32xf32> -> vector<2x32xf32>
    %c3 = arith.constant 3 : index
    %c0_139 = arith.constant 0 : index
    %372 = vector.load %arg2[%c3, %c0_139] : memref<40x128xf32, #tpu.memory_space<vmem>>, vector<1x32xf32>
    %373 = vector.broadcast %372 : vector<1x32xf32> to vector<2x32xf32>
    %374 = arith.addf %371, %373 : vector<2x32xf32>
    %375 = arith.truncf %374 : vector<2x32xf32> to vector<2x32xbf16>
    %c768 = arith.constant 768 : index
    %c0_140 = arith.constant 0 : index
    %376 = vector.load %arg1[%c768, %c0_140] : memref<800x128xbf16, #tpu.memory_space<vmem>>, vector<32x128xbf16>
    %cst_141 = arith.constant dense<0.000000e+00> : vector<2x128xf32>
    %377 = tpu.matmul %375, %376, %cst_141 {dimension_numbers = #tpu.dot_dimension_numbers<[1], [0], [0], [1], [0, 0, 1, 1], [], []>} : vector<2x32xbf16>, vector<32x128xbf16>, vector<2x128xf32> -> vector<2x128xf32>
    %c4 = arith.constant 4 : index
    %c0_142 = arith.constant 0 : index
    %378 = vector.load %arg2[%c4, %c0_142] : memref<40x128xf32, #tpu.memory_space<vmem>>, vector<1x128xf32>
    %379 = vector.broadcast %378 : vector<1x128xf32> to vector<2x128xf32>
    %380 = arith.addf %377, %379 : vector<2x128xf32>
    %c0_143 = arith.constant 0 : index
    %c0_144 = arith.constant 0 : index
    %381 = vector.load %arg3[%c0_143, %c0_144] : memref<2x128xf32, #tpu.memory_space<vmem>>, vector<2x128xf32>
    tpu.vector_store %arg3[%c0_143, %c0_144], %380 {strides = array<i32>} : memref<2x128xf32, #tpu.memory_space<vmem>>, vector<2x128xf32>,
    return
  }
}

</mosaic_0001>

<llo_original>
// kernel: tpu_custom_call.1
$region0: #{tpu_custom_call.1}
  #allocation0 [shape = 'u32[]', space=smem, size = 0x4, offset = 0x4, fixed_abs, tag = 'smem constant byte address 0x4 - core index']
  #allocation1 [shape = 'u32[144,128]{1,0:T(1,128)}', space=vmem, size = 0x12000, scoped, tag = 'internal scratch']
  %s0 = inlined_call_operand.hbm [shape: s32[2,2,8], index: 0, kind: input, shape index: {}]
  %s1 = inlined_call_operand.hbm [shape: bf16[800,128], index: 1, kind: input, shape index: {}]
  %s2 = inlined_call_operand.hbm [shape: f32[40,128], index: 2, kind: input, shape index: {}]
  %s3 = inlined_call_operand.hbm [shape: f32[2,128], index: 3, kind: output, shape index: {}]
  %s4 = sld [smem:[#allocation0]]
  $region34: #{tpu_custom_call.1} parent=0
    _
  %s6 = ssub.s32 1, %s4
  %s7 = scalar_select 0, %s6, %s4
  $region1: #{tpu_custom_call.1} parent=0
    #allocation2 [shape = 'u8[2048]{0}', space=vmem, size = 0x800, scoped, tag = 'input window, operand 0, single buffered']
    #allocation3 [shape = 's32[1]{0}', space=sflag, size = 0x4, scoped, tag = 'scoped memory for tpu_custom_call.1']
    #allocation4 [shape = 's32[1]{0}', space=sflag, size = 0x4, scoped, tag = 'scoped memory for tpu_custom_call.1']
    #allocation5 [shape = 'u8[204800]{0}', space=vmem, size = 0x32000, scoped, tag = 'input window, operand 1, single buffered']
    #allocation6 [shape = 's32[1]{0}', space=sflag, size = 0x4, scoped, tag = 'scoped memory for tpu_custom_call.1']
    #allocation7 [shape = 'u8[20480]{0}', space=vmem, size = 0x5000, scoped, tag = 'input window, operand 2, single buffered']
    #allocation8 [shape = 'u8[1024]{0}', space=vmem, size = 0x400, scoped, tag = 'output window, operand 0, single buffered']
    %8 = vsyncpa [#allocation3], 0
    %9 = vsyncpa [#allocation6], 0
    %10 = vsyncpa [#allocation4], 0
    // Predicated region
    $region2: #{tpu_custom_call.1} parent=1 // pred_check
      _
    $region3: #{tpu_custom_call.1} parent=1 // pred_check_branch
      %12 = sbr.rel (0) target = $region5
    $region4: #{tpu_custom_call.1} parent=1 // pred_region
      %s14 = ssub.s32 64, 64
      %15 = vsyncadd [#allocation3], %s14
      %s16 = sshll.u32 [#allocation2], 4
      %s17 = int_to_ptr.vmem [resolvable:$true] %s16
      %22 = dma.hbm_to_vmem [thread:$0]  %s0, 64, %s17, [#allocation3], 32, 32, 2
    $region5: #{tpu_custom_call.1} parent=1 // pred_fallthru
      _
    // Predicated region
    $region6: #{tpu_custom_call.1} parent=1 // pred_check
      _
    $region7: #{tpu_custom_call.1} parent=1 // pred_check_branch
      %24 = sbr.rel (0) target = $region9
    $region8: #{tpu_custom_call.1} parent=1 // pred_region
      %s26 = ssub.s32 6400, 6400
      %27 = vsyncadd [#allocation6], %s26
      %s28 = sshll.u32 [#allocation5], 4
      %s29 = int_to_ptr.vmem [resolvable:$true] %s28
      %34 = dma.hbm_to_vmem [thread:$0]  %s1, 6400, %s29, [#allocation6], 64, 64, 4
    $region9: #{tpu_custom_call.1} parent=1 // pred_fallthru
      _
    // Predicated region
    $region10: #{tpu_custom_call.1} parent=1 // pred_check
      _
    $region11: #{tpu_custom_call.1} parent=1 // pred_check_branch
      %36 = sbr.rel (0) target = $region13
    $region12: #{tpu_custom_call.1} parent=1 // pred_region
      %s38 = ssub.s32 640, 640
      %39 = vsyncadd [#allocation6], %s38
      %s40 = sshll.u32 [#allocation7], 4
      %s41 = int_to_ptr.vmem [resolvable:$true] %s40
      %46 = dma.hbm_to_vmem [thread:$0]  %s2, 640, %s41, [#allocation6], 128, 128, 8
    $region13: #{tpu_custom_call.1} parent=1 // pred_fallthru
      _
    // Predicated region
    $region14: #{tpu_custom_call.1} parent=1 // pred_check
      _
    $region15: #{tpu_custom_call.1} parent=1 // pred_check_branch
      %48 = sbr.rel (0) target = $region17
    $region16: #{tpu_custom_call.1} parent=1 // pred_region
      %49 = dma.done [#allocation3], 64
    $region17: #{tpu_custom_call.1} parent=1 // pred_fallthru
      _
    // Predicated region
    $region18: #{tpu_custom_call.1} parent=1 // pred_check
      _
    $region19: #{tpu_custom_call.1} parent=1 // pred_check_branch
      %51 = sbr.rel (0) target = $region21
    $region20: #{tpu_custom_call.1} parent=1 // pred_region
      %52 = dma.done [#allocation6], 6400
    $region21: #{tpu_custom_call.1} parent=1 // pred_fallthru
      _
    // Predicated region
    $region22: #{tpu_custom_call.1} parent=1 // pred_check
      _
    $region23: #{tpu_custom_call.1} parent=1 // pred_check_branch
      %54 = sbr.rel (0) target = $region25
    $region24: #{tpu_custom_call.1} parent=1 // pred_region
      %55 = dma.done [#allocation6], 640
    $region25: #{tpu_custom_call.1} parent=1 // pred_fallthru
      _
    %v57 = vld [vmem:[#allocation2] sm:$0x3]
    %s58 = scalar_lea.vmem [#allocation2], 2
    %v59 = vld [vmem:[%s58] sm:$0x3]
    %v60 = vcvt.s32.f32 %v59
    %v61 = vlaneseq
    %v62 = vand.u32 %v61, 127
    %v63 = vlaneseq
    %v64 = vshrl.u32 %v63, 7
    %v65 = vsub.s32 0, %v64
    %v66 = vrot.slane %v57, %v65
    %68 = vbcast.lane.b32.xlu0 %v66, 256
    %v69 = vpop.permute.xlu0 %68
    %v70 = vlaneseq
    %v71 = vshrl.u32 %v70, 7
    %v72 = vsub.s32 1, %v71
    %v73 = vrot.slane %v57, %v72
    %75 = vbcast.lane.b32.xlu0 %v73, 256
    %v76 = vpop.permute.xlu0 %75
    %vm77 = vcmp.eq.s32.totalorder %v62, %v69
    %vm78 = vcmp.eq.s32.totalorder %v62, %v76
    %v79 = vsel %vm77, 1, 0
    %v80 = vsel %vm78, 1, 0
    %v81 = vcvt.s32.f32 %v79
    %v82 = vcvt.s32.f32 %v80
    %v83 = vpack.c.bf16 %v81, %v81
    %v84 = vpack.c.bf16 %v82, %v82
    %v85 = vld [vmem:[#allocation5] sm:$0xf]
    %v86 = vld [vmem:[#allocation5 + $0x4] sm:$0xf]
    %v87 = vld [vmem:[#allocation5 + $0x8] sm:$0xf]
    %v88 = vld [vmem:[#allocation5 + $0xc] sm:$0xf]
    %v89 = vld [vmem:[#allocation5 + $0x10] sm:$0xf]
    %v90 = vld [vmem:[#allocation5 + $0x14] sm:$0xf]
    %v91 = vld [vmem:[#allocation5 + $0x18] sm:$0xf]
    %v92 = vld [vmem:[#allocation5 + $0x1c] sm:$0xf]
    %v93 = vld [vmem:[#allocation7 + $0x5] sm:$0xff]
    %v96 = vunpack.c.l.b16 %v83
    %v97 = vunpack.c.l.b16 %v84
    %v98 = vpack.c.b16 %v97, %v96
    %v107 = vunpack.c.l.b16 %v85
    %v108 = vunpack.c.l.b16 %v86
    %v109 = vunpack.c.l.b16 %v87
    %v110 = vunpack.c.l.b16 %v88
    %v111 = vunpack.c.l.b16 %v89
    %v112 = vunpack.c.l.b16 %v90
    %v113 = vunpack.c.l.b16 %v91
    %v114 = vunpack.c.l.b16 %v92
    %v115 = vpack.c.b16 %v108, %v107
    %v116 = vpack.c.b16 %v110, %v109
    %v117 = vpack.c.b16 %v112, %v111
    %v118 = vpack.c.b16 %v114, %v113
    %vm123 = vcmask 523264
    %v125 = vsel %vm123, %v98, 0
    %127 = vmatprep.subr.bf16.mxu0 0
    %128 = vmatpush1.bf16.msra.mxu0 0
    %129 = vmatprep.subr.bf16.mxu0 0
    %130 = vmatpush1.bf16.msra.mxu0 0
    %131 = vmatprep.subr.bf16.mxu0 0
    %132 = vmatpush1.bf16.msra.mxu0 0
    %133 = vmatprep.subr.bf16.mxu0 0
    %134 = vmatpush1.bf16.msra.mxu0 0
    %135 = vmatprep.subr.bf16.mxu0 0
    %136 = vmatpush1.bf16.msra.mxu0 %v118
    %137 = vmatprep.subr.bf16.mxu0 0
    %138 = vmatpush1.bf16.msra.mxu0 %v117
    %139 = vmatprep.subr.bf16.mxu0 0
    %140 = vmatpush1.bf16.msra.mxu0 %v116
    %141 = vmatprep.subr.bf16.mxu0 0
    %142 = vmatpush1.bf16.msra.mxu0 %v115
    %143 = vmatprep.subr.bf16.mxu0 0
    %144 = vmatpush2.bf16.msra.mxu0 0
    %145 = vmatprep.subr.bf16.mxu0 0
    %146 = vmatpush2.bf16.msra.mxu0 0
    %147 = vmatprep.subr.bf16.mxu0 0
    %148 = vmatpush2.bf16.msra.mxu0 0
    %149 = vmatprep.subr.bf16.mxu0 0
    %150 = vmatpush2.bf16.msra.mxu0 0
    %151 = vmatprep.subr.bf16.mxu0 0
    %152 = vmatpush2.bf16.msra.mxu0 0
    %153 = vmatprep.subr.bf16.mxu0 0
    %154 = vmatpush2.bf16.msra.mxu0 0
    %155 = vmatprep.subr.bf16.mxu0 0
    %156 = vmatpush2.bf16.msra.mxu0 0
    %157 = vmatprep.subr.bf16.mxu0 0
    %158 = vmatpush2.bf16.msra.mxu0 0
    %159 = vmatprep.mubr.bf16.mxu0 0
    %160 = vmatmul.mubr.bf16.gmra.mxu0 %v125
    %v161 = vpop.f32.mrf.mxu0
    %v162 = vadd.f32 %v93, %v161
    %v163 = vpop.f32.mrf.mxu0
    %v164 = vpop.f32.mrf.mxu0
    %v165 = vadd.f32 %v93, %v164
    %v166 = vpop.f32.mrf.mxu0
    %167 = vdwg.mxu0
    %v168 = vld [vmem:[#allocation7] sm:$0x1]
    %v169 = vld [vmem:[#allocation7 + $0x1] sm:$0x1]
    %vm170 = vcmask 261120
    %v171 = vsel %vm170, %v162, 0.0
    %172 = vadd.xlane.f32.xlu0 %v171
    %v173 = vpop.xlane.xlu0 %172
    %v174 = vsel %vm170, %v165, 0.0
    %175 = vadd.xlane.f32.xlu0 %v174
    %v176 = vpop.xlane.xlu0 %175
    %v177 = vrcp.pop 32.0
    %v178 = vmul.f32 %v173, %v177
    %v179 = vmul.f32 %v176, %v177
    %v180 = vsub.f32 %v162, %v178
    %v181 = vsub.f32 %v165, %v179
    %v182 = vmul.f32 %v180, %v180
    %v183 = vmul.f32 %v181, %v181
    %v184 = vsel %vm170, %v182, 0.0
    %185 = vadd.xlane.f32.xlu0 %v184
    %v186 = vpop.xlane.xlu0 %185
    %v187 = vsel %vm170, %v183, 0.0
    %188 = vadd.xlane.f32.xlu0 %v187
    %v189 = vpop.xlane.xlu0 %188
    %v190 = vmul.f32 %v186, %v177
    %v191 = vmul.f32 %v189, %v177
    %v192 = vadd.f32 %v190, 1e-12
    %v193 = vadd.f32 %v191, 1e-12
    %v194 = vrsqrt.pop %v192
    %v195 = vrsqrt.pop %v193
    %v196 = vmul.f32 %v180, %v194
    %v197 = vmul.f32 %v181, %v195
    %v198 = vlaneseq
    %v199 = vshrl.u32 %v198, 7
    %v200 = vsub.s32 0, %v199
    %v201 = vrot.slane %v168, %v200
    %v202 = vmul.f32 %v196, %v201
    %v203 = vmul.f32 %v197, %v201
    %v204 = vlaneseq
    %v205 = vshrl.u32 %v204, 7
    %v206 = vsub.s32 0, %v205
    %v207 = vrot.slane %v169, %v206
    %v208 = vadd.f32 %v202, %v207
    %v209 = vadd.f32 %v203, %v207
    %v210 = vsub.f32 1.0, %v60
    %v211 = vmul.f32 %v210, -1e+09
    %v214 = vunpack.c.l.s4 1966171168
    %v215 = vunpack.c.0.s8 %v214
    %v216 = vlaneseq
    %v217 = vshrl.u32 %v216, 7
    %v218 = vsub.s32 %v215, %v217
    %v219 = vrot.slane %v211, %v218
    %v220 = vcombine.high %v219, %v219
    %v222 = vunpack.c.l.s4 1966171168
    %v223 = vunpack.c.0.s8 %v222
    %v224 = vlaneseq
    %v225 = vshrl.u32 %v224, 7
    %v226 = vsub.s32 %v223, %v225
    %v227 = vrot.slane %v219, %v226
    %v229 = vunpack.c.l.s4 1966171168
    %v230 = vunpack.c.0.s8 %v229
    %v231 = vlaneseq
    %v232 = vshrl.u32 %v231, 7
    %v233 = vsub.s32 %v230, %v232
    %v234 = vrot.slane %v220, %v233
    %v235 = vpack.c.bf16 %v209, %v208
    %v236 = vld [vmem:[#allocation5 + $0x20] sm:$0xf]
    %v237 = vld [vmem:[#allocation5 + $0x24] sm:$0xf]
    %v238 = vld [vmem:[#allocation5 + $0x28] sm:$0xf]
    %v239 = vld [vmem:[#allocation5 + $0x2c] sm:$0xf]
    %v240 = vld [vmem:[#allocation7 + $0xd] sm:$0x1]
    %v241 = vlaneseq
    %v242 = vshrl.u32 %v241, 7
    %v243 = vsub.s32 0, %v242
    %v244 = vrot.slane %v240, %v243
    %v249 = vunpack.c.l.b16 %v236
    %v250 = vunpack.c.l.b16 %v237
    %v251 = vunpack.c.l.b16 %v238
    %v252 = vunpack.c.l.b16 %v239
    %v253 = vpack.c.b16 %v250, %v249
    %v254 = vpack.c.b16 %v252, %v251
    %v258 = vsel %vm170, %v235, 0
    %260 = vmatprep.subr.bf16.mxu0 0
    %261 = vmatpush1.bf16.msra.mxu0 0
    %262 = vmatprep.subr.bf16.mxu0 0
    %263 = vmatpush1.bf16.msra.mxu0 0
    %264 = vmatprep.subr.bf16.mxu0 0
    %265 = vmatpush1.bf16.msra.mxu0 0
    %266 = vmatprep.subr.bf16.mxu0 0
    %267 = vmatpush1.bf16.msra.mxu0 0
    %268 = vmatprep.subr.bf16.mxu0 0
    %269 = vmatpush1.bf16.msra.mxu0 0
    %270 = vmatprep.subr.bf16.mxu0 0
    %271 = vmatpush1.bf16.msra.mxu0 0
    %272 = vmatprep.subr.bf16.mxu0 0
    %273 = vmatpush1.bf16.msra.mxu0 %v254
    %274 = vmatprep.subr.bf16.mxu0 0
    %275 = vmatpush1.bf16.msra.mxu0 %v253
    %276 = vmatprep.subr.bf16.mxu0 0
    %277 = vmatpush2.bf16.msra.mxu0 0
    %278 = vmatprep.subr.bf16.mxu0 0
    %279 = vmatpush2.bf16.msra.mxu0 0
    %280 = vmatprep.subr.bf16.mxu0 0
    %281 = vmatpush2.bf16.msra.mxu0 0
    %282 = vmatprep.subr.bf16.mxu0 0
    %283 = vmatpush2.bf16.msra.mxu0 0
    %284 = vmatprep.subr.bf16.mxu0 0
    %285 = vmatpush2.bf16.msra.mxu0 0
    %286 = vmatprep.subr.bf16.mxu0 0
    %287 = vmatpush2.bf16.msra.mxu0 0
    %288 = vmatprep.subr.bf16.mxu0 0
    %289 = vmatpush2.bf16.msra.mxu0 0
    %290 = vmatprep.subr.bf16.mxu0 0
    %291 = vmatpush2.bf16.msra.mxu0 0
    %292 = vmatprep.mubr.bf16.mxu0 0
    %293 = vmatmul.mubr.bf16.gmra.mxu0 %v258
    %v294 = vpop.f32.mrf.mxu0
    %v295 = vadd.f32 %v244, %v294
    %v296 = vpop.f32.mrf.mxu0
    %v297 = vpop.f32.mrf.mxu0
    %v298 = vadd.f32 %v244, %v297
    %v299 = vpop.f32.mrf.mxu0
    %300 = vdwg.mxu0
    %v301 = vld [vmem:[#allocation5 + $0x40] sm:$0xf]
    %v302 = vld [vmem:[#allocation5 + $0x44] sm:$0xf]
    %v303 = vld [vmem:[#allocation5 + $0x48] sm:$0xf]
    %v304 = vld [vmem:[#allocation5 + $0x4c] sm:$0xf]
    %v305 = vld [vmem:[#allocation7 + $0xf] sm:$0x1]
    %v306 = vlaneseq
    %v307 = vshrl.u32 %v306, 7
    %v308 = vsub.s32 0, %v307
    %v309 = vrot.slane %v305, %v308
    %v314 = vunpack.c.l.b16 %v301
    %v315 = vunpack.c.l.b16 %v302
    %v316 = vunpack.c.l.b16 %v303
    %v317 = vunpack.c.l.b16 %v304
    %v318 = vpack.c.b16 %v315, %v314
    %v319 = vpack.c.b16 %v317, %v316
    %322 = vmatprep.subr.bf16.mxu0 0
    %323 = vmatpush1.bf16.msra.mxu0 0
    %324 = vmatprep.subr.bf16.mxu0 0
    %325 = vmatpush1.bf16.msra.mxu0 0
    %326 = vmatprep.subr.bf16.mxu0 0
    %327 = vmatpush1.bf16.msra.mxu0 0
    %328 = vmatprep.subr.bf16.mxu0 0
    %329 = vmatpush1.bf16.msra.mxu0 0
    %330 = vmatprep.subr.bf16.mxu0 0
    %331 = vmatpush1.bf16.msra.mxu0 0
    %332 = vmatprep.subr.bf16.mxu0 0
    %333 = vmatpush1.bf16.msra.mxu0 0
    %334 = vmatprep.subr.bf16.mxu0 0
    %335 = vmatpush1.bf16.msra.mxu0 %v319
    %336 = vmatprep.subr.bf16.mxu0 0
    %337 = vmatpush1.bf16.msra.mxu0 %v318
    %338 = vmatprep.subr.bf16.mxu0 0
    %339 = vmatpush2.bf16.msra.mxu0 0
    %340 = vmatprep.subr.bf16.mxu0 0
    %341 = vmatpush2.bf16.msra.mxu0 0
    %342 = vmatprep.subr.bf16.mxu0 0
    %343 = vmatpush2.bf16.msra.mxu0 0
    %344 = vmatprep.subr.bf16.mxu0 0
    %345 = vmatpush2.bf16.msra.mxu0 0
    %346 = vmatprep.subr.bf16.mxu0 0
    %347 = vmatpush2.bf16.msra.mxu0 0
    %348 = vmatprep.subr.bf16.mxu0 0
    %349 = vmatpush2.bf16.msra.mxu0 0
    %350 = vmatprep.subr.bf16.mxu0 0
    %351 = vmatpush2.bf16.msra.mxu0 0
    %352 = vmatprep.subr.bf16.mxu0 0
    %353 = vmatpush2.bf16.msra.mxu0 0
    %354 = vmatprep.mubr.bf16.mxu0 0
    %355 = vmatmul.mubr.bf16.gmra.mxu0 %v258
    %v356 = vpop.f32.mrf.mxu0
    %v357 = vadd.f32 %v309, %v356
    %v358 = vpop.f32.mrf.mxu0
    %v359 = vpop.f32.mrf.mxu0
    %v360 = vadd.f32 %v309, %v359
    %v361 = vpop.f32.mrf.mxu0
    %362 = vdwg.mxu0
    %v363 = vld [vmem:[#allocation5 + $0x60] sm:$0xf]
    %v364 = vld [vmem:[#allocation5 + $0x64] sm:$0xf]
    %v365 = vld [vmem:[#allocation5 + $0x68] sm:$0xf]
    %v366 = vld [vmem:[#allocation5 + $0x6c] sm:$0xf]
    %v367 = vld [vmem:[#allocation7 + $0x11] sm:$0x1]
    %v368 = vlaneseq
    %v369 = vshrl.u32 %v368, 7
    %v370 = vsub.s32 0, %v369
    %v371 = vrot.slane %v367, %v370
    %v376 = vunpack.c.l.b16 %v363
    %v377 = vunpack.c.l.b16 %v364
    %v378 = vunpack.c.l.b16 %v365
    %v379 = vunpack.c.l.b16 %v366
    %v380 = vpack.c.b16 %v377, %v376
    %v381 = vpack.c.b16 %v379, %v378
    %384 = vmatprep.subr.bf16.mxu0 0
    %385 = vmatpush1.bf16.msra.mxu0 0
    %386 = vmatprep.subr.bf16.mxu0 0
    %387 = vmatpush1.bf16.msra.mxu0 0
    %388 = vmatprep.subr.bf16.mxu0 0
    %389 = vmatpush1.bf16.msra.mxu0 0
    %390 = vmatprep.subr.bf16.mxu0 0
    %391 = vmatpush1.bf16.msra.mxu0 0
    %392 = vmatprep.subr.bf16.mxu0 0
    %393 = vmatpush1.bf16.msra.mxu0 0
    %394 = vmatprep.subr.bf16.mxu0 0
    %395 = vmatpush1.bf16.msra.mxu0 0
    %396 = vmatprep.subr.bf16.mxu0 0
    %397 = vmatpush1.bf16.msra.mxu0 %v381
    %398 = vmatprep.subr.bf16.mxu0 0
    %399 = vmatpush1.bf16.msra.mxu0 %v380
    %400 = vmatprep.subr.bf16.mxu0 0
    %401 = vmatpush2.bf16.msra.mxu0 0
    %402 = vmatprep.subr.bf16.mxu0 0
    %403 = vmatpush2.bf16.msra.mxu0 0
    %404 = vmatprep.subr.bf16.mxu0 0
    %405 = vmatpush2.bf16.msra.mxu0 0
    %406 = vmatprep.subr.bf16.mxu0 0
    %407 = vmatpush2.bf16.msra.mxu0 0
    %408 = vmatprep.subr.bf16.mxu0 0
    %409 = vmatpush2.bf16.msra.mxu0 0
    %410 = vmatprep.subr.bf16.mxu0 0
    %411 = vmatpush2.bf16.msra.mxu0 0
    %412 = vmatprep.subr.bf16.mxu0 0
    %413 = vmatpush2.bf16.msra.mxu0 0
    %414 = vmatprep.subr.bf16.mxu0 0
    %415 = vmatpush2.bf16.msra.mxu0 0
    %416 = vmatprep.mubr.bf16.mxu0 0
    %417 = vmatmul.mubr.bf16.gmra.mxu0 %v258
    %v418 = vpop.f32.mrf.mxu0
    %v419 = vadd.f32 %v371, %v418
    %v420 = vpop.f32.mrf.mxu0
    %v421 = vpop.f32.mrf.mxu0
    %v422 = vadd.f32 %v371, %v421
    %v423 = vpop.f32.mrf.mxu0
    %424 = vdwg.mxu0
    %vm425 = vcmask 130048
    %v427 = vsel %vm425, %v295, 0
    %v430 = vsel %vm425, %v357, 0
    %432 = vmatprep.subr.mxu0 0.0
    %433 = vmatpush1.xpose.msra.mxu0 0.0
    %434 = vmatprep.subr.mxu0 0.0
    %435 = vmatpush1.xpose.msra.mxu0 0.0
    %436 = vmatprep.subr.mxu0 0.0
    %437 = vmatpush1.xpose.msra.mxu0 0.0
    %438 = vmatprep.subr.mxu0 0.0
    %439 = vmatpush1.xpose.msra.mxu0 0.0
    %440 = vmatprep.subr.mxu0 0.0
    %441 = vmatpush1.xpose.msra.mxu0 0.0
    %442 = vmatprep.subr.mxu0 0.0
    %443 = vmatpush1.xpose.msra.mxu0 0.0
    %444 = vmatprep.subr.mxu0 0.0
    %445 = vmatpush1.xpose.msra.mxu0 0.0
    %446 = vmatprep.subr.mxu0 0.0
    %447 = vmatpush1.xpose.msra.mxu0 0.0
    %448 = vmatprep.subr.mxu0 0.0
    %449 = vmatpush1.xpose.msra.mxu0 0.0
    %450 = vmatprep.subr.mxu0 0.0
    %451 = vmatpush1.xpose.msra.mxu0 0.0
    %452 = vmatprep.subr.mxu0 0.0
    %453 = vmatpush1.xpose.msra.mxu0 0.0
    %454 = vmatprep.subr.mxu0 0.0
    %455 = vmatpush1.xpose.msra.mxu0 0.0
    %456 = vmatprep.subr.mxu0 0.0
    %457 = vmatpush1.xpose.msra.mxu0 0.0
    %458 = vmatprep.subr.mxu0 0.0
    %459 = vmatpush1.xpose.msra.mxu0 0.0
    %460 = vmatprep.subr.mxu0 0.0
    %461 = vmatpush1.xpose.msra.mxu0 0.0
    %462 = vmatprep.subr.mxu0 0.0
    %463 = vmatpush1.xpose.msra.mxu0 %v430
    %464 = vmatprep.subr.mxu0 0.0
    %465 = vmatpush2.xpose.msra.mxu0 0.0
    %466 = vmatprep.subr.mxu0 0.0
    %467 = vmatpush2.xpose.msra.mxu0 0.0
    %468 = vmatprep.subr.mxu0 0.0
    %469 = vmatpush2.xpose.msra.mxu0 0.0
    %470 = vmatprep.subr.mxu0 0.0
    %471 = vmatpush2.xpose.msra.mxu0 0.0
    %472 = vmatprep.subr.mxu0 0.0
    %473 = vmatpush2.xpose.msra.mxu0 0.0
    %474 = vmatprep.subr.mxu0 0.0
    %475 = vmatpush2.xpose.msra.mxu0 0.0
    %476 = vmatprep.subr.mxu0 0.0
    %477 = vmatpush2.xpose.msra.mxu0 0.0
    %478 = vmatprep.subr.mxu0 0.0
    %479 = vmatpush2.xpose.msra.mxu0 0.0
    %480 = vmatprep.subr.mxu0 0.0
    %481 = vmatpush2.xpose.msra.mxu0 0.0
    %482 = vmatprep.subr.mxu0 0.0
    %483 = vmatpush2.xpose.msra.mxu0 0.0
    %484 = vmatprep.subr.mxu0 0.0
    %485 = vmatpush2.xpose.msra.mxu0 0.0
    %486 = vmatprep.subr.mxu0 0.0
    %487 = vmatpush2.xpose.msra.mxu0 0.0
    %488 = vmatprep.subr.mxu0 0.0
    %489 = vmatpush2.xpose.msra.mxu0 0.0
    %490 = vmatprep.subr.mxu0 0.0
    %491 = vmatpush2.xpose.msra.mxu0 0.0
    %492 = vmatprep.subr.mxu0 0.0
    %493 = vmatpush2.xpose.msra.mxu0 0.0
    %494 = vmatprep.subr.mxu0 0.0
    %495 = vmatpush2.xpose.msra.mxu0 0.0
    %496 = vmatprep.mubr.f32.mxu0 0.0
    %497 = vmatmul.mubr.f32.gmra.mxu0 %v427
    %v498 = vpop.f32.mrf.mxu0
    %v499 = vadd.f32 0.0, %v498
    %v500 = vpop.f32.mrf.mxu0
    %501 = vdwg.mxu0
    %v503 = vsel %vm425, %v298, 0
    %v506 = vsel %vm425, %v360, 0
    %508 = vmatprep.subr.mxu0 0.0
    %509 = vmatpush1.xpose.msra.mxu0 0.0
    %510 = vmatprep.subr.mxu0 0.0
    %511 = vmatpush1.xpose.msra.mxu0 0.0
    %512 = vmatprep.subr.mxu0 0.0
    %513 = vmatpush1.xpose.msra.mxu0 0.0
    %514 = vmatprep.subr.mxu0 0.0
    %515 = vmatpush1.xpose.msra.mxu0 0.0
    %516 = vmatprep.subr.mxu0 0.0
    %517 = vmatpush1.xpose.msra.mxu0 0.0
    %518 = vmatprep.subr.mxu0 0.0
    %519 = vmatpush1.xpose.msra.mxu0 0.0
    %520 = vmatprep.subr.mxu0 0.0
    %521 = vmatpush1.xpose.msra.mxu0 0.0
    %522 = vmatprep.subr.mxu0 0.0
    %523 = vmatpush1.xpose.msra.mxu0 0.0
    %524 = vmatprep.subr.mxu0 0.0
    %525 = vmatpush1.xpose.msra.mxu0 0.0
    %526 = vmatprep.subr.mxu0 0.0
    %527 = vmatpush1.xpose.msra.mxu0 0.0
    %528 = vmatprep.subr.mxu0 0.0
    %529 = vmatpush1.xpose.msra.mxu0 0.0
    %530 = vmatprep.subr.mxu0 0.0
    %531 = vmatpush1.xpose.msra.mxu0 0.0
    %532 = vmatprep.subr.mxu0 0.0
    %533 = vmatpush1.xpose.msra.mxu0 0.0
    %534 = vmatprep.subr.mxu0 0.0
    %535 = vmatpush1.xpose.msra.mxu0 0.0
    %536 = vmatprep.subr.mxu0 0.0
    %537 = vmatpush1.xpose.msra.mxu0 0.0
    %538 = vmatprep.subr.mxu0 0.0
    %539 = vmatpush1.xpose.msra.mxu0 %v506
    %540 = vmatprep.subr.mxu0 0.0
    %541 = vmatpush2.xpose.msra.mxu0 0.0
    %542 = vmatprep.subr.mxu0 0.0
    %543 = vmatpush2.xpose.msra.mxu0 0.0
    %544 = vmatprep.subr.mxu0 0.0
    %545 = vmatpush2.xpose.msra.mxu0 0.0
    %546 = vmatprep.subr.mxu0 0.0
    %547 = vmatpush2.xpose.msra.mxu0 0.0
    %548 = vmatprep.subr.mxu0 0.0
    %549 = vmatpush2.xpose.msra.mxu0 0.0
    %550 = vmatprep.subr.mxu0 0.0
    %551 = vmatpush2.xpose.msra.mxu0 0.0
    %552 = vmatprep.subr.mxu0 0.0
    %553 = vmatpush2.xpose.msra.mxu0 0.0
    %554 = vmatprep.subr.mxu0 0.0
    %555 = vmatpush2.xpose.msra.mxu0 0.0
    %556 = vmatprep.subr.mxu0 0.0
    %557 = vmatpush2.xpose.msra.mxu0 0.0
    %558 = vmatprep.subr.mxu0 0.0
    %559 = vmatpush2.xpose.msra.mxu0 0.0
    %560 = vmatprep.subr.mxu0 0.0
    %561 = vmatpush2.xpose.msra.mxu0 0.0
    %562 = vmatprep.subr.mxu0 0.0
    %563 = vmatpush2.xpose.msra.mxu0 0.0
    %564 = vmatprep.subr.mxu0 0.0
    %565 = vmatpush2.xpose.msra.mxu0 0.0
    %566 = vmatprep.subr.mxu0 0.0
    %567 = vmatpush2.xpose.msra.mxu0 0.0
    %568 = vmatprep.subr.mxu0 0.0
    %569 = vmatpush2.xpose.msra.mxu0 0.0
    %570 = vmatprep.subr.mxu0 0.0
    %571 = vmatpush2.xpose.msra.mxu0 0.0
    %572 = vmatprep.mubr.f32.mxu0 0.0
    %573 = vmatmul.mubr.f32.gmra.mxu0 %v503
    %v574 = vpop.f32.mrf.mxu0
    %v575 = vadd.f32 0.0, %v574
    %v576 = vpop.f32.mrf.mxu0
    %577 = vdwg.mxu0
    %v578 = vmul.f32 %v499, 0.25
    %v579 = vmul.f32 %v575, 0.25
    %v580 = vlaneseq
    %v581 = vshrl.u32 %v580, 7
    %v582 = vsub.s32 0, %v581
    %v583 = vrot.slane %v227, %v582
    %v584 = vlaneseq
    %v585 = vshrl.u32 %v584, 7
    %v586 = vsub.s32 0, %v585
    %v587 = vrot.slane %v234, %v586
    %v590 = vadd.f32 %v578, %v583
    %v591 = vadd.f32 %v579, %v587
    %vm592 = vcmask 64512
    %v593 = vsel %vm592, %v590, -inf
    %594 = vmax.xlane.f32.xlu0 %v593
    %v595 = vpop.xlane.xlu0 %594
    %v596 = vsel %vm592, %v591, -inf
    %597 = vmax.xlane.f32.xlu0 %v596
    %v598 = vpop.xlane.xlu0 %597
    %v599 = vsub.f32 %v590, %v595
    %v600 = vsub.f32 %v591, %v598
    %v601 = vmul.f32 %v599, 1.442695
    %v602 = vpow.pop %v601
    %v603 = vmul.f32 %v600, 1.442695
    %v604 = vpow.pop %v603
    %v605 = vsel %vm592, %v602, 0.0
    %606 = vadd.xlane.f32.xlu0 %v605
    %v607 = vpop.xlane.xlu0 %606
    %v608 = vsel %vm592, %v604, 0.0
    %609 = vadd.xlane.f32.xlu0 %v608
    %v610 = vpop.xlane.xlu0 %609
    %v611 = vrcp.pop %v607
    %v612 = vmul.f32 %v602, %v611
    %v613 = vrcp.pop %v610
    %v614 = vmul.f32 %v604, %v613
    %v616 = vsel %vm592, %v612, 0
    %618 = vmatprep.subr.mxu0 0.0
    %619 = vmatpush1.msra.mxu0 0.0
    %620 = vmatprep.subr.mxu0 0.0
    %621 = vmatpush1.msra.mxu0 0.0
    %622 = vmatprep.subr.mxu0 0.0
    %623 = vmatpush1.msra.mxu0 0.0
    %624 = vmatprep.subr.mxu0 0.0
    %625 = vmatpush1.msra.mxu0 0.0
    %626 = vmatprep.subr.mxu0 0.0
    %627 = vmatpush1.msra.mxu0 0.0
    %628 = vmatprep.subr.mxu0 0.0
    %629 = vmatpush1.msra.mxu0 0.0
    %630 = vmatprep.subr.mxu0 0.0
    %631 = vmatpush1.msra.mxu0 0.0
    %632 = vmatprep.subr.mxu0 0.0
    %633 = vmatpush1.msra.mxu0 0.0
    %634 = vmatprep.subr.mxu0 0.0
    %635 = vmatpush1.msra.mxu0 0.0
    %636 = vmatprep.subr.mxu0 0.0
    %637 = vmatpush1.msra.mxu0 0.0
    %638 = vmatprep.subr.mxu0 0.0
    %639 = vmatpush1.msra.mxu0 0.0
    %640 = vmatprep.subr.mxu0 0.0
    %641 = vmatpush1.msra.mxu0 0.0
    %642 = vmatprep.subr.mxu0 0.0
    %643 = vmatpush1.msra.mxu0 0.0
    %644 = vmatprep.subr.mxu0 0.0
    %645 = vmatpush1.msra.mxu0 0.0
    %646 = vmatprep.subr.mxu0 0.0
    %647 = vmatpush1.msra.mxu0 0.0
    %648 = vmatprep.subr.mxu0 0.0
    %649 = vmatpush1.msra.mxu0 %v419
    %650 = vmatprep.subr.mxu0 0.0
    %651 = vmatpush2.msra.mxu0 0.0
    %652 = vmatprep.subr.mxu0 0.0
    %653 = vmatpush2.msra.mxu0 0.0
    %654 = vmatprep.subr.mxu0 0.0
    %655 = vmatpush2.msra.mxu0 0.0
    %656 = vmatprep.subr.mxu0 0.0
    %657 = vmatpush2.msra.mxu0 0.0
    %658 = vmatprep.subr.mxu0 0.0
    %659 = vmatpush2.msra.mxu0 0.0
    %660 = vmatprep.subr.mxu0 0.0
    %661 = vmatpush2.msra.mxu0 0.0
    %662 = vmatprep.subr.mxu0 0.0
    %663 = vmatpush2.msra.mxu0 0.0
    %664 = vmatprep.subr.mxu0 0.0
    %665 = vmatpush2.msra.mxu0 0.0
    %666 = vmatprep.subr.mxu0 0.0
    %667 = vmatpush2.msra.mxu0 0.0
    %668 = vmatprep.subr.mxu0 0.0
    %669 = vmatpush2.msra.mxu0 0.0
    %670 = vmatprep.subr.mxu0 0.0
    %671 = vmatpush2.msra.mxu0 0.0
    %672 = vmatprep.subr.mxu0 0.0
    %673 = vmatpush2.msra.mxu0 0.0
    %674 = vmatprep.subr.mxu0 0.0
    %675 = vmatpush2.msra.mxu0 0.0
    %676 = vmatprep.subr.mxu0 0.0
    %677 = vmatpush2.msra.mxu0 0.0
    %678 = vmatprep.subr.mxu0 0.0
    %679 = vmatpush2.msra.mxu0 0.0
    %680 = vmatprep.subr.mxu0 0.0
    %681 = vmatpush2.msra.mxu0 0.0
    %682 = vmatprep.mubr.f32.mxu0 0.0
    %683 = vmatmul.mubr.f32.gmra.mxu0 %v616
    %v684 = vpop.f32.mrf.mxu0
    %v685 = vadd.f32 0.0, %v684
    %v686 = vpop.f32.mrf.mxu0
    %687 = vdwg.mxu0
    %v689 = vsel %vm592, %v614, 0
    %691 = vmatprep.subr.mxu0 0.0
    %692 = vmatpush1.msra.mxu0 0.0
    %693 = vmatprep.subr.mxu0 0.0
    %694 = vmatpush1.msra.mxu0 0.0
    %695 = vmatprep.subr.mxu0 0.0
    %696 = vmatpush1.msra.mxu0 0.0
    %697 = vmatprep.subr.mxu0 0.0
    %698 = vmatpush1.msra.mxu0 0.0
    %699 = vmatprep.subr.mxu0 0.0
    %700 = vmatpush1.msra.mxu0 0.0
    %701 = vmatprep.subr.mxu0 0.0
    %702 = vmatpush1.msra.mxu0 0.0
    %703 = vmatprep.subr.mxu0 0.0
    %704 = vmatpush1.msra.mxu0 0.0
    %705 = vmatprep.subr.mxu0 0.0
    %706 = vmatpush1.msra.mxu0 0.0
    %707 = vmatprep.subr.mxu0 0.0
    %708 = vmatpush1.msra.mxu0 0.0
    %709 = vmatprep.subr.mxu0 0.0
    %710 = vmatpush1.msra.mxu0 0.0
    %711 = vmatprep.subr.mxu0 0.0
    %712 = vmatpush1.msra.mxu0 0.0
    %713 = vmatprep.subr.mxu0 0.0
    %714 = vmatpush1.msra.mxu0 0.0
    %715 = vmatprep.subr.mxu0 0.0
    %716 = vmatpush1.msra.mxu0 0.0
    %717 = vmatprep.subr.mxu0 0.0
    %718 = vmatpush1.msra.mxu0 0.0
    %719 = vmatprep.subr.mxu0 0.0
    %720 = vmatpush1.msra.mxu0 0.0
    %721 = vmatprep.subr.mxu0 0.0
    %722 = vmatpush1.msra.mxu0 %v422
    %723 = vmatprep.subr.mxu0 0.0
    %724 = vmatpush2.msra.mxu0 0.0
    %725 = vmatprep.subr.mxu0 0.0
    %726 = vmatpush2.msra.mxu0 0.0
    %727 = vmatprep.subr.mxu0 0.0
    %728 = vmatpush2.msra.mxu0 0.0
    %729 = vmatprep.subr.mxu0 0.0
    %730 = vmatpush2.msra.mxu0 0.0
    %731 = vmatprep.subr.mxu0 0.0
    %732 = vmatpush2.msra.mxu0 0.0
    %733 = vmatprep.subr.mxu0 0.0
    %734 = vmatpush2.msra.mxu0 0.0
    %735 = vmatprep.subr.mxu0 0.0
    %736 = vmatpush2.msra.mxu0 0.0
    %737 = vmatprep.subr.mxu0 0.0
    %738 = vmatpush2.msra.mxu0 0.0
    %739 = vmatprep.subr.mxu0 0.0
    %740 = vmatpush2.msra.mxu0 0.0
    %741 = vmatprep.subr.mxu0 0.0
    %742 = vmatpush2.msra.mxu0 0.0
    %743 = vmatprep.subr.mxu0 0.0
    %744 = vmatpush2.msra.mxu0 0.0
    %745 = vmatprep.subr.mxu0 0.0
    %746 = vmatpush2.msra.mxu0 0.0
    %747 = vmatprep.subr.mxu0 0.0
    %748 = vmatpush2.msra.mxu0 0.0
    %749 = vmatprep.subr.mxu0 0.0
    %750 = vmatpush2.msra.mxu0 0.0
    %751 = vmatprep.subr.mxu0 0.0
    %752 = vmatpush2.msra.mxu0 0.0
    %753 = vmatprep.subr.mxu0 0.0
    %754 = vmatpush2.msra.mxu0 0.0
    %755 = vmatprep.mubr.f32.mxu0 0.0
    %756 = vmatmul.mubr.f32.gmra.mxu0 %v689
    %v757 = vpop.f32.mrf.mxu0
    %v758 = vadd.f32 0.0, %v757
    %v759 = vpop.f32.mrf.mxu0
    %760 = vdwg.mxu0
    %v761 = vld [vmem:[#allocation5 + $0x80] sm:$0xf]
    %v762 = vld [vmem:[#allocation5 + $0x84] sm:$0xf]
    %v763 = vpack.c.bf16 %v758, %v685
    %v764 = vld [vmem:[#allocation5 + $0x30] sm:$0xf]
    %v765 = vld [vmem:[#allocation5 + $0x34] sm:$0xf]
    %v766 = vld [vmem:[#allocation5 + $0x38] sm:$0xf]
    %v767 = vld [vmem:[#allocation5 + $0x3c] sm:$0xf]
    %v768 = vld [vmem:[#allocation7 + $0xe] sm:$0x1]
    %v769 = vlaneseq
    %v770 = vshrl.u32 %v769, 7
    %v771 = vsub.s32 0, %v770
    %v772 = vrot.slane %v768, %v771
    %v777 = vunpack.c.l.b16 %v764
    %v778 = vunpack.c.l.b16 %v765
    %v779 = vunpack.c.l.b16 %v766
    %v780 = vunpack.c.l.b16 %v767
    %v781 = vpack.c.b16 %v778, %v777
    %v782 = vpack.c.b16 %v780, %v779
    %785 = vmatprep.subr.bf16.mxu0 0
    %786 = vmatpush1.bf16.msra.mxu0 0
    %787 = vmatprep.subr.bf16.mxu0 0
    %788 = vmatpush1.bf16.msra.mxu0 0
    %789 = vmatprep.subr.bf16.mxu0 0
    %790 = vmatpush1.bf16.msra.mxu0 0
    %791 = vmatprep.subr.bf16.mxu0 0
    %792 = vmatpush1.bf16.msra.mxu0 0
    %793 = vmatprep.subr.bf16.mxu0 0
    %794 = vmatpush1.bf16.msra.mxu0 0
    %795 = vmatprep.subr.bf16.mxu0 0
    %796 = vmatpush1.bf16.msra.mxu0 0
    %797 = vmatprep.subr.bf16.mxu0 0
    %798 = vmatpush1.bf16.msra.mxu0 %v782
    %799 = vmatprep.subr.bf16.mxu0 0
    %800 = vmatpush1.bf16.msra.mxu0 %v781
    %801 = vmatprep.subr.bf16.mxu0 0
    %802 = vmatpush2.bf16.msra.mxu0 0
    %803 = vmatprep.subr.bf16.mxu0 0
    %804 = vmatpush2.bf16.msra.mxu0 0
    %805 = vmatprep.subr.bf16.mxu0 0
    %806 = vmatpush2.bf16.msra.mxu0 0
    %807 = vmatprep.subr.bf16.mxu0 0
    %808 = vmatpush2.bf16.msra.mxu0 0
    %809 = vmatprep.subr.bf16.mxu0 0
    %810 = vmatpush2.bf16.msra.mxu0 0
    %811 = vmatprep.subr.bf16.mxu0 0
    %812 = vmatpush2.bf16.msra.mxu0 0
    %813 = vmatprep.subr.bf16.mxu0 0
    %814 = vmatpush2.bf16.msra.mxu0 0
    %815 = vmatprep.subr.bf16.mxu0 0
    %816 = vmatpush2.bf16.msra.mxu0 0
    %817 = vmatprep.mubr.bf16.mxu0 0
    %818 = vmatmul.mubr.bf16.gmra.mxu0 %v258
    %v819 = vpop.f32.mrf.mxu0
    %v820 = vadd.f32 %v772, %v819
    %v821 = vpop.f32.mrf.mxu0
    %v822 = vpop.f32.mrf.mxu0
    %v823 = vadd.f32 %v772, %v822
    %v824 = vpop.f32.mrf.mxu0
    %825 = vdwg.mxu0
    %v826 = vld [vmem:[#allocation5 + $0x50] sm:$0xf]
    %v827 = vld [vmem:[#allocation5 + $0x54] sm:$0xf]
    %v828 = vld [vmem:[#allocation5 + $0x58] sm:$0xf]
    %v829 = vld [vmem:[#allocation5 + $0x5c] sm:$0xf]
    %v830 = vld [vmem:[#allocation7 + $0x10] sm:$0x1]
    %v831 = vlaneseq
    %v832 = vshrl.u32 %v831, 7
    %v833 = vsub.s32 0, %v832
    %v834 = vrot.slane %v830, %v833
    %v839 = vunpack.c.l.b16 %v826
    %v840 = vunpack.c.l.b16 %v827
    %v841 = vunpack.c.l.b16 %v828
    %v842 = vunpack.c.l.b16 %v829
    %v843 = vpack.c.b16 %v840, %v839
    %v844 = vpack.c.b16 %v842, %v841
    %847 = vmatprep.subr.bf16.mxu0 0
    %848 = vmatpush1.bf16.msra.mxu0 0
    %849 = vmatprep.subr.bf16.mxu0 0
    %850 = vmatpush1.bf16.msra.mxu0 0
    %851 = vmatprep.subr.bf16.mxu0 0
    %852 = vmatpush1.bf16.msra.mxu0 0
    %853 = vmatprep.subr.bf16.mxu0 0
    %854 = vmatpush1.bf16.msra.mxu0 0
    %855 = vmatprep.subr.bf16.mxu0 0
    %856 = vmatpush1.bf16.msra.mxu0 0
    %857 = vmatprep.subr.bf16.mxu0 0
    %858 = vmatpush1.bf16.msra.mxu0 0
    %859 = vmatprep.subr.bf16.mxu0 0
    %860 = vmatpush1.bf16.msra.mxu0 %v844
    %861 = vmatprep.subr.bf16.mxu0 0
    %862 = vmatpush1.bf16.msra.mxu0 %v843
    %863 = vmatprep.subr.bf16.mxu0 0
    %864 = vmatpush2.bf16.msra.mxu0 0
    %865 = vmatprep.subr.bf16.mxu0 0
    %866 = vmatpush2.bf16.msra.mxu0 0
    %867 = vmatprep.subr.bf16.mxu0 0
    %868 = vmatpush2.bf16.msra.mxu0 0
    %869 = vmatprep.subr.bf16.mxu0 0
    %870 = vmatpush2.bf16.msra.mxu0 0
    %871 = vmatprep.subr.bf16.mxu0 0
    %872 = vmatpush2.bf16.msra.mxu0 0
    %873 = vmatprep.subr.bf16.mxu0 0
    %874 = vmatpush2.bf16.msra.mxu0 0
    %875 = vmatprep.subr.bf16.mxu0 0
    %876 = vmatpush2.bf16.msra.mxu0 0
    %877 = vmatprep.subr.bf16.mxu0 0
    %878 = vmatpush2.bf16.msra.mxu0 0
    %879 = vmatprep.mubr.bf16.mxu0 0
    %880 = vmatmul.mubr.bf16.gmra.mxu0 %v258
    %v881 = vpop.f32.mrf.mxu0
    %v882 = vadd.f32 %v834, %v881
    %v883 = vpop.f32.mrf.mxu0
    %v884 = vpop.f32.mrf.mxu0
    %v885 = vadd.f32 %v834, %v884
    %v886 = vpop.f32.mrf.mxu0
    %887 = vdwg.mxu0
    %v888 = vld [vmem:[#allocation5 + $0x70] sm:$0xf]
    %v889 = vld [vmem:[#allocation5 + $0x74] sm:$0xf]
    %v890 = vld [vmem:[#allocation5 + $0x78] sm:$0xf]
    %v891 = vld [vmem:[#allocation5 + $0x7c] sm:$0xf]
    %v892 = vld [vmem:[#allocation7 + $0x12] sm:$0x1]
    %v893 = vlaneseq
    %v894 = vshrl.u32 %v893, 7
    %v895 = vsub.s32 0, %v894
    %v896 = vrot.slane %v892, %v895
    %v901 = vunpack.c.l.b16 %v888
    %v902 = vunpack.c.l.b16 %v889
    %v903 = vunpack.c.l.b16 %v890
    %v904 = vunpack.c.l.b16 %v891
    %v905 = vpack.c.b16 %v902, %v901
    %v906 = vpack.c.b16 %v904, %v903
    %909 = vmatprep.subr.bf16.mxu0 0
    %910 = vmatpush1.bf16.msra.mxu0 0
    %911 = vmatprep.subr.bf16.mxu0 0
    %912 = vmatpush1.bf16.msra.mxu0 0
    %913 = vmatprep.subr.bf16.mxu0 0
    %914 = vmatpush1.bf16.msra.mxu0 0
    %915 = vmatprep.subr.bf16.mxu0 0
    %916 = vmatpush1.bf16.msra.mxu0 0
    %917 = vmatprep.subr.bf16.mxu0 0
    %918 = vmatpush1.bf16.msra.mxu0 0
    %919 = vmatprep.subr.bf16.mxu0 0
    %920 = vmatpush1.bf16.msra.mxu0 0
    %921 = vmatprep.subr.bf16.mxu0 0
    %922 = vmatpush1.bf16.msra.mxu0 %v906
    %923 = vmatprep.subr.bf16.mxu0 0
    %924 = vmatpush1.bf16.msra.mxu0 %v905
    %925 = vmatprep.subr.bf16.mxu0 0
    %926 = vmatpush2.bf16.msra.mxu0 0
    %927 = vmatprep.subr.bf16.mxu0 0
    %928 = vmatpush2.bf16.msra.mxu0 0
    %929 = vmatprep.subr.bf16.mxu0 0
    %930 = vmatpush2.bf16.msra.mxu0 0
    %931 = vmatprep.subr.bf16.mxu0 0
    %932 = vmatpush2.bf16.msra.mxu0 0
    %933 = vmatprep.subr.bf16.mxu0 0
    %934 = vmatpush2.bf16.msra.mxu0 0
    %935 = vmatprep.subr.bf16.mxu0 0
    %936 = vmatpush2.bf16.msra.mxu0 0
    %937 = vmatprep.subr.bf16.mxu0 0
    %938 = vmatpush2.bf16.msra.mxu0 0
    %939 = vmatprep.subr.bf16.mxu0 0
    %940 = vmatpush2.bf16.msra.mxu0 0
    %941 = vmatprep.mubr.bf16.mxu0 0
    %942 = vmatmul.mubr.bf16.gmra.mxu0 %v258
    %v943 = vpop.f32.mrf.mxu0
    %v944 = vadd.f32 %v896, %v943
    %v945 = vpop.f32.mrf.mxu0
    %v946 = vpop.f32.mrf.mxu0
    %v947 = vadd.f32 %v896, %v946
    %v948 = vpop.f32.mrf.mxu0
    %949 = vdwg.mxu0
    %v951 = vsel %vm425, %v820, 0
    %v954 = vsel %vm425, %v882, 0
    %956 = vmatprep.subr.mxu0 0.0
    %957 = vmatpush1.xpose.msra.mxu0 0.0
    %958 = vmatprep.subr.mxu0 0.0
    %959 = vmatpush1.xpose.msra.mxu0 0.0
    %960 = vmatprep.subr.mxu0 0.0
    %961 = vmatpush1.xpose.msra.mxu0 0.0
    %962 = vmatprep.subr.mxu0 0.0
    %963 = vmatpush1.xpose.msra.mxu0 0.0
    %964 = vmatprep.subr.mxu0 0.0
    %965 = vmatpush1.xpose.msra.mxu0 0.0
    %966 = vmatprep.subr.mxu0 0.0
    %967 = vmatpush1.xpose.msra.mxu0 0.0
    %968 = vmatprep.subr.mxu0 0.0
    %969 = vmatpush1.xpose.msra.mxu0 0.0
    %970 = vmatprep.subr.mxu0 0.0
    %971 = vmatpush1.xpose.msra.mxu0 0.0
    %972 = vmatprep.subr.mxu0 0.0
    %973 = vmatpush1.xpose.msra.mxu0 0.0
    %974 = vmatprep.subr.mxu0 0.0
    %975 = vmatpush1.xpose.msra.mxu0 0.0
    %976 = vmatprep.subr.mxu0 0.0
    %977 = vmatpush1.xpose.msra.mxu0 0.0
    %978 = vmatprep.subr.mxu0 0.0
    %979 = vmatpush1.xpose.msra.mxu0 0.0
    %980 = vmatprep.subr.mxu0 0.0
    %981 = vmatpush1.xpose.msra.mxu0 0.0
    %982 = vmatprep.subr.mxu0 0.0
    %983 = vmatpush1.xpose.msra.mxu0 0.0
    %984 = vmatprep.subr.mxu0 0.0
    %985 = vmatpush1.xpose.msra.mxu0 0.0
    %986 = vmatprep.subr.mxu0 0.0
    %987 = vmatpush1.xpose.msra.mxu0 %v954
    %988 = vmatprep.subr.mxu0 0.0
    %989 = vmatpush2.xpose.msra.mxu0 0.0
    %990 = vmatprep.subr.mxu0 0.0
    %991 = vmatpush2.xpose.msra.mxu0 0.0
    %992 = vmatprep.subr.mxu0 0.0
    %993 = vmatpush2.xpose.msra.mxu0 0.0
    %994 = vmatprep.subr.mxu0 0.0
    %995 = vmatpush2.xpose.msra.mxu0 0.0
    %996 = vmatprep.subr.mxu0 0.0
    %997 = vmatpush2.xpose.msra.mxu0 0.0
    %998 = vmatprep.subr.mxu0 0.0
    %999 = vmatpush2.xpose.msra.mxu0 0.0
    %1000 = vmatprep.subr.mxu0 0.0
    %1001 = vmatpush2.xpose.msra.mxu0 0.0
    %1002 = vmatprep.subr.mxu0 0.0
    %1003 = vmatpush2.xpose.msra.mxu0 0.0
    %1004 = vmatprep.subr.mxu0 0.0
    %1005 = vmatpush2.xpose.msra.mxu0 0.0
    %1006 = vmatprep.subr.mxu0 0.0
    %1007 = vmatpush2.xpose.msra.mxu0 0.0
    %1008 = vmatprep.subr.mxu0 0.0
    %1009 = vmatpush2.xpose.msra.mxu0 0.0
    %1010 = vmatprep.subr.mxu0 0.0
    %1011 = vmatpush2.xpose.msra.mxu0 0.0
    %1012 = vmatprep.subr.mxu0 0.0
    %1013 = vmatpush2.xpose.msra.mxu0 0.0
    %1014 = vmatprep.subr.mxu0 0.0
    %1015 = vmatpush2.xpose.msra.mxu0 0.0
    %1016 = vmatprep.subr.mxu0 0.0
    %1017 = vmatpush2.xpose.msra.mxu0 0.0
    %1018 = vmatprep.subr.mxu0 0.0
    %1019 = vmatpush2.xpose.msra.mxu0 0.0
    %1020 = vmatprep.mubr.f32.mxu0 0.0
    %1021 = vmatmul.mubr.f32.gmra.mxu0 %v951
    %v1022 = vpop.f32.mrf.mxu0
    %v1023 = vadd.f32 0.0, %v1022
    %v1024 = vpop.f32.mrf.mxu0
    %1025 = vdwg.mxu0
    %v1027 = vsel %vm425, %v823, 0
    %v1030 = vsel %vm425, %v885, 0
    %1032 = vmatprep.subr.mxu0 0.0
    %1033 = vmatpush1.xpose.msra.mxu0 0.0
    %1034 = vmatprep.subr.mxu0 0.0
    %1035 = vmatpush1.xpose.msra.mxu0 0.0
    %1036 = vmatprep.subr.mxu0 0.0
    %1037 = vmatpush1.xpose.msra.mxu0 0.0
    %1038 = vmatprep.subr.mxu0 0.0
    %1039 = vmatpush1.xpose.msra.mxu0 0.0
    %1040 = vmatprep.subr.mxu0 0.0
    %1041 = vmatpush1.xpose.msra.mxu0 0.0
    %1042 = vmatprep.subr.mxu0 0.0
    %1043 = vmatpush1.xpose.msra.mxu0 0.0
    %1044 = vmatprep.subr.mxu0 0.0
    %1045 = vmatpush1.xpose.msra.mxu0 0.0
    %1046 = vmatprep.subr.mxu0 0.0
    %1047 = vmatpush1.xpose.msra.mxu0 0.0
    %1048 = vmatprep.subr.mxu0 0.0
    %1049 = vmatpush1.xpose.msra.mxu0 0.0
    %1050 = vmatprep.subr.mxu0 0.0
    %1051 = vmatpush1.xpose.msra.mxu0 0.0
    %1052 = vmatprep.subr.mxu0 0.0
    %1053 = vmatpush1.xpose.msra.mxu0 0.0
    %1054 = vmatprep.subr.mxu0 0.0
    %1055 = vmatpush1.xpose.msra.mxu0 0.0
    %1056 = vmatprep.subr.mxu0 0.0
    %1057 = vmatpush1.xpose.msra.mxu0 0.0
    %1058 = vmatprep.subr.mxu0 0.0
    %1059 = vmatpush1.xpose.msra.mxu0 0.0
    %1060 = vmatprep.subr.mxu0 0.0
    %1061 = vmatpush1.xpose.msra.mxu0 0.0
    %1062 = vmatprep.subr.mxu0 0.0
    %1063 = vmatpush1.xpose.msra.mxu0 %v1030
    %1064 = vmatprep.subr.mxu0 0.0
    %1065 = vmatpush2.xpose.msra.mxu0 0.0
    %1066 = vmatprep.subr.mxu0 0.0
    %1067 = vmatpush2.xpose.msra.mxu0 0.0
    %1068 = vmatprep.subr.mxu0 0.0
    %1069 = vmatpush2.xpose.msra.mxu0 0.0
    %1070 = vmatprep.subr.mxu0 0.0
    %1071 = vmatpush2.xpose.msra.mxu0 0.0
    %1072 = vmatprep.subr.mxu0 0.0
    %1073 = vmatpush2.xpose.msra.mxu0 0.0
    %1074 = vmatprep.subr.mxu0 0.0
    %1075 = vmatpush2.xpose.msra.mxu0 0.0
    %1076 = vmatprep.subr.mxu0 0.0
    %1077 = vmatpush2.xpose.msra.mxu0 0.0
    %1078 = vmatprep.subr.mxu0 0.0
    %1079 = vmatpush2.xpose.msra.mxu0 0.0
    %1080 = vmatprep.subr.mxu0 0.0
    %1081 = vmatpush2.xpose.msra.mxu0 0.0
    %1082 = vmatprep.subr.mxu0 0.0
    %1083 = vmatpush2.xpose.msra.mxu0 0.0
    %1084 = vmatprep.subr.mxu0 0.0
    %1085 = vmatpush2.xpose.msra.mxu0 0.0
    %1086 = vmatprep.subr.mxu0 0.0
    %1087 = vmatpush2.xpose.msra.mxu0 0.0
    %1088 = vmatprep.subr.mxu0 0.0
    %1089 = vmatpush2.xpose.msra.mxu0 0.0
    %1090 = vmatprep.subr.mxu0 0.0
    %1091 = vmatpush2.xpose.msra.mxu0 0.0
    %1092 = vmatprep.subr.mxu0 0.0
    %1093 = vmatpush2.xpose.msra.mxu0 0.0
    %1094 = vmatprep.subr.mxu0 0.0
    %1095 = vmatpush2.xpose.msra.mxu0 0.0
    %1096 = vmatprep.mubr.f32.mxu0 0.0
    %1097 = vmatmul.mubr.f32.gmra.mxu0 %v1027
    %v1098 = vpop.f32.mrf.mxu0
    %v1099 = vadd.f32 0.0, %v1098
    %v1100 = vpop.f32.mrf.mxu0
    %1101 = vdwg.mxu0
    %v1102 = vmul.f32 %v1023, 0.25
    %v1103 = vmul.f32 %v1099, 0.25
    %v1104 = vadd.f32 %v1102, %v583
    %v1105 = vadd.f32 %v1103, %v587
    %v1106 = vsel %vm592, %v1104, -inf
    %1107 = vmax.xlane.f32.xlu0 %v1106
    %v1108 = vpop.xlane.xlu0 %1107
    %v1109 = vsel %vm592, %v1105, -inf
    %1110 = vmax.xlane.f32.xlu0 %v1109
    %v1111 = vpop.xlane.xlu0 %1110
    %v1112 = vsub.f32 %v1104, %v1108
    %v1113 = vsub.f32 %v1105, %v1111
    %v1114 = vmul.f32 %v1112, 1.442695
    %v1115 = vpow.pop %v1114
    %v1116 = vmul.f32 %v1113, 1.442695
    %v1117 = vpow.pop %v1116
    %v1118 = vsel %vm592, %v1115, 0.0
    %1119 = vadd.xlane.f32.xlu0 %v1118
    %v1120 = vpop.xlane.xlu0 %1119
    %v1121 = vsel %vm592, %v1117, 0.0
    %1122 = vadd.xlane.f32.xlu0 %v1121
    %v1123 = vpop.xlane.xlu0 %1122
    %v1124 = vrcp.pop %v1120
    %v1125 = vmul.f32 %v1115, %v1124
    %v1126 = vrcp.pop %v1123
    %v1127 = vmul.f32 %v1117, %v1126
    %v1129 = vsel %vm592, %v1125, 0
    %1131 = vmatprep.subr.mxu0 0.0
    %1132 = vmatpush1.msra.mxu0 0.0
    %1133 = vmatprep.subr.mxu0 0.0
    %1134 = vmatpush1.msra.mxu0 0.0
    %1135 = vmatprep.subr.mxu0 0.0
    %1136 = vmatpush1.msra.mxu0 0.0
    %1137 = vmatprep.subr.mxu0 0.0
    %1138 = vmatpush1.msra.mxu0 0.0
    %1139 = vmatprep.subr.mxu0 0.0
    %1140 = vmatpush1.msra.mxu0 0.0
    %1141 = vmatprep.subr.mxu0 0.0
    %1142 = vmatpush1.msra.mxu0 0.0
    %1143 = vmatprep.subr.mxu0 0.0
    %1144 = vmatpush1.msra.mxu0 0.0
    %1145 = vmatprep.subr.mxu0 0.0
    %1146 = vmatpush1.msra.mxu0 0.0
    %1147 = vmatprep.subr.mxu0 0.0
    %1148 = vmatpush1.msra.mxu0 0.0
    %1149 = vmatprep.subr.mxu0 0.0
    %1150 = vmatpush1.msra.mxu0 0.0
    %1151 = vmatprep.subr.mxu0 0.0
    %1152 = vmatpush1.msra.mxu0 0.0
    %1153 = vmatprep.subr.mxu0 0.0
    %1154 = vmatpush1.msra.mxu0 0.0
    %1155 = vmatprep.subr.mxu0 0.0
    %1156 = vmatpush1.msra.mxu0 0.0
    %1157 = vmatprep.subr.mxu0 0.0
    %1158 = vmatpush1.msra.mxu0 0.0
    %1159 = vmatprep.subr.mxu0 0.0
    %1160 = vmatpush1.msra.mxu0 0.0
    %1161 = vmatprep.subr.mxu0 0.0
    %1162 = vmatpush1.msra.mxu0 %v944
    %1163 = vmatprep.subr.mxu0 0.0
    %1164 = vmatpush2.msra.mxu0 0.0
    %1165 = vmatprep.subr.mxu0 0.0
    %1166 = vmatpush2.msra.mxu0 0.0
    %1167 = vmatprep.subr.mxu0 0.0
    %1168 = vmatpush2.msra.mxu0 0.0
    %1169 = vmatprep.subr.mxu0 0.0
    %1170 = vmatpush2.msra.mxu0 0.0
    %1171 = vmatprep.subr.mxu0 0.0
    %1172 = vmatpush2.msra.mxu0 0.0
    %1173 = vmatprep.subr.mxu0 0.0
    %1174 = vmatpush2.msra.mxu0 0.0
    %1175 = vmatprep.subr.mxu0 0.0
    %1176 = vmatpush2.msra.mxu0 0.0
    %1177 = vmatprep.subr.mxu0 0.0
    %1178 = vmatpush2.msra.mxu0 0.0
    %1179 = vmatprep.subr.mxu0 0.0
    %1180 = vmatpush2.msra.mxu0 0.0
    %1181 = vmatprep.subr.mxu0 0.0
    %1182 = vmatpush2.msra.mxu0 0.0
    %1183 = vmatprep.subr.mxu0 0.0
    %1184 = vmatpush2.msra.mxu0 0.0
    %1185 = vmatprep.subr.mxu0 0.0
    %1186 = vmatpush2.msra.mxu0 0.0
    %1187 = vmatprep.subr.mxu0 0.0
    %1188 = vmatpush2.msra.mxu0 0.0
    %1189 = vmatprep.subr.mxu0 0.0
    %1190 = vmatpush2.msra.mxu0 0.0
    %1191 = vmatprep.subr.mxu0 0.0
    %1192 = vmatpush2.msra.mxu0 0.0
    %1193 = vmatprep.subr.mxu0 0.0
    %1194 = vmatpush2.msra.mxu0 0.0
    %1195 = vmatprep.mubr.f32.mxu0 0.0
    %1196 = vmatmul.mubr.f32.gmra.mxu0 %v1129
    %v1197 = vpop.f32.mrf.mxu0
    %v1198 = vadd.f32 0.0, %v1197
    %v1199 = vpop.f32.mrf.mxu0
    %1200 = vdwg.mxu0
    %v1202 = vsel %vm592, %v1127, 0
    %1204 = vmatprep.subr.mxu0 0.0
    %1205 = vmatpush1.msra.mxu0 0.0
    %1206 = vmatprep.subr.mxu0 0.0
    %1207 = vmatpush1.msra.mxu0 0.0
    %1208 = vmatprep.subr.mxu0 0.0
    %1209 = vmatpush1.msra.mxu0 0.0
    %1210 = vmatprep.subr.mxu0 0.0
    %1211 = vmatpush1.msra.mxu0 0.0
    %1212 = vmatprep.subr.mxu0 0.0
    %1213 = vmatpush1.msra.mxu0 0.0
    %1214 = vmatprep.subr.mxu0 0.0
    %1215 = vmatpush1.msra.mxu0 0.0
    %1216 = vmatprep.subr.mxu0 0.0
    %1217 = vmatpush1.msra.mxu0 0.0
    %1218 = vmatprep.subr.mxu0 0.0
    %1219 = vmatpush1.msra.mxu0 0.0
    %1220 = vmatprep.subr.mxu0 0.0
    %1221 = vmatpush1.msra.mxu0 0.0
    %1222 = vmatprep.subr.mxu0 0.0
    %1223 = vmatpush1.msra.mxu0 0.0
    %1224 = vmatprep.subr.mxu0 0.0
    %1225 = vmatpush1.msra.mxu0 0.0
    %1226 = vmatprep.subr.mxu0 0.0
    %1227 = vmatpush1.msra.mxu0 0.0
    %1228 = vmatprep.subr.mxu0 0.0
    %1229 = vmatpush1.msra.mxu0 0.0
    %1230 = vmatprep.subr.mxu0 0.0
    %1231 = vmatpush1.msra.mxu0 0.0
    %1232 = vmatprep.subr.mxu0 0.0
    %1233 = vmatpush1.msra.mxu0 0.0
    %1234 = vmatprep.subr.mxu0 0.0
    %1235 = vmatpush1.msra.mxu0 %v947
    %1236 = vmatprep.subr.mxu0 0.0
    %1237 = vmatpush2.msra.mxu0 0.0
    %1238 = vmatprep.subr.mxu0 0.0
    %1239 = vmatpush2.msra.mxu0 0.0
    %1240 = vmatprep.subr.mxu0 0.0
    %1241 = vmatpush2.msra.mxu0 0.0
    %1242 = vmatprep.subr.mxu0 0.0
    %1243 = vmatpush2.msra.mxu0 0.0
    %1244 = vmatprep.subr.mxu0 0.0
    %1245 = vmatpush2.msra.mxu0 0.0
    %1246 = vmatprep.subr.mxu0 0.0
    %1247 = vmatpush2.msra.mxu0 0.0
    %1248 = vmatprep.subr.mxu0 0.0
    %1249 = vmatpush2.msra.mxu0 0.0
    %1250 = vmatprep.subr.mxu0 0.0
    %1251 = vmatpush2.msra.mxu0 0.0
    %1252 = vmatprep.subr.mxu0 0.0
    %1253 = vmatpush2.msra.mxu0 0.0
    %1254 = vmatprep.subr.mxu0 0.0
    %1255 = vmatpush2.msra.mxu0 0.0
    %1256 = vmatprep.subr.mxu0 0.0
    %1257 = vmatpush2.msra.mxu0 0.0
    %1258 = vmatprep.subr.mxu0 0.0
    %1259 = vmatpush2.msra.mxu0 0.0
    %1260 = vmatprep.subr.mxu0 0.0
    %1261 = vmatpush2.msra.mxu0 0.0
    %1262 = vmatprep.subr.mxu0 0.0
    %1263 = vmatpush2.msra.mxu0 0.0
    %1264 = vmatprep.subr.mxu0 0.0
    %1265 = vmatpush2.msra.mxu0 0.0
    %1266 = vmatprep.subr.mxu0 0.0
    %1267 = vmatpush2.msra.mxu0 0.0
    %1268 = vmatprep.mubr.f32.mxu0 0.0
    %1269 = vmatmul.mubr.f32.gmra.mxu0 %v1202
    %v1270 = vpop.f32.mrf.mxu0
    %v1271 = vadd.f32 0.0, %v1270
    %v1272 = vpop.f32.mrf.mxu0
    %1273 = vdwg.mxu0
    %v1274 = vld [vmem:[#allocation5 + $0x88] sm:$0xf]
    %v1275 = vld [vmem:[#allocation5 + $0x8c] sm:$0xf]
    %v1276 = vpack.c.bf16 %v1271, %v1198
    %v1279 = vunpack.c.l.b16 %v1274
    %v1280 = vunpack.c.l.b16 %v1275
    %v1281 = vpack.c.b16 %v1280, %v1279
    %v1284 = vsel %vm425, %v1276, 0
    %1286 = vmatprep.subr.bf16.mxu0 0
    %1287 = vmatpush1.bf16.msra.mxu0 0
    %1288 = vmatprep.subr.bf16.mxu0 0
    %1289 = vmatpush1.bf16.msra.mxu0 0
    %1290 = vmatprep.subr.bf16.mxu0 0
    %1291 = vmatpush1.bf16.msra.mxu0 0
    %1292 = vmatprep.subr.bf16.mxu0 0
    %1293 = vmatpush1.bf16.msra.mxu0 0
    %1294 = vmatprep.subr.bf16.mxu0 0
    %1295 = vmatpush1.bf16.msra.mxu0 0
    %1296 = vmatprep.subr.bf16.mxu0 0
    %1297 = vmatpush1.bf16.msra.mxu0 0
    %1298 = vmatprep.subr.bf16.mxu0 0
    %1299 = vmatpush1.bf16.msra.mxu0 0
    %1300 = vmatprep.subr.bf16.mxu0 0
    %1301 = vmatpush1.bf16.msra.mxu0 %v1281
    %1302 = vmatprep.subr.bf16.mxu0 0
    %1303 = vmatpush2.bf16.msra.mxu0 0
    %1304 = vmatprep.subr.bf16.mxu0 0
    %1305 = vmatpush2.bf16.msra.mxu0 0
    %1306 = vmatprep.subr.bf16.mxu0 0
    %1307 = vmatpush2.bf16.msra.mxu0 0
    %1308 = vmatprep.subr.bf16.mxu0 0
    %1309 = vmatpush2.bf16.msra.mxu0 0
    %1310 = vmatprep.subr.bf16.mxu0 0
    %1311 = vmatpush2.bf16.msra.mxu0 0
    %1312 = vmatprep.subr.bf16.mxu0 0
    %1313 = vmatpush2.bf16.msra.mxu0 0
    %1314 = vmatprep.subr.bf16.mxu0 0
    %1315 = vmatpush2.bf16.msra.mxu0 0
    %1316 = vmatprep.subr.bf16.mxu0 0
    %1317 = vmatpush2.bf16.msra.mxu0 0
    %1318 = vmatprep.mubr.bf16.mxu0 0
    %1319 = vmatmul.mubr.bf16.gmra.mxu0 %v1284
    %v1320 = vpop.f32.mrf.mxu0
    %v1321 = vadd.f32 0.0, %v1320
    %v1322 = vpop.f32.mrf.mxu0
    %v1323 = vpop.f32.mrf.mxu0
    %v1324 = vadd.f32 0.0, %v1323
    %v1325 = vpop.f32.mrf.mxu0
    %1326 = vdwg.mxu0
    %v1329 = vunpack.c.l.b16 %v761
    %v1330 = vunpack.c.l.b16 %v762
    %v1331 = vpack.c.b16 %v1330, %v1329
    %v1334 = vsel %vm425, %v763, 0
    %1336 = vmatprep.subr.bf16.mxu0 0
    %1337 = vmatpush1.bf16.msra.mxu0 0
    %1338 = vmatprep.subr.bf16.mxu0 0
    %1339 = vmatpush1.bf16.msra.mxu0 0
    %1340 = vmatprep.subr.bf16.mxu0 0
    %1341 = vmatpush1.bf16.msra.mxu0 0
    %1342 = vmatprep.subr.bf16.mxu0 0
    %1343 = vmatpush1.bf16.msra.mxu0 0
    %1344 = vmatprep.subr.bf16.mxu0 0
    %1345 = vmatpush1.bf16.msra.mxu0 0
    %1346 = vmatprep.subr.bf16.mxu0 0
    %1347 = vmatpush1.bf16.msra.mxu0 0
    %1348 = vmatprep.subr.bf16.mxu0 0
    %1349 = vmatpush1.bf16.msra.mxu0 0
    %1350 = vmatprep.subr.bf16.mxu0 0
    %1351 = vmatpush1.bf16.msra.mxu0 %v1331
    %1352 = vmatprep.subr.bf16.mxu0 0
    %1353 = vmatpush2.bf16.msra.mxu0 0
    %1354 = vmatprep.subr.bf16.mxu0 0
    %1355 = vmatpush2.bf16.msra.mxu0 0
    %1356 = vmatprep.subr.bf16.mxu0 0
    %1357 = vmatpush2.bf16.msra.mxu0 0
    %1358 = vmatprep.subr.bf16.mxu0 0
    %1359 = vmatpush2.bf16.msra.mxu0 0
    %1360 = vmatprep.subr.bf16.mxu0 0
    %1361 = vmatpush2.bf16.msra.mxu0 0
    %1362 = vmatprep.subr.bf16.mxu0 0
    %1363 = vmatpush2.bf16.msra.mxu0 0
    %1364 = vmatprep.subr.bf16.mxu0 0
    %1365 = vmatpush2.bf16.msra.mxu0 0
    %1366 = vmatprep.subr.bf16.mxu0 0
    %1367 = vmatpush2.bf16.msra.mxu0 0
    %1368 = vmatprep.mubr.bf16.mxu0 0
    %1369 = vmatmul.mubr.bf16.gmra.mxu0 %v1334
    %v1370 = vpop.f32.mrf.mxu0
    %v1371 = vadd.f32 %v1321, %v1370
    %v1372 = vpop.f32.mrf.mxu0
    %v1373 = vpop.f32.mrf.mxu0
    %v1374 = vadd.f32 %v1324, %v1373
    %v1375 = vpop.f32.mrf.mxu0
    %1376 = vdwg.mxu0
    %v1377 = vld [vmem:[#allocation7 + $0x13] sm:$0x1]
    %v1378 = vlaneseq
    %v1379 = vshrl.u32 %v1378, 7
    %v1380 = vsub.s32 0, %v1379
    %v1381 = vrot.slane %v1377, %v1380
    %v1382 = vadd.f32 %v1371, %v1381
    %v1383 = vadd.f32 %v1374, %v1381
    %v1384 = vadd.f32 %v208, %v1382
    %v1385 = vadd.f32 %v209, %v1383
    %v1386 = vld [vmem:[#allocation7 + $0x16] sm:$0x1]
    %v1387 = vld [vmem:[#allocation7 + $0x17] sm:$0x1]
    %v1388 = vsel %vm170, %v1384, 0.0
    %1389 = vadd.xlane.f32.xlu0 %v1388
    %v1390 = vpop.xlane.xlu0 %1389
    %v1391 = vsel %vm170, %v1385, 0.0
    %1392 = vadd.xlane.f32.xlu0 %v1391
    %v1393 = vpop.xlane.xlu0 %1392
    %v1394 = vmul.f32 %v1390, %v177
    %v1395 = vmul.f32 %v1393, %v177
    %v1396 = vsub.f32 %v1384, %v1394
    %v1397 = vsub.f32 %v1385, %v1395
    %v1398 = vmul.f32 %v1396, %v1396
    %v1399 = vmul.f32 %v1397, %v1397
    %v1400 = vsel %vm170, %v1398, 0.0
    %1401 = vadd.xlane.f32.xlu0 %v1400
    %v1402 = vpop.xlane.xlu0 %1401
    %v1403 = vsel %vm170, %v1399, 0.0
    %1404 = vadd.xlane.f32.xlu0 %v1403
    %v1405 = vpop.xlane.xlu0 %1404
    %v1406 = vmul.f32 %v1402, %v177
    %v1407 = vmul.f32 %v1405, %v177
    %v1408 = vadd.f32 %v1406, 1e-12
    %v1409 = vadd.f32 %v1407, 1e-12
    %v1410 = vrsqrt.pop %v1408
    %v1411 = vrsqrt.pop %v1409
    %v1412 = vmul.f32 %v1396, %v1410
    %v1413 = vmul.f32 %v1397, %v1411
    %v1414 = vlaneseq
    %v1415 = vshrl.u32 %v1414, 7
    %v1416 = vsub.s32 0, %v1415
    %v1417 = vrot.slane %v1386, %v1416
    %v1418 = vmul.f32 %v1412, %v1417
    %v1419 = vmul.f32 %v1413, %v1417
    %v1420 = vlaneseq
    %v1421 = vshrl.u32 %v1420, 7
    %v1422 = vsub.s32 0, %v1421
    %v1423 = vrot.slane %v1387, %v1422
    %v1424 = vadd.f32 %v1418, %v1423
    %v1425 = vadd.f32 %v1419, %v1423
    %v1426 = vpack.c.bf16 %v1425, %v1424
    %v1427 = vld [vmem:[#allocation5 + $0x90] sm:$0xf]
    %v1428 = vld [vmem:[#allocation5 + $0x94] sm:$0xf]
    %v1429 = vld [vmem:[#allocation5 + $0x98] sm:$0xf]
    %v1430 = vld [vmem:[#allocation5 + $0x9c] sm:$0xf]
    %v1431 = vld [vmem:[#allocation7 + $0x14] sm:$0x1]
    %v1432 = vlaneseq
    %v1433 = vshrl.u32 %v1432, 7
    %v1434 = vsub.s32 0, %v1433
    %v1435 = vrot.slane %v1431, %v1434
    %v1440 = vunpack.c.l.b16 %v1427
    %v1441 = vunpack.c.l.b16 %v1428
    %v1442 = vunpack.c.l.b16 %v1429
    %v1443 = vunpack.c.l.b16 %v1430
    %v1444 = vpack.c.b16 %v1441, %v1440
    %v1445 = vpack.c.b16 %v1443, %v1442
    %v1449 = vsel %vm170, %v1426, 0
    %1451 = vmatprep.subr.bf16.mxu0 0
    %1452 = vmatpush1.bf16.msra.mxu0 0
    %1453 = vmatprep.subr.bf16.mxu0 0
    %1454 = vmatpush1.bf16.msra.mxu0 0
    %1455 = vmatprep.subr.bf16.mxu0 0
    %1456 = vmatpush1.bf16.msra.mxu0 0
    %1457 = vmatprep.subr.bf16.mxu0 0
    %1458 = vmatpush1.bf16.msra.mxu0 0
    %1459 = vmatprep.subr.bf16.mxu0 0
    %1460 = vmatpush1.bf16.msra.mxu0 0
    %1461 = vmatprep.subr.bf16.mxu0 0
    %1462 = vmatpush1.bf16.msra.mxu0 0
    %1463 = vmatprep.subr.bf16.mxu0 0
    %1464 = vmatpush1.bf16.msra.mxu0 %v1445
    %1465 = vmatprep.subr.bf16.mxu0 0
    %1466 = vmatpush1.bf16.msra.mxu0 %v1444
    %1467 = vmatprep.subr.bf16.mxu0 0
    %1468 = vmatpush2.bf16.msra.mxu0 0
    %1469 = vmatprep.subr.bf16.mxu0 0
    %1470 = vmatpush2.bf16.msra.mxu0 0
    %1471 = vmatprep.subr.bf16.mxu0 0
    %1472 = vmatpush2.bf16.msra.mxu0 0
    %1473 = vmatprep.subr.bf16.mxu0 0
    %1474 = vmatpush2.bf16.msra.mxu0 0
    %1475 = vmatprep.subr.bf16.mxu0 0
    %1476 = vmatpush2.bf16.msra.mxu0 0
    %1477 = vmatprep.subr.bf16.mxu0 0
    %1478 = vmatpush2.bf16.msra.mxu0 0
    %1479 = vmatprep.subr.bf16.mxu0 0
    %1480 = vmatpush2.bf16.msra.mxu0 0
    %1481 = vmatprep.subr.bf16.mxu0 0
    %1482 = vmatpush2.bf16.msra.mxu0 0
    %1483 = vmatprep.mubr.bf16.mxu0 0
    %1484 = vmatmul.mubr.bf16.gmra.mxu0 %v1449
    %v1485 = vpop.f32.mrf.mxu0
    %v1486 = vadd.f32 %v1435, %v1485
    %v1487 = vpop.f32.mrf.mxu0
    %v1488 = vpop.f32.mrf.mxu0
    %v1489 = vadd.f32 %v1435, %v1488
    %v1490 = vpop.f32.mrf.mxu0
    %1491 = vdwg.mxu0
    %v1492 = vmul.f32 %v1486, %v1486
    %v1493 = vmul.f32 %v1489, %v1489
    %v1494 = vmul.f32 %v1486, %v1492
    %v1495 = vmul.f32 %v1489, %v1493
    %v1496 = vmul.f32 %v1494, 0.044715
    %v1497 = vmul.f32 %v1495, 0.044715
    %v1498 = vadd.f32 %v1486, %v1496
    %v1499 = vadd.f32 %v1489, %v1497
    %v1500 = vmul.f32 %v1498, 0.7978846
    %v1501 = vmul.f32 %v1499, 0.7978846
    %v1502 = vtanh.pop %v1500
    %v1503 = vtanh.pop %v1501
    %v1504 = vadd.f32 %v1502, 1.0
    %v1505 = vadd.f32 %v1503, 1.0
    %v1506 = vmul.f32 %v1504, 0.5
    %v1507 = vmul.f32 %v1505, 0.5
    %v1508 = vmul.f32 %v1486, %v1506
    %v1509 = vmul.f32 %v1489, %v1507
    %v1510 = vpack.c.bf16 %v1509, %v1508
    %v1511 = vld [vmem:[#allocation5 + $0xa0] sm:$0xf]
    %v1512 = vld [vmem:[#allocation5 + $0xa4] sm:$0xf]
    %v1513 = vld [vmem:[#allocation5 + $0xa8] sm:$0xf]
    %v1514 = vld [vmem:[#allocation5 + $0xac] sm:$0xf]
    %v1515 = vld [vmem:[#allocation5 + $0xb0] sm:$0xf]
    %v1516 = vld [vmem:[#allocation5 + $0xb4] sm:$0xf]
    %v1517 = vld [vmem:[#allocation5 + $0xb8] sm:$0xf]
    %v1518 = vld [vmem:[#allocation5 + $0xbc] sm:$0xf]
    %v1519 = vld [vmem:[#allocation7 + $0x15] sm:$0x1]
    %v1520 = vlaneseq
    %v1521 = vshrl.u32 %v1520, 7
    %v1522 = vsub.s32 0, %v1521
    %v1523 = vrot.slane %v1519, %v1522
    %v1532 = vunpack.c.l.b16 %v1511
    %v1533 = vunpack.c.l.b16 %v1512
    %v1534 = vunpack.c.l.b16 %v1513
    %v1535 = vunpack.c.l.b16 %v1514
    %v1536 = vunpack.c.l.b16 %v1515
    %v1537 = vunpack.c.l.b16 %v1516
    %v1538 = vunpack.c.l.b16 %v1517
    %v1539 = vunpack.c.l.b16 %v1518
    %v1540 = vpack.c.b16 %v1533, %v1532
    %v1541 = vpack.c.b16 %v1535, %v1534
    %v1542 = vpack.c.b16 %v1537, %v1536
    %v1543 = vpack.c.b16 %v1539, %v1538
    %v1549 = vsel %vm123, %v1510, 0
    %1551 = vmatprep.subr.bf16.mxu0 0
    %1552 = vmatpush1.bf16.msra.mxu0 0
    %1553 = vmatprep.subr.bf16.mxu0 0
    %1554 = vmatpush1.bf16.msra.mxu0 0
    %1555 = vmatprep.subr.bf16.mxu0 0
    %1556 = vmatpush1.bf16.msra.mxu0 0
    %1557 = vmatprep.subr.bf16.mxu0 0
    %1558 = vmatpush1.bf16.msra.mxu0 0
    %1559 = vmatprep.subr.bf16.mxu0 0
    %1560 = vmatpush1.bf16.msra.mxu0 %v1543
    %1561 = vmatprep.subr.bf16.mxu0 0
    %1562 = vmatpush1.bf16.msra.mxu0 %v1542
    %1563 = vmatprep.subr.bf16.mxu0 0
    %1564 = vmatpush1.bf16.msra.mxu0 %v1541
    %1565 = vmatprep.subr.bf16.mxu0 0
    %1566 = vmatpush1.bf16.msra.mxu0 %v1540
    %1567 = vmatprep.subr.bf16.mxu0 0
    %1568 = vmatpush2.bf16.msra.mxu0 0
    %1569 = vmatprep.subr.bf16.mxu0 0
    %1570 = vmatpush2.bf16.msra.mxu0 0
    %1571 = vmatprep.subr.bf16.mxu0 0
    %1572 = vmatpush2.bf16.msra.mxu0 0
    %1573 = vmatprep.subr.bf16.mxu0 0
    %1574 = vmatpush2.bf16.msra.mxu0 0
    %1575 = vmatprep.subr.bf16.mxu0 0
    %1576 = vmatpush2.bf16.msra.mxu0 0
    %1577 = vmatprep.subr.bf16.mxu0 0
    %1578 = vmatpush2.bf16.msra.mxu0 0
    %1579 = vmatprep.subr.bf16.mxu0 0
    %1580 = vmatpush2.bf16.msra.mxu0 0
    %1581 = vmatprep.subr.bf16.mxu0 0
    %1582 = vmatpush2.bf16.msra.mxu0 0
    %1583 = vmatprep.mubr.bf16.mxu0 0
    %1584 = vmatmul.mubr.bf16.gmra.mxu0 %v1549
    %v1585 = vpop.f32.mrf.mxu0
    %v1586 = vadd.f32 %v1523, %v1585
    %v1587 = vpop.f32.mrf.mxu0
    %v1588 = vpop.f32.mrf.mxu0
    %v1589 = vadd.f32 %v1523, %v1588
    %v1590 = vpop.f32.mrf.mxu0
    %1591 = vdwg.mxu0
    %v1592 = vadd.f32 %v1424, %v1586
    %v1593 = vadd.f32 %v1425, %v1589
    %v1594 = vld [vmem:[#allocation7 + $0x18] sm:$0x1]
    %v1595 = vld [vmem:[#allocation7 + $0x19] sm:$0x1]
    %v1596 = vsel %vm170, %v1592, 0.0
    %1597 = vadd.xlane.f32.xlu0 %v1596
    %v1598 = vpop.xlane.xlu0 %1597
    %v1599 = vsel %vm170, %v1593, 0.0
    %1600 = vadd.xlane.f32.xlu0 %v1599
    %v1601 = vpop.xlane.xlu0 %1600
    %v1602 = vmul.f32 %v1598, %v177
    %v1603 = vmul.f32 %v1601, %v177
    %v1604 = vsub.f32 %v1592, %v1602
    %v1605 = vsub.f32 %v1593, %v1603
    %v1606 = vmul.f32 %v1604, %v1604
    %v1607 = vmul.f32 %v1605, %v1605
    %v1608 = vsel %vm170, %v1606, 0.0
    %1609 = vadd.xlane.f32.xlu0 %v1608
    %v1610 = vpop.xlane.xlu0 %1609
    %v1611 = vsel %vm170, %v1607, 0.0
    %1612 = vadd.xlane.f32.xlu0 %v1611
    %v1613 = vpop.xlane.xlu0 %1612
    %v1614 = vmul.f32 %v1610, %v177
    %v1615 = vmul.f32 %v1613, %v177
    %v1616 = vadd.f32 %v1614, 1e-12
    %v1617 = vadd.f32 %v1615, 1e-12
    %v1618 = vrsqrt.pop %v1616
    %v1619 = vrsqrt.pop %v1617
    %v1620 = vmul.f32 %v1604, %v1618
    %v1621 = vmul.f32 %v1605, %v1619
    %v1622 = vlaneseq
    %v1623 = vshrl.u32 %v1622, 7
    %v1624 = vsub.s32 0, %v1623
    %v1625 = vrot.slane %v1594, %v1624
    %v1626 = vmul.f32 %v1620, %v1625
    %v1627 = vmul.f32 %v1621, %v1625
    %v1628 = vlaneseq
    %v1629 = vshrl.u32 %v1628, 7
    %v1630 = vsub.s32 0, %v1629
    %v1631 = vrot.slane %v1595, %v1630
    %v1632 = vadd.f32 %v1626, %v1631
    %v1633 = vadd.f32 %v1627, %v1631
    %v1634 = vpack.c.bf16 %v1633, %v1632
    %v1635 = vld [vmem:[#allocation5 + $0xc0] sm:$0xf]
    %v1636 = vld [vmem:[#allocation5 + $0xc4] sm:$0xf]
    %v1637 = vld [vmem:[#allocation5 + $0xc8] sm:$0xf]
    %v1638 = vld [vmem:[#allocation5 + $0xcc] sm:$0xf]
    %v1639 = vld [vmem:[#allocation7 + $0x1a] sm:$0x1]
    %v1640 = vlaneseq
    %v1641 = vshrl.u32 %v1640, 7
    %v1642 = vsub.s32 0, %v1641
    %v1643 = vrot.slane %v1639, %v1642
    %v1648 = vunpack.c.l.b16 %v1635
    %v1649 = vunpack.c.l.b16 %v1636
    %v1650 = vunpack.c.l.b16 %v1637
    %v1651 = vunpack.c.l.b16 %v1638
    %v1652 = vpack.c.b16 %v1649, %v1648
    %v1653 = vpack.c.b16 %v1651, %v1650
    %v1657 = vsel %vm170, %v1634, 0
    %1659 = vmatprep.subr.bf16.mxu0 0
    %1660 = vmatpush1.bf16.msra.mxu0 0
    %1661 = vmatprep.subr.bf16.mxu0 0
    %1662 = vmatpush1.bf16.msra.mxu0 0
    %1663 = vmatprep.subr.bf16.mxu0 0
    %1664 = vmatpush1.bf16.msra.mxu0 0
    %1665 = vmatprep.subr.bf16.mxu0 0
    %1666 = vmatpush1.bf16.msra.mxu0 0
    %1667 = vmatprep.subr.bf16.mxu0 0
    %1668 = vmatpush1.bf16.msra.mxu0 0
    %1669 = vmatprep.subr.bf16.mxu0 0
    %1670 = vmatpush1.bf16.msra.mxu0 0
    %1671 = vmatprep.subr.bf16.mxu0 0
    %1672 = vmatpush1.bf16.msra.mxu0 %v1653
    %1673 = vmatprep.subr.bf16.mxu0 0
    %1674 = vmatpush1.bf16.msra.mxu0 %v1652
    %1675 = vmatprep.subr.bf16.mxu0 0
    %1676 = vmatpush2.bf16.msra.mxu0 0
    %1677 = vmatprep.subr.bf16.mxu0 0
    %1678 = vmatpush2.bf16.msra.mxu0 0
    %1679 = vmatprep.subr.bf16.mxu0 0
    %1680 = vmatpush2.bf16.msra.mxu0 0
    %1681 = vmatprep.subr.bf16.mxu0 0
    %1682 = vmatpush2.bf16.msra.mxu0 0
    %1683 = vmatprep.subr.bf16.mxu0 0
    %1684 = vmatpush2.bf16.msra.mxu0 0
    %1685 = vmatprep.subr.bf16.mxu0 0
    %1686 = vmatpush2.bf16.msra.mxu0 0
    %1687 = vmatprep.subr.bf16.mxu0 0
    %1688 = vmatpush2.bf16.msra.mxu0 0
    %1689 = vmatprep.subr.bf16.mxu0 0
    %1690 = vmatpush2.bf16.msra.mxu0 0
    %1691 = vmatprep.mubr.bf16.mxu0 0
    %1692 = vmatmul.mubr.bf16.gmra.mxu0 %v1657
    %v1693 = vpop.f32.mrf.mxu0
    %v1694 = vadd.f32 %v1643, %v1693
    %v1695 = vpop.f32.mrf.mxu0
    %v1696 = vpop.f32.mrf.mxu0
    %v1697 = vadd.f32 %v1643, %v1696
    %v1698 = vpop.f32.mrf.mxu0
    %1699 = vdwg.mxu0
    %v1700 = vld [vmem:[#allocation5 + $0xe0] sm:$0xf]
    %v1701 = vld [vmem:[#allocation5 + $0xe4] sm:$0xf]
    %v1702 = vld [vmem:[#allocation5 + $0xe8] sm:$0xf]
    %v1703 = vld [vmem:[#allocation5 + $0xec] sm:$0xf]
    %v1704 = vld [vmem:[#allocation7 + $0x1c] sm:$0x1]
    %v1705 = vlaneseq
    %v1706 = vshrl.u32 %v1705, 7
    %v1707 = vsub.s32 0, %v1706
    %v1708 = vrot.slane %v1704, %v1707
    %v1713 = vunpack.c.l.b16 %v1700
    %v1714 = vunpack.c.l.b16 %v1701
    %v1715 = vunpack.c.l.b16 %v1702
    %v1716 = vunpack.c.l.b16 %v1703
    %v1717 = vpack.c.b16 %v1714, %v1713
    %v1718 = vpack.c.b16 %v1716, %v1715
    %1721 = vmatprep.subr.bf16.mxu0 0
    %1722 = vmatpush1.bf16.msra.mxu0 0
    %1723 = vmatprep.subr.bf16.mxu0 0
    %1724 = vmatpush1.bf16.msra.mxu0 0
    %1725 = vmatprep.subr.bf16.mxu0 0
    %1726 = vmatpush1.bf16.msra.mxu0 0
    %1727 = vmatprep.subr.bf16.mxu0 0
    %1728 = vmatpush1.bf16.msra.mxu0 0
    %1729 = vmatprep.subr.bf16.mxu0 0
    %1730 = vmatpush1.bf16.msra.mxu0 0
    %1731 = vmatprep.subr.bf16.mxu0 0
    %1732 = vmatpush1.bf16.msra.mxu0 0
    %1733 = vmatprep.subr.bf16.mxu0 0
    %1734 = vmatpush1.bf16.msra.mxu0 %v1718
    %1735 = vmatprep.subr.bf16.mxu0 0
    %1736 = vmatpush1.bf16.msra.mxu0 %v1717
    %1737 = vmatprep.subr.bf16.mxu0 0
    %1738 = vmatpush2.bf16.msra.mxu0 0
    %1739 = vmatprep.subr.bf16.mxu0 0
    %1740 = vmatpush2.bf16.msra.mxu0 0
    %1741 = vmatprep.subr.bf16.mxu0 0
    %1742 = vmatpush2.bf16.msra.mxu0 0
    %1743 = vmatprep.subr.bf16.mxu0 0
    %1744 = vmatpush2.bf16.msra.mxu0 0
    %1745 = vmatprep.subr.bf16.mxu0 0
    %1746 = vmatpush2.bf16.msra.mxu0 0
    %1747 = vmatprep.subr.bf16.mxu0 0
    %1748 = vmatpush2.bf16.msra.mxu0 0
    %1749 = vmatprep.subr.bf16.mxu0 0
    %1750 = vmatpush2.bf16.msra.mxu0 0
    %1751 = vmatprep.subr.bf16.mxu0 0
    %1752 = vmatpush2.bf16.msra.mxu0 0
    %1753 = vmatprep.mubr.bf16.mxu0 0
    %1754 = vmatmul.mubr.bf16.gmra.mxu0 %v1657
    %v1755 = vpop.f32.mrf.mxu0
    %v1756 = vadd.f32 %v1708, %v1755
    %v1757 = vpop.f32.mrf.mxu0
    %v1758 = vpop.f32.mrf.mxu0
    %v1759 = vadd.f32 %v1708, %v1758
    %v1760 = vpop.f32.mrf.mxu0
    %1761 = vdwg.mxu0
    %v1762 = vld [vmem:[#allocation5 + $0x100] sm:$0xf]
    %v1763 = vld [vmem:[#allocation5 + $0x104] sm:$0xf]
    %v1764 = vld [vmem:[#allocation5 + $0x108] sm:$0xf]
    %v1765 = vld [vmem:[#allocation5 + $0x10c] sm:$0xf]
    %v1766 = vld [vmem:[#allocation7 + $0x1e] sm:$0x1]
    %v1767 = vlaneseq
    %v1768 = vshrl.u32 %v1767, 7
    %v1769 = vsub.s32 0, %v1768
    %v1770 = vrot.slane %v1766, %v1769
    %v1775 = vunpack.c.l.b16 %v1762
    %v1776 = vunpack.c.l.b16 %v1763
    %v1777 = vunpack.c.l.b16 %v1764
    %v1778 = vunpack.c.l.b16 %v1765
    %v1779 = vpack.c.b16 %v1776, %v1775
    %v1780 = vpack.c.b16 %v1778, %v1777
    %1783 = vmatprep.subr.bf16.mxu0 0
    %1784 = vmatpush1.bf16.msra.mxu0 0
    %1785 = vmatprep.subr.bf16.mxu0 0
    %1786 = vmatpush1.bf16.msra.mxu0 0
    %1787 = vmatprep.subr.bf16.mxu0 0
    %1788 = vmatpush1.bf16.msra.mxu0 0
    %1789 = vmatprep.subr.bf16.mxu0 0
    %1790 = vmatpush1.bf16.msra.mxu0 0
    %1791 = vmatprep.subr.bf16.mxu0 0
    %1792 = vmatpush1.bf16.msra.mxu0 0
    %1793 = vmatprep.subr.bf16.mxu0 0
    %1794 = vmatpush1.bf16.msra.mxu0 0
    %1795 = vmatprep.subr.bf16.mxu0 0
    %1796 = vmatpush1.bf16.msra.mxu0 %v1780
    %1797 = vmatprep.subr.bf16.mxu0 0
    %1798 = vmatpush1.bf16.msra.mxu0 %v1779
    %1799 = vmatprep.subr.bf16.mxu0 0
    %1800 = vmatpush2.bf16.msra.mxu0 0
    %1801 = vmatprep.subr.bf16.mxu0 0
    %1802 = vmatpush2.bf16.msra.mxu0 0
    %1803 = vmatprep.subr.bf16.mxu0 0
    %1804 = vmatpush2.bf16.msra.mxu0 0
    %1805 = vmatprep.subr.bf16.mxu0 0
    %1806 = vmatpush2.bf16.msra.mxu0 0
    %1807 = vmatprep.subr.bf16.mxu0 0
    %1808 = vmatpush2.bf16.msra.mxu0 0
    %1809 = vmatprep.subr.bf16.mxu0 0
    %1810 = vmatpush2.bf16.msra.mxu0 0
    %1811 = vmatprep.subr.bf16.mxu0 0
    %1812 = vmatpush2.bf16.msra.mxu0 0
    %1813 = vmatprep.subr.bf16.mxu0 0
    %1814 = vmatpush2.bf16.msra.mxu0 0
    %1815 = vmatprep.mubr.bf16.mxu0 0
    %1816 = vmatmul.mubr.bf16.gmra.mxu0 %v1657
    %v1817 = vpop.f32.mrf.mxu0
    %v1818 = vadd.f32 %v1770, %v1817
    %v1819 = vpop.f32.mrf.mxu0
    %v1820 = vpop.f32.mrf.mxu0
    %v1821 = vadd.f32 %v1770, %v1820
    %v1822 = vpop.f32.mrf.mxu0
    %1823 = vdwg.mxu0
    %v1825 = vsel %vm425, %v1694, 0
    %v1828 = vsel %vm425, %v1756, 0
    %1830 = vmatprep.subr.mxu0 0.0
    %1831 = vmatpush1.xpose.msra.mxu0 0.0
    %1832 = vmatprep.subr.mxu0 0.0
    %1833 = vmatpush1.xpose.msra.mxu0 0.0
    %1834 = vmatprep.subr.mxu0 0.0
    %1835 = vmatpush1.xpose.msra.mxu0 0.0
    %1836 = vmatprep.subr.mxu0 0.0
    %1837 = vmatpush1.xpose.msra.mxu0 0.0
    %1838 = vmatprep.subr.mxu0 0.0
    %1839 = vmatpush1.xpose.msra.mxu0 0.0
    %1840 = vmatprep.subr.mxu0 0.0
    %1841 = vmatpush1.xpose.msra.mxu0 0.0
    %1842 = vmatprep.subr.mxu0 0.0
    %1843 = vmatpush1.xpose.msra.mxu0 0.0
    %1844 = vmatprep.subr.mxu0 0.0
    %1845 = vmatpush1.xpose.msra.mxu0 0.0
    %1846 = vmatprep.subr.mxu0 0.0
    %1847 = vmatpush1.xpose.msra.mxu0 0.0
    %1848 = vmatprep.subr.mxu0 0.0
    %1849 = vmatpush1.xpose.msra.mxu0 0.0
    %1850 = vmatprep.subr.mxu0 0.0
    %1851 = vmatpush1.xpose.msra.mxu0 0.0
    %1852 = vmatprep.subr.mxu0 0.0
    %1853 = vmatpush1.xpose.msra.mxu0 0.0
    %1854 = vmatprep.subr.mxu0 0.0
    %1855 = vmatpush1.xpose.msra.mxu0 0.0
    %1856 = vmatprep.subr.mxu0 0.0
    %1857 = vmatpush1.xpose.msra.mxu0 0.0
    %1858 = vmatprep.subr.mxu0 0.0
    %1859 = vmatpush1.xpose.msra.mxu0 0.0
    %1860 = vmatprep.subr.mxu0 0.0
    %1861 = vmatpush1.xpose.msra.mxu0 %v1828
    %1862 = vmatprep.subr.mxu0 0.0
    %1863 = vmatpush2.xpose.msra.mxu0 0.0
    %1864 = vmatprep.subr.mxu0 0.0
    %1865 = vmatpush2.xpose.msra.mxu0 0.0
    %1866 = vmatprep.subr.mxu0 0.0
    %1867 = vmatpush2.xpose.msra.mxu0 0.0
    %1868 = vmatprep.subr.mxu0 0.0
    %1869 = vmatpush2.xpose.msra.mxu0 0.0
    %1870 = vmatprep.subr.mxu0 0.0
    %1871 = vmatpush2.xpose.msra.mxu0 0.0
    %1872 = vmatprep.subr.mxu0 0.0
    %1873 = vmatpush2.xpose.msra.mxu0 0.0
    %1874 = vmatprep.subr.mxu0 0.0
    %1875 = vmatpush2.xpose.msra.mxu0 0.0
    %1876 = vmatprep.subr.mxu0 0.0
    %1877 = vmatpush2.xpose.msra.mxu0 0.0
    %1878 = vmatprep.subr.mxu0 0.0
    %1879 = vmatpush2.xpose.msra.mxu0 0.0
    %1880 = vmatprep.subr.mxu0 0.0
    %1881 = vmatpush2.xpose.msra.mxu0 0.0
    %1882 = vmatprep.subr.mxu0 0.0
    %1883 = vmatpush2.xpose.msra.mxu0 0.0
    %1884 = vmatprep.subr.mxu0 0.0
    %1885 = vmatpush2.xpose.msra.mxu0 0.0
    %1886 = vmatprep.subr.mxu0 0.0
    %1887 = vmatpush2.xpose.msra.mxu0 0.0
    %1888 = vmatprep.subr.mxu0 0.0
    %1889 = vmatpush2.xpose.msra.mxu0 0.0
    %1890 = vmatprep.subr.mxu0 0.0
    %1891 = vmatpush2.xpose.msra.mxu0 0.0
    %1892 = vmatprep.subr.mxu0 0.0
    %1893 = vmatpush2.xpose.msra.mxu0 0.0
    %1894 = vmatprep.mubr.f32.mxu0 0.0
    %1895 = vmatmul.mubr.f32.gmra.mxu0 %v1825
    %v1896 = vpop.f32.mrf.mxu0
    %v1897 = vadd.f32 0.0, %v1896
    %v1898 = vpop.f32.mrf.mxu0
    %1899 = vdwg.mxu0
    %v1901 = vsel %vm425, %v1697, 0
    %v1904 = vsel %vm425, %v1759, 0
    %1906 = vmatprep.subr.mxu0 0.0
    %1907 = vmatpush1.xpose.msra.mxu0 0.0
    %1908 = vmatprep.subr.mxu0 0.0
    %1909 = vmatpush1.xpose.msra.mxu0 0.0
    %1910 = vmatprep.subr.mxu0 0.0
    %1911 = vmatpush1.xpose.msra.mxu0 0.0
    %1912 = vmatprep.subr.mxu0 0.0
    %1913 = vmatpush1.xpose.msra.mxu0 0.0
    %1914 = vmatprep.subr.mxu0 0.0
    %1915 = vmatpush1.xpose.msra.mxu0 0.0
    %1916 = vmatprep.subr.mxu0 0.0
    %1917 = vmatpush1.xpose.msra.mxu0 0.0
    %1918 = vmatprep.subr.mxu0 0.0
    %1919 = vmatpush1.xpose.msra.mxu0 0.0
    %1920 = vmatprep.subr.mxu0 0.0
    %1921 = vmatpush1.xpose.msra.mxu0 0.0
    %1922 = vmatprep.subr.mxu0 0.0
    %1923 = vmatpush1.xpose.msra.mxu0 0.0
    %1924 = vmatprep.subr.mxu0 0.0
    %1925 = vmatpush1.xpose.msra.mxu0 0.0
    %1926 = vmatprep.subr.mxu0 0.0
    %1927 = vmatpush1.xpose.msra.mxu0 0.0
    %1928 = vmatprep.subr.mxu0 0.0
    %1929 = vmatpush1.xpose.msra.mxu0 0.0
    %1930 = vmatprep.subr.mxu0 0.0
    %1931 = vmatpush1.xpose.msra.mxu0 0.0
    %1932 = vmatprep.subr.mxu0 0.0
    %1933 = vmatpush1.xpose.msra.mxu0 0.0
    %1934 = vmatprep.subr.mxu0 0.0
    %1935 = vmatpush1.xpose.msra.mxu0 0.0
    %1936 = vmatprep.subr.mxu0 0.0
    %1937 = vmatpush1.xpose.msra.mxu0 %v1904
    %1938 = vmatprep.subr.mxu0 0.0
    %1939 = vmatpush2.xpose.msra.mxu0 0.0
    %1940 = vmatprep.subr.mxu0 0.0
    %1941 = vmatpush2.xpose.msra.mxu0 0.0
    %1942 = vmatprep.subr.mxu0 0.0
    %1943 = vmatpush2.xpose.msra.mxu0 0.0
    %1944 = vmatprep.subr.mxu0 0.0
    %1945 = vmatpush2.xpose.msra.mxu0 0.0
    %1946 = vmatprep.subr.mxu0 0.0
    %1947 = vmatpush2.xpose.msra.mxu0 0.0
    %1948 = vmatprep.subr.mxu0 0.0
    %1949 = vmatpush2.xpose.msra.mxu0 0.0
    %1950 = vmatprep.subr.mxu0 0.0
    %1951 = vmatpush2.xpose.msra.mxu0 0.0
    %1952 = vmatprep.subr.mxu0 0.0
    %1953 = vmatpush2.xpose.msra.mxu0 0.0
    %1954 = vmatprep.subr.mxu0 0.0
    %1955 = vmatpush2.xpose.msra.mxu0 0.0
    %1956 = vmatprep.subr.mxu0 0.0
    %1957 = vmatpush2.xpose.msra.mxu0 0.0
    %1958 = vmatprep.subr.mxu0 0.0
    %1959 = vmatpush2.xpose.msra.mxu0 0.0
    %1960 = vmatprep.subr.mxu0 0.0
    %1961 = vmatpush2.xpose.msra.mxu0 0.0
    %1962 = vmatprep.subr.mxu0 0.0
    %1963 = vmatpush2.xpose.msra.mxu0 0.0
    %1964 = vmatprep.subr.mxu0 0.0
    %1965 = vmatpush2.xpose.msra.mxu0 0.0
    %1966 = vmatprep.subr.mxu0 0.0
    %1967 = vmatpush2.xpose.msra.mxu0 0.0
    %1968 = vmatprep.subr.mxu0 0.0
    %1969 = vmatpush2.xpose.msra.mxu0 0.0
    %1970 = vmatprep.mubr.f32.mxu0 0.0
    %1971 = vmatmul.mubr.f32.gmra.mxu0 %v1901
    %v1972 = vpop.f32.mrf.mxu0
    %v1973 = vadd.f32 0.0, %v1972
    %v1974 = vpop.f32.mrf.mxu0
    %1975 = vdwg.mxu0
    %v1976 = vmul.f32 %v1897, 0.25
    %v1977 = vmul.f32 %v1973, 0.25
    %v1978 = vadd.f32 %v1976, %v583
    %v1979 = vadd.f32 %v1977, %v587
    %v1980 = vsel %vm592, %v1978, -inf
    %1981 = vmax.xlane.f32.xlu0 %v1980
    %v1982 = vpop.xlane.xlu0 %1981
    %v1983 = vsel %vm592, %v1979, -inf
    %1984 = vmax.xlane.f32.xlu0 %v1983
    %v1985 = vpop.xlane.xlu0 %1984
    %v1986 = vsub.f32 %v1978, %v1982
    %v1987 = vsub.f32 %v1979, %v1985
    %v1988 = vmul.f32 %v1986, 1.442695
    %v1989 = vpow.pop %v1988
    %v1990 = vmul.f32 %v1987, 1.442695
    %v1991 = vpow.pop %v1990
    %v1992 = vsel %vm592, %v1989, 0.0
    %1993 = vadd.xlane.f32.xlu0 %v1992
    %v1994 = vpop.xlane.xlu0 %1993
    %v1995 = vsel %vm592, %v1991, 0.0
    %1996 = vadd.xlane.f32.xlu0 %v1995
    %v1997 = vpop.xlane.xlu0 %1996
    %v1998 = vrcp.pop %v1994
    %v1999 = vmul.f32 %v1989, %v1998
    %v2000 = vrcp.pop %v1997
    %v2001 = vmul.f32 %v1991, %v2000
    %v2003 = vsel %vm592, %v1999, 0
    %2005 = vmatprep.subr.mxu0 0.0
    %2006 = vmatpush1.msra.mxu0 0.0
    %2007 = vmatprep.subr.mxu0 0.0
    %2008 = vmatpush1.msra.mxu0 0.0
    %2009 = vmatprep.subr.mxu0 0.0
    %2010 = vmatpush1.msra.mxu0 0.0
    %2011 = vmatprep.subr.mxu0 0.0
    %2012 = vmatpush1.msra.mxu0 0.0
    %2013 = vmatprep.subr.mxu0 0.0
    %2014 = vmatpush1.msra.mxu0 0.0
    %2015 = vmatprep.subr.mxu0 0.0
    %2016 = vmatpush1.msra.mxu0 0.0
    %2017 = vmatprep.subr.mxu0 0.0
    %2018 = vmatpush1.msra.mxu0 0.0
    %2019 = vmatprep.subr.mxu0 0.0
    %2020 = vmatpush1.msra.mxu0 0.0
    %2021 = vmatprep.subr.mxu0 0.0
    %2022 = vmatpush1.msra.mxu0 0.0
    %2023 = vmatprep.subr.mxu0 0.0
    %2024 = vmatpush1.msra.mxu0 0.0
    %2025 = vmatprep.subr.mxu0 0.0
    %2026 = vmatpush1.msra.mxu0 0.0
    %2027 = vmatprep.subr.mxu0 0.0
    %2028 = vmatpush1.msra.mxu0 0.0
    %2029 = vmatprep.subr.mxu0 0.0
    %2030 = vmatpush1.msra.mxu0 0.0
    %2031 = vmatprep.subr.mxu0 0.0
    %2032 = vmatpush1.msra.mxu0 0.0
    %2033 = vmatprep.subr.mxu0 0.0
    %2034 = vmatpush1.msra.mxu0 0.0
    %2035 = vmatprep.subr.mxu0 0.0
    %2036 = vmatpush1.msra.mxu0 %v1818
    %2037 = vmatprep.subr.mxu0 0.0
    %2038 = vmatpush2.msra.mxu0 0.0
    %2039 = vmatprep.subr.mxu0 0.0
    %2040 = vmatpush2.msra.mxu0 0.0
    %2041 = vmatprep.subr.mxu0 0.0
    %2042 = vmatpush2.msra.mxu0 0.0
    %2043 = vmatprep.subr.mxu0 0.0
    %2044 = vmatpush2.msra.mxu0 0.0
    %2045 = vmatprep.subr.mxu0 0.0
    %2046 = vmatpush2.msra.mxu0 0.0
    %2047 = vmatprep.subr.mxu0 0.0
    %2048 = vmatpush2.msra.mxu0 0.0
    %2049 = vmatprep.subr.mxu0 0.0
    %2050 = vmatpush2.msra.mxu0 0.0
    %2051 = vmatprep.subr.mxu0 0.0
    %2052 = vmatpush2.msra.mxu0 0.0
    %2053 = vmatprep.subr.mxu0 0.0
    %2054 = vmatpush2.msra.mxu0 0.0
    %2055 = vmatprep.subr.mxu0 0.0
    %2056 = vmatpush2.msra.mxu0 0.0
    %2057 = vmatprep.subr.mxu0 0.0
    %2058 = vmatpush2.msra.mxu0 0.0
    %2059 = vmatprep.subr.mxu0 0.0
    %2060 = vmatpush2.msra.mxu0 0.0
    %2061 = vmatprep.subr.mxu0 0.0
    %2062 = vmatpush2.msra.mxu0 0.0
    %2063 = vmatprep.subr.mxu0 0.0
    %2064 = vmatpush2.msra.mxu0 0.0
    %2065 = vmatprep.subr.mxu0 0.0
    %2066 = vmatpush2.msra.mxu0 0.0
    %2067 = vmatprep.subr.mxu0 0.0
    %2068 = vmatpush2.msra.mxu0 0.0
    %2069 = vmatprep.mubr.f32.mxu0 0.0
    %2070 = vmatmul.mubr.f32.gmra.mxu0 %v2003
    %v2071 = vpop.f32.mrf.mxu0
    %v2072 = vadd.f32 0.0, %v2071
    %v2073 = vpop.f32.mrf.mxu0
    %2074 = vdwg.mxu0
    %v2076 = vsel %vm592, %v2001, 0
    %2078 = vmatprep.subr.mxu0 0.0
    %2079 = vmatpush1.msra.mxu0 0.0
    %2080 = vmatprep.subr.mxu0 0.0
    %2081 = vmatpush1.msra.mxu0 0.0
    %2082 = vmatprep.subr.mxu0 0.0
    %2083 = vmatpush1.msra.mxu0 0.0
    %2084 = vmatprep.subr.mxu0 0.0
    %2085 = vmatpush1.msra.mxu0 0.0
    %2086 = vmatprep.subr.mxu0 0.0
    %2087 = vmatpush1.msra.mxu0 0.0
    %2088 = vmatprep.subr.mxu0 0.0
    %2089 = vmatpush1.msra.mxu0 0.0
    %2090 = vmatprep.subr.mxu0 0.0
    %2091 = vmatpush1.msra.mxu0 0.0
    %2092 = vmatprep.subr.mxu0 0.0
    %2093 = vmatpush1.msra.mxu0 0.0
    %2094 = vmatprep.subr.mxu0 0.0
    %2095 = vmatpush1.msra.mxu0 0.0
    %2096 = vmatprep.subr.mxu0 0.0
    %2097 = vmatpush1.msra.mxu0 0.0
    %2098 = vmatprep.subr.mxu0 0.0
    %2099 = vmatpush1.msra.mxu0 0.0
    %2100 = vmatprep.subr.mxu0 0.0
    %2101 = vmatpush1.msra.mxu0 0.0
    %2102 = vmatprep.subr.mxu0 0.0
    %2103 = vmatpush1.msra.mxu0 0.0
    %2104 = vmatprep.subr.mxu0 0.0
    %2105 = vmatpush1.msra.mxu0 0.0
    %2106 = vmatprep.subr.mxu0 0.0
    %2107 = vmatpush1.msra.mxu0 0.0
    %2108 = vmatprep.subr.mxu0 0.0
    %2109 = vmatpush1.msra.mxu0 %v1821
    %2110 = vmatprep.subr.mxu0 0.0
    %2111 = vmatpush2.msra.mxu0 0.0
    %2112 = vmatprep.subr.mxu0 0.0
    %2113 = vmatpush2.msra.mxu0 0.0
    %2114 = vmatprep.subr.mxu0 0.0
    %2115 = vmatpush2.msra.mxu0 0.0
    %2116 = vmatprep.subr.mxu0 0.0
    %2117 = vmatpush2.msra.mxu0 0.0
    %2118 = vmatprep.subr.mxu0 0.0
    %2119 = vmatpush2.msra.mxu0 0.0
    %2120 = vmatprep.subr.mxu0 0.0
    %2121 = vmatpush2.msra.mxu0 0.0
    %2122 = vmatprep.subr.mxu0 0.0
    %2123 = vmatpush2.msra.mxu0 0.0
    %2124 = vmatprep.subr.mxu0 0.0
    %2125 = vmatpush2.msra.mxu0 0.0
    %2126 = vmatprep.subr.mxu0 0.0
    %2127 = vmatpush2.msra.mxu0 0.0
    %2128 = vmatprep.subr.mxu0 0.0
    %2129 = vmatpush2.msra.mxu0 0.0
    %2130 = vmatprep.subr.mxu0 0.0
    %2131 = vmatpush2.msra.mxu0 0.0
    %2132 = vmatprep.subr.mxu0 0.0
    %2133 = vmatpush2.msra.mxu0 0.0
    %2134 = vmatprep.subr.mxu0 0.0
    %2135 = vmatpush2.msra.mxu0 0.0
    %2136 = vmatprep.subr.mxu0 0.0
    %2137 = vmatpush2.msra.mxu0 0.0
    %2138 = vmatprep.subr.mxu0 0.0
    %2139 = vmatpush2.msra.mxu0 0.0
    %2140 = vmatprep.subr.mxu0 0.0
    %2141 = vmatpush2.msra.mxu0 0.0
    %2142 = vmatprep.mubr.f32.mxu0 0.0
    %2143 = vmatmul.mubr.f32.gmra.mxu0 %v2076
    %v2144 = vpop.f32.mrf.mxu0
    %v2145 = vadd.f32 0.0, %v2144
    %v2146 = vpop.f32.mrf.mxu0
    %2147 = vdwg.mxu0
    %v2148 = vld [vmem:[#allocation5 + $0x120] sm:$0xf]
    %v2149 = vld [vmem:[#allocation5 + $0x124] sm:$0xf]
    %v2150 = vpack.c.bf16 %v2145, %v2072
    %v2151 = vld [vmem:[#allocation5 + $0xd0] sm:$0xf]
    %v2152 = vld [vmem:[#allocation5 + $0xd4] sm:$0xf]
    %v2153 = vld [vmem:[#allocation5 + $0xd8] sm:$0xf]
    %v2154 = vld [vmem:[#allocation5 + $0xdc] sm:$0xf]
    %v2155 = vld [vmem:[#allocation7 + $0x1b] sm:$0x1]
    %v2156 = vlaneseq
    %v2157 = vshrl.u32 %v2156, 7
    %v2158 = vsub.s32 0, %v2157
    %v2159 = vrot.slane %v2155, %v2158
    %v2164 = vunpack.c.l.b16 %v2151
    %v2165 = vunpack.c.l.b16 %v2152
    %v2166 = vunpack.c.l.b16 %v2153
    %v2167 = vunpack.c.l.b16 %v2154
    %v2168 = vpack.c.b16 %v2165, %v2164
    %v2169 = vpack.c.b16 %v2167, %v2166
    %2172 = vmatprep.subr.bf16.mxu0 0
    %2173 = vmatpush1.bf16.msra.mxu0 0
    %2174 = vmatprep.subr.bf16.mxu0 0
    %2175 = vmatpush1.bf16.msra.mxu0 0
    %2176 = vmatprep.subr.bf16.mxu0 0
    %2177 = vmatpush1.bf16.msra.mxu0 0
    %2178 = vmatprep.subr.bf16.mxu0 0
    %2179 = vmatpush1.bf16.msra.mxu0 0
    %2180 = vmatprep.subr.bf16.mxu0 0
    %2181 = vmatpush1.bf16.msra.mxu0 0
    %2182 = vmatprep.subr.bf16.mxu0 0
    %2183 = vmatpush1.bf16.msra.mxu0 0
    %2184 = vmatprep.subr.bf16.mxu0 0
    %2185 = vmatpush1.bf16.msra.mxu0 %v2169
    %2186 = vmatprep.subr.bf16.mxu0 0
    %2187 = vmatpush1.bf16.msra.mxu0 %v2168
    %2188 = vmatprep.subr.bf16.mxu0 0
    %2189 = vmatpush2.bf16.msra.mxu0 0
    %2190 = vmatprep.subr.bf16.mxu0 0
    %2191 = vmatpush2.bf16.msra.mxu0 0
    %2192 = vmatprep.subr.bf16.mxu0 0
    %2193 = vmatpush2.bf16.msra.mxu0 0
    %2194 = vmatprep.subr.bf16.mxu0 0
    %2195 = vmatpush2.bf16.msra.mxu0 0
    %2196 = vmatprep.subr.bf16.mxu0 0
    %2197 = vmatpush2.bf16.msra.mxu0 0
    %2198 = vmatprep.subr.bf16.mxu0 0
    %2199 = vmatpush2.bf16.msra.mxu0 0
    %2200 = vmatprep.subr.bf16.mxu0 0
    %2201 = vmatpush2.bf16.msra.mxu0 0
    %2202 = vmatprep.subr.bf16.mxu0 0
    %2203 = vmatpush2.bf16.msra.mxu0 0
    %2204 = vmatprep.mubr.bf16.mxu0 0
    %2205 = vmatmul.mubr.bf16.gmra.mxu0 %v1657
    %v2206 = vpop.f32.mrf.mxu0
    %v2207 = vadd.f32 %v2159, %v2206
    %v2208 = vpop.f32.mrf.mxu0
    %v2209 = vpop.f32.mrf.mxu0
    %v2210 = vadd.f32 %v2159, %v2209
    %v2211 = vpop.f32.mrf.mxu0
    %2212 = vdwg.mxu0
    %v2213 = vld [vmem:[#allocation5 + $0xf0] sm:$0xf]
    %v2214 = vld [vmem:[#allocation5 + $0xf4] sm:$0xf]
    %v2215 = vld [vmem:[#allocation5 + $0xf8] sm:$0xf]
    %v2216 = vld [vmem:[#allocation5 + $0xfc] sm:$0xf]
    %v2217 = vld [vmem:[#allocation7 + $0x1d] sm:$0x1]
    %v2218 = vlaneseq
    %v2219 = vshrl.u32 %v2218, 7
    %v2220 = vsub.s32 0, %v2219
    %v2221 = vrot.slane %v2217, %v2220
    %v2226 = vunpack.c.l.b16 %v2213
    %v2227 = vunpack.c.l.b16 %v2214
    %v2228 = vunpack.c.l.b16 %v2215
    %v2229 = vunpack.c.l.b16 %v2216
    %v2230 = vpack.c.b16 %v2227, %v2226
    %v2231 = vpack.c.b16 %v2229, %v2228
    %2234 = vmatprep.subr.bf16.mxu0 0
    %2235 = vmatpush1.bf16.msra.mxu0 0
    %2236 = vmatprep.subr.bf16.mxu0 0
    %2237 = vmatpush1.bf16.msra.mxu0 0
    %2238 = vmatprep.subr.bf16.mxu0 0
    %2239 = vmatpush1.bf16.msra.mxu0 0
    %2240 = vmatprep.subr.bf16.mxu0 0
    %2241 = vmatpush1.bf16.msra.mxu0 0
    %2242 = vmatprep.subr.bf16.mxu0 0
    %2243 = vmatpush1.bf16.msra.mxu0 0
    %2244 = vmatprep.subr.bf16.mxu0 0
    %2245 = vmatpush1.bf16.msra.mxu0 0
    %2246 = vmatprep.subr.bf16.mxu0 0
    %2247 = vmatpush1.bf16.msra.mxu0 %v2231
    %2248 = vmatprep.subr.bf16.mxu0 0
    %2249 = vmatpush1.bf16.msra.mxu0 %v2230
    %2250 = vmatprep.subr.bf16.mxu0 0
    %2251 = vmatpush2.bf16.msra.mxu0 0
    %2252 = vmatprep.subr.bf16.mxu0 0
    %2253 = vmatpush2.bf16.msra.mxu0 0
    %2254 = vmatprep.subr.bf16.mxu0 0
    %2255 = vmatpush2.bf16.msra.mxu0 0
    %2256 = vmatprep.subr.bf16.mxu0 0
    %2257 = vmatpush2.bf16.msra.mxu0 0
    %2258 = vmatprep.subr.bf16.mxu0 0
    %2259 = vmatpush2.bf16.msra.mxu0 0
    %2260 = vmatprep.subr.bf16.mxu0 0
    %2261 = vmatpush2.bf16.msra.mxu0 0
    %2262 = vmatprep.subr.bf16.mxu0 0
    %2263 = vmatpush2.bf16.msra.mxu0 0
    %2264 = vmatprep.subr.bf16.mxu0 0
    %2265 = vmatpush2.bf16.msra.mxu0 0
    %2266 = vmatprep.mubr.bf16.mxu0 0
    %2267 = vmatmul.mubr.bf16.gmra.mxu0 %v1657
    %v2268 = vpop.f32.mrf.mxu0
    %v2269 = vadd.f32 %v2221, %v2268
    %v2270 = vpop.f32.mrf.mxu0
    %v2271 = vpop.f32.mrf.mxu0
    %v2272 = vadd.f32 %v2221, %v2271
    %v2273 = vpop.f32.mrf.mxu0
    %2274 = vdwg.mxu0
    %v2275 = vld [vmem:[#allocation5 + $0x110] sm:$0xf]
    %v2276 = vld [vmem:[#allocation5 + $0x114] sm:$0xf]
    %v2277 = vld [vmem:[#allocation5 + $0x118] sm:$0xf]
    %v2278 = vld [vmem:[#allocation5 + $0x11c] sm:$0xf]
    %v2279 = vld [vmem:[#allocation7 + $0x1f] sm:$0x1]
    %v2280 = vlaneseq
    %v2281 = vshrl.u32 %v2280, 7
    %v2282 = vsub.s32 0, %v2281
    %v2283 = vrot.slane %v2279, %v2282
    %v2288 = vunpack.c.l.b16 %v2275
    %v2289 = vunpack.c.l.b16 %v2276
    %v2290 = vunpack.c.l.b16 %v2277
    %v2291 = vunpack.c.l.b16 %v2278
    %v2292 = vpack.c.b16 %v2289, %v2288
    %v2293 = vpack.c.b16 %v2291, %v2290
    %2296 = vmatprep.subr.bf16.mxu0 0
    %2297 = vmatpush1.bf16.msra.mxu0 0
    %2298 = vmatprep.subr.bf16.mxu0 0
    %2299 = vmatpush1.bf16.msra.mxu0 0
    %2300 = vmatprep.subr.bf16.mxu0 0
    %2301 = vmatpush1.bf16.msra.mxu0 0
    %2302 = vmatprep.subr.bf16.mxu0 0
    %2303 = vmatpush1.bf16.msra.mxu0 0
    %2304 = vmatprep.subr.bf16.mxu0 0
    %2305 = vmatpush1.bf16.msra.mxu0 0
    %2306 = vmatprep.subr.bf16.mxu0 0
    %2307 = vmatpush1.bf16.msra.mxu0 0
    %2308 = vmatprep.subr.bf16.mxu0 0
    %2309 = vmatpush1.bf16.msra.mxu0 %v2293
    %2310 = vmatprep.subr.bf16.mxu0 0
    %2311 = vmatpush1.bf16.msra.mxu0 %v2292
    %2312 = vmatprep.subr.bf16.mxu0 0
    %2313 = vmatpush2.bf16.msra.mxu0 0
    %2314 = vmatprep.subr.bf16.mxu0 0
    %2315 = vmatpush2.bf16.msra.mxu0 0
    %2316 = vmatprep.subr.bf16.mxu0 0
    %2317 = vmatpush2.bf16.msra.mxu0 0
    %2318 = vmatprep.subr.bf16.mxu0 0
    %2319 = vmatpush2.bf16.msra.mxu0 0
    %2320 = vmatprep.subr.bf16.mxu0 0
    %2321 = vmatpush2.bf16.msra.mxu0 0
    %2322 = vmatprep.subr.bf16.mxu0 0
    %2323 = vmatpush2.bf16.msra.mxu0 0
    %2324 = vmatprep.subr.bf16.mxu0 0
    %2325 = vmatpush2.bf16.msra.mxu0 0
    %2326 = vmatprep.subr.bf16.mxu0 0
    %2327 = vmatpush2.bf16.msra.mxu0 0
    %2328 = vmatprep.mubr.bf16.mxu0 0
    %2329 = vmatmul.mubr.bf16.gmra.mxu0 %v1657
    %v2330 = vpop.f32.mrf.mxu0
    %v2331 = vadd.f32 %v2283, %v2330
    %v2332 = vpop.f32.mrf.mxu0
    %v2333 = vpop.f32.mrf.mxu0
    %v2334 = vadd.f32 %v2283, %v2333
    %v2335 = vpop.f32.mrf.mxu0
    %2336 = vdwg.mxu0
    %v2338 = vsel %vm425, %v2207, 0
    %v2341 = vsel %vm425, %v2269, 0
    %2343 = vmatprep.subr.mxu0 0.0
    %2344 = vmatpush1.xpose.msra.mxu0 0.0
    %2345 = vmatprep.subr.mxu0 0.0
    %2346 = vmatpush1.xpose.msra.mxu0 0.0
    %2347 = vmatprep.subr.mxu0 0.0
    %2348 = vmatpush1.xpose.msra.mxu0 0.0
    %2349 = vmatprep.subr.mxu0 0.0
    %2350 = vmatpush1.xpose.msra.mxu0 0.0
    %2351 = vmatprep.subr.mxu0 0.0
    %2352 = vmatpush1.xpose.msra.mxu0 0.0
    %2353 = vmatprep.subr.mxu0 0.0
    %2354 = vmatpush1.xpose.msra.mxu0 0.0
    %2355 = vmatprep.subr.mxu0 0.0
    %2356 = vmatpush1.xpose.msra.mxu0 0.0
    %2357 = vmatprep.subr.mxu0 0.0
    %2358 = vmatpush1.xpose.msra.mxu0 0.0
    %2359 = vmatprep.subr.mxu0 0.0
    %2360 = vmatpush1.xpose.msra.mxu0 0.0
    %2361 = vmatprep.subr.mxu0 0.0
    %2362 = vmatpush1.xpose.msra.mxu0 0.0
    %2363 = vmatprep.subr.mxu0 0.0
    %2364 = vmatpush1.xpose.msra.mxu0 0.0
    %2365 = vmatprep.subr.mxu0 0.0
    %2366 = vmatpush1.xpose.msra.mxu0 0.0
    %2367 = vmatprep.subr.mxu0 0.0
    %2368 = vmatpush1.xpose.msra.mxu0 0.0
    %2369 = vmatprep.subr.mxu0 0.0
    %2370 = vmatpush1.xpose.msra.mxu0 0.0
    %2371 = vmatprep.subr.mxu0 0.0
    %2372 = vmatpush1.xpose.msra.mxu0 0.0
    %2373 = vmatprep.subr.mxu0 0.0
    %2374 = vmatpush1.xpose.msra.mxu0 %v2341
    %2375 = vmatprep.subr.mxu0 0.0
    %2376 = vmatpush2.xpose.msra.mxu0 0.0
    %2377 = vmatprep.subr.mxu0 0.0
    %2378 = vmatpush2.xpose.msra.mxu0 0.0
    %2379 = vmatprep.subr.mxu0 0.0
    %2380 = vmatpush2.xpose.msra.mxu0 0.0
    %2381 = vmatprep.subr.mxu0 0.0
    %2382 = vmatpush2.xpose.msra.mxu0 0.0
    %2383 = vmatprep.subr.mxu0 0.0
    %2384 = vmatpush2.xpose.msra.mxu0 0.0
    %2385 = vmatprep.subr.mxu0 0.0
    %2386 = vmatpush2.xpose.msra.mxu0 0.0
    %2387 = vmatprep.subr.mxu0 0.0
    %2388 = vmatpush2.xpose.msra.mxu0 0.0
    %2389 = vmatprep.subr.mxu0 0.0
    %2390 = vmatpush2.xpose.msra.mxu0 0.0
    %2391 = vmatprep.subr.mxu0 0.0
    %2392 = vmatpush2.xpose.msra.mxu0 0.0
    %2393 = vmatprep.subr.mxu0 0.0
    %2394 = vmatpush2.xpose.msra.mxu0 0.0
    %2395 = vmatprep.subr.mxu0 0.0
    %2396 = vmatpush2.xpose.msra.mxu0 0.0
    %2397 = vmatprep.subr.mxu0 0.0
    %2398 = vmatpush2.xpose.msra.mxu0 0.0
    %2399 = vmatprep.subr.mxu0 0.0
    %2400 = vmatpush2.xpose.msra.mxu0 0.0
    %2401 = vmatprep.subr.mxu0 0.0
    %2402 = vmatpush2.xpose.msra.mxu0 0.0
    %2403 = vmatprep.subr.mxu0 0.0
    %2404 = vmatpush2.xpose.msra.mxu0 0.0
    %2405 = vmatprep.subr.mxu0 0.0
    %2406 = vmatpush2.xpose.msra.mxu0 0.0
    %2407 = vmatprep.mubr.f32.mxu0 0.0
    %2408 = vmatmul.mubr.f32.gmra.mxu0 %v2338
    %v2409 = vpop.f32.mrf.mxu0
    %v2410 = vadd.f32 0.0, %v2409
    %v2411 = vpop.f32.mrf.mxu0
    %2412 = vdwg.mxu0
    %v2414 = vsel %vm425, %v2210, 0
    %v2417 = vsel %vm425, %v2272, 0
    %2419 = vmatprep.subr.mxu0 0.0
    %2420 = vmatpush1.xpose.msra.mxu0 0.0
    %2421 = vmatprep.subr.mxu0 0.0
    %2422 = vmatpush1.xpose.msra.mxu0 0.0
    %2423 = vmatprep.subr.mxu0 0.0
    %2424 = vmatpush1.xpose.msra.mxu0 0.0
    %2425 = vmatprep.subr.mxu0 0.0
    %2426 = vmatpush1.xpose.msra.mxu0 0.0
    %2427 = vmatprep.subr.mxu0 0.0
    %2428 = vmatpush1.xpose.msra.mxu0 0.0
    %2429 = vmatprep.subr.mxu0 0.0
    %2430 = vmatpush1.xpose.msra.mxu0 0.0
    %2431 = vmatprep.subr.mxu0 0.0
    %2432 = vmatpush1.xpose.msra.mxu0 0.0
    %2433 = vmatprep.subr.mxu0 0.0
    %2434 = vmatpush1.xpose.msra.mxu0 0.0
    %2435 = vmatprep.subr.mxu0 0.0
    %2436 = vmatpush1.xpose.msra.mxu0 0.0
    %2437 = vmatprep.subr.mxu0 0.0
    %2438 = vmatpush1.xpose.msra.mxu0 0.0
    %2439 = vmatprep.subr.mxu0 0.0
    %2440 = vmatpush1.xpose.msra.mxu0 0.0
    %2441 = vmatprep.subr.mxu0 0.0
    %2442 = vmatpush1.xpose.msra.mxu0 0.0
    %2443 = vmatprep.subr.mxu0 0.0
    %2444 = vmatpush1.xpose.msra.mxu0 0.0
    %2445 = vmatprep.subr.mxu0 0.0
    %2446 = vmatpush1.xpose.msra.mxu0 0.0
    %2447 = vmatprep.subr.mxu0 0.0
    %2448 = vmatpush1.xpose.msra.mxu0 0.0
    %2449 = vmatprep.subr.mxu0 0.0
    %2450 = vmatpush1.xpose.msra.mxu0 %v2417
    %2451 = vmatprep.subr.mxu0 0.0
    %2452 = vmatpush2.xpose.msra.mxu0 0.0
    %2453 = vmatprep.subr.mxu0 0.0
    %2454 = vmatpush2.xpose.msra.mxu0 0.0
    %2455 = vmatprep.subr.mxu0 0.0
    %2456 = vmatpush2.xpose.msra.mxu0 0.0
    %2457 = vmatprep.subr.mxu0 0.0
    %2458 = vmatpush2.xpose.msra.mxu0 0.0
    %2459 = vmatprep.subr.mxu0 0.0
    %2460 = vmatpush2.xpose.msra.mxu0 0.0
    %2461 = vmatprep.subr.mxu0 0.0
    %2462 = vmatpush2.xpose.msra.mxu0 0.0
    %2463 = vmatprep.subr.mxu0 0.0
    %2464 = vmatpush2.xpose.msra.mxu0 0.0
    %2465 = vmatprep.subr.mxu0 0.0
    %2466 = vmatpush2.xpose.msra.mxu0 0.0
    %2467 = vmatprep.subr.mxu0 0.0
    %2468 = vmatpush2.xpose.msra.mxu0 0.0
    %2469 = vmatprep.subr.mxu0 0.0
    %2470 = vmatpush2.xpose.msra.mxu0 0.0
    %2471 = vmatprep.subr.mxu0 0.0
    %2472 = vmatpush2.xpose.msra.mxu0 0.0
    %2473 = vmatprep.subr.mxu0 0.0
    %2474 = vmatpush2.xpose.msra.mxu0 0.0
    %2475 = vmatprep.subr.mxu0 0.0
    %2476 = vmatpush2.xpose.msra.mxu0 0.0
    %2477 = vmatprep.subr.mxu0 0.0
    %2478 = vmatpush2.xpose.msra.mxu0 0.0
    %2479 = vmatprep.subr.mxu0 0.0
    %2480 = vmatpush2.xpose.msra.mxu0 0.0
    %2481 = vmatprep.subr.mxu0 0.0
    %2482 = vmatpush2.xpose.msra.mxu0 0.0
    %2483 = vmatprep.mubr.f32.mxu0 0.0
    %2484 = vmatmul.mubr.f32.gmra.mxu0 %v2414
    %v2485 = vpop.f32.mrf.mxu0
    %v2486 = vadd.f32 0.0, %v2485
    %v2487 = vpop.f32.mrf.mxu0
    %2488 = vdwg.mxu0
    %v2489 = vmul.f32 %v2410, 0.25
    %v2490 = vmul.f32 %v2486, 0.25
    %v2491 = vadd.f32 %v2489, %v583
    %v2492 = vadd.f32 %v2490, %v587
    %v2493 = vsel %vm592, %v2491, -inf
    %2494 = vmax.xlane.f32.xlu0 %v2493
    %v2495 = vpop.xlane.xlu0 %2494
    %v2496 = vsel %vm592, %v2492, -inf
    %2497 = vmax.xlane.f32.xlu0 %v2496
    %v2498 = vpop.xlane.xlu0 %2497
    %v2499 = vsub.f32 %v2491, %v2495
    %v2500 = vsub.f32 %v2492, %v2498
    %v2501 = vmul.f32 %v2499, 1.442695
    %v2502 = vpow.pop %v2501
    %v2503 = vmul.f32 %v2500, 1.442695
    %v2504 = vpow.pop %v2503
    %v2505 = vsel %vm592, %v2502, 0.0
    %2506 = vadd.xlane.f32.xlu0 %v2505
    %v2507 = vpop.xlane.xlu0 %2506
    %v2508 = vsel %vm592, %v2504, 0.0
    %2509 = vadd.xlane.f32.xlu0 %v2508
    %v2510 = vpop.xlane.xlu0 %2509
    %v2511 = vrcp.pop %v2507
    %v2512 = vmul.f32 %v2502, %v2511
    %v2513 = vrcp.pop %v2510
    %v2514 = vmul.f32 %v2504, %v2513
    %v2516 = vsel %vm592, %v2512, 0
    %2518 = vmatprep.subr.mxu0 0.0
    %2519 = vmatpush1.msra.mxu0 0.0
    %2520 = vmatprep.subr.mxu0 0.0
    %2521 = vmatpush1.msra.mxu0 0.0
    %2522 = vmatprep.subr.mxu0 0.0
    %2523 = vmatpush1.msra.mxu0 0.0
    %2524 = vmatprep.subr.mxu0 0.0
    %2525 = vmatpush1.msra.mxu0 0.0
    %2526 = vmatprep.subr.mxu0 0.0
    %2527 = vmatpush1.msra.mxu0 0.0
    %2528 = vmatprep.subr.mxu0 0.0
    %2529 = vmatpush1.msra.mxu0 0.0
    %2530 = vmatprep.subr.mxu0 0.0
    %2531 = vmatpush1.msra.mxu0 0.0
    %2532 = vmatprep.subr.mxu0 0.0
    %2533 = vmatpush1.msra.mxu0 0.0
    %2534 = vmatprep.subr.mxu0 0.0
    %2535 = vmatpush1.msra.mxu0 0.0
    %2536 = vmatprep.subr.mxu0 0.0
    %2537 = vmatpush1.msra.mxu0 0.0
    %2538 = vmatprep.subr.mxu0 0.0
    %2539 = vmatpush1.msra.mxu0 0.0
    %2540 = vmatprep.subr.mxu0 0.0
    %2541 = vmatpush1.msra.mxu0 0.0
    %2542 = vmatprep.subr.mxu0 0.0
    %2543 = vmatpush1.msra.mxu0 0.0
    %2544 = vmatprep.subr.mxu0 0.0
    %2545 = vmatpush1.msra.mxu0 0.0
    %2546 = vmatprep.subr.mxu0 0.0
    %2547 = vmatpush1.msra.mxu0 0.0
    %2548 = vmatprep.subr.mxu0 0.0
    %2549 = vmatpush1.msra.mxu0 %v2331
    %2550 = vmatprep.subr.mxu0 0.0
    %2551 = vmatpush2.msra.mxu0 0.0
    %2552 = vmatprep.subr.mxu0 0.0
    %2553 = vmatpush2.msra.mxu0 0.0
    %2554 = vmatprep.subr.mxu0 0.0
    %2555 = vmatpush2.msra.mxu0 0.0
    %2556 = vmatprep.subr.mxu0 0.0
    %2557 = vmatpush2.msra.mxu0 0.0
    %2558 = vmatprep.subr.mxu0 0.0
    %2559 = vmatpush2.msra.mxu0 0.0
    %2560 = vmatprep.subr.mxu0 0.0
    %2561 = vmatpush2.msra.mxu0 0.0
    %2562 = vmatprep.subr.mxu0 0.0
    %2563 = vmatpush2.msra.mxu0 0.0
    %2564 = vmatprep.subr.mxu0 0.0
    %2565 = vmatpush2.msra.mxu0 0.0
    %2566 = vmatprep.subr.mxu0 0.0
    %2567 = vmatpush2.msra.mxu0 0.0
    %2568 = vmatprep.subr.mxu0 0.0
    %2569 = vmatpush2.msra.mxu0 0.0
    %2570 = vmatprep.subr.mxu0 0.0
    %2571 = vmatpush2.msra.mxu0 0.0
    %2572 = vmatprep.subr.mxu0 0.0
    %2573 = vmatpush2.msra.mxu0 0.0
    %2574 = vmatprep.subr.mxu0 0.0
    %2575 = vmatpush2.msra.mxu0 0.0
    %2576 = vmatprep.subr.mxu0 0.0
    %2577 = vmatpush2.msra.mxu0 0.0
    %2578 = vmatprep.subr.mxu0 0.0
    %2579 = vmatpush2.msra.mxu0 0.0
    %2580 = vmatprep.subr.mxu0 0.0
    %2581 = vmatpush2.msra.mxu0 0.0
    %2582 = vmatprep.mubr.f32.mxu0 0.0
    %2583 = vmatmul.mubr.f32.gmra.mxu0 %v2516
    %v2584 = vpop.f32.mrf.mxu0
    %v2585 = vadd.f32 0.0, %v2584
    %v2586 = vpop.f32.mrf.mxu0
    %2587 = vdwg.mxu0
    %v2589 = vsel %vm592, %v2514, 0
    %2591 = vmatprep.subr.mxu0 0.0
    %2592 = vmatpush1.msra.mxu0 0.0
    %2593 = vmatprep.subr.mxu0 0.0
    %2594 = vmatpush1.msra.mxu0 0.0
    %2595 = vmatprep.subr.mxu0 0.0
    %2596 = vmatpush1.msra.mxu0 0.0
    %2597 = vmatprep.subr.mxu0 0.0
    %2598 = vmatpush1.msra.mxu0 0.0
    %2599 = vmatprep.subr.mxu0 0.0
    %2600 = vmatpush1.msra.mxu0 0.0
    %2601 = vmatprep.subr.mxu0 0.0
    %2602 = vmatpush1.msra.mxu0 0.0
    %2603 = vmatprep.subr.mxu0 0.0
    %2604 = vmatpush1.msra.mxu0 0.0
    %2605 = vmatprep.subr.mxu0 0.0
    %2606 = vmatpush1.msra.mxu0 0.0
    %2607 = vmatprep.subr.mxu0 0.0
    %2608 = vmatpush1.msra.mxu0 0.0
    %2609 = vmatprep.subr.mxu0 0.0
    %2610 = vmatpush1.msra.mxu0 0.0
    %2611 = vmatprep.subr.mxu0 0.0
    %2612 = vmatpush1.msra.mxu0 0.0
    %2613 = vmatprep.subr.mxu0 0.0
    %2614 = vmatpush1.msra.mxu0 0.0
    %2615 = vmatprep.subr.mxu0 0.0
    %2616 = vmatpush1.msra.mxu0 0.0
    %2617 = vmatprep.subr.mxu0 0.0
    %2618 = vmatpush1.msra.mxu0 0.0
    %2619 = vmatprep.subr.mxu0 0.0
    %2620 = vmatpush1.msra.mxu0 0.0
    %2621 = vmatprep.subr.mxu0 0.0
    %2622 = vmatpush1.msra.mxu0 %v2334
    %2623 = vmatprep.subr.mxu0 0.0
    %2624 = vmatpush2.msra.mxu0 0.0
    %2625 = vmatprep.subr.mxu0 0.0
    %2626 = vmatpush2.msra.mxu0 0.0
    %2627 = vmatprep.subr.mxu0 0.0
    %2628 = vmatpush2.msra.mxu0 0.0
    %2629 = vmatprep.subr.mxu0 0.0
    %2630 = vmatpush2.msra.mxu0 0.0
    %2631 = vmatprep.subr.mxu0 0.0
    %2632 = vmatpush2.msra.mxu0 0.0
    %2633 = vmatprep.subr.mxu0 0.0
    %2634 = vmatpush2.msra.mxu0 0.0
    %2635 = vmatprep.subr.mxu0 0.0
    %2636 = vmatpush2.msra.mxu0 0.0
    %2637 = vmatprep.subr.mxu0 0.0
    %2638 = vmatpush2.msra.mxu0 0.0
    %2639 = vmatprep.subr.mxu0 0.0
    %2640 = vmatpush2.msra.mxu0 0.0
    %2641 = vmatprep.subr.mxu0 0.0
    %2642 = vmatpush2.msra.mxu0 0.0
    %2643 = vmatprep.subr.mxu0 0.0
    %2644 = vmatpush2.msra.mxu0 0.0
    %2645 = vmatprep.subr.mxu0 0.0
    %2646 = vmatpush2.msra.mxu0 0.0
    %2647 = vmatprep.subr.mxu0 0.0
    %2648 = vmatpush2.msra.mxu0 0.0
    %2649 = vmatprep.subr.mxu0 0.0
    %2650 = vmatpush2.msra.mxu0 0.0
    %2651 = vmatprep.subr.mxu0 0.0
    %2652 = vmatpush2.msra.mxu0 0.0
    %2653 = vmatprep.subr.mxu0 0.0
    %2654 = vmatpush2.msra.mxu0 0.0
    %2655 = vmatprep.mubr.f32.mxu0 0.0
    %2656 = vmatmul.mubr.f32.gmra.mxu0 %v2589
    %v2657 = vpop.f32.mrf.mxu0
    %v2658 = vadd.f32 0.0, %v2657
    %v2659 = vpop.f32.mrf.mxu0
    %2660 = vdwg.mxu0
    %v2661 = vld [vmem:[#allocation5 + $0x128] sm:$0xf]
    %v2662 = vld [vmem:[#allocation5 + $0x12c] sm:$0xf]
    %v2663 = vpack.c.bf16 %v2658, %v2585
    %v2666 = vunpack.c.l.b16 %v2661
    %v2667 = vunpack.c.l.b16 %v2662
    %v2668 = vpack.c.b16 %v2667, %v2666
    %v2671 = vsel %vm425, %v2663, 0
    %2673 = vmatprep.subr.bf16.mxu0 0
    %2674 = vmatpush1.bf16.msra.mxu0 0
    %2675 = vmatprep.subr.bf16.mxu0 0
    %2676 = vmatpush1.bf16.msra.mxu0 0
    %2677 = vmatprep.subr.bf16.mxu0 0
    %2678 = vmatpush1.bf16.msra.mxu0 0
    %2679 = vmatprep.subr.bf16.mxu0 0
    %2680 = vmatpush1.bf16.msra.mxu0 0
    %2681 = vmatprep.subr.bf16.mxu0 0
    %2682 = vmatpush1.bf16.msra.mxu0 0
    %2683 = vmatprep.subr.bf16.mxu0 0
    %2684 = vmatpush1.bf16.msra.mxu0 0
    %2685 = vmatprep.subr.bf16.mxu0 0
    %2686 = vmatpush1.bf16.msra.mxu0 0
    %2687 = vmatprep.subr.bf16.mxu0 0
    %2688 = vmatpush1.bf16.msra.mxu0 %v2668
    %2689 = vmatprep.subr.bf16.mxu0 0
    %2690 = vmatpush2.bf16.msra.mxu0 0
    %2691 = vmatprep.subr.bf16.mxu0 0
    %2692 = vmatpush2.bf16.msra.mxu0 0
    %2693 = vmatprep.subr.bf16.mxu0 0
    %2694 = vmatpush2.bf16.msra.mxu0 0
    %2695 = vmatprep.subr.bf16.mxu0 0
    %2696 = vmatpush2.bf16.msra.mxu0 0
    %2697 = vmatprep.subr.bf16.mxu0 0
    %2698 = vmatpush2.bf16.msra.mxu0 0
    %2699 = vmatprep.subr.bf16.mxu0 0
    %2700 = vmatpush2.bf16.msra.mxu0 0
    %2701 = vmatprep.subr.bf16.mxu0 0
    %2702 = vmatpush2.bf16.msra.mxu0 0
    %2703 = vmatprep.subr.bf16.mxu0 0
    %2704 = vmatpush2.bf16.msra.mxu0 0
    %2705 = vmatprep.mubr.bf16.mxu0 0
    %2706 = vmatmul.mubr.bf16.gmra.mxu0 %v2671
    %v2707 = vpop.f32.mrf.mxu0
    %v2708 = vadd.f32 0.0, %v2707
    %v2709 = vpop.f32.mrf.mxu0
    %v2710 = vpop.f32.mrf.mxu0
    %v2711 = vadd.f32 0.0, %v2710
    %v2712 = vpop.f32.mrf.mxu0
    %2713 = vdwg.mxu0
    %v2716 = vunpack.c.l.b16 %v2148
    %v2717 = vunpack.c.l.b16 %v2149
    %v2718 = vpack.c.b16 %v2717, %v2716
    %v2721 = vsel %vm425, %v2150, 0
    %2723 = vmatprep.subr.bf16.mxu0 0
    %2724 = vmatpush1.bf16.msra.mxu0 0
    %2725 = vmatprep.subr.bf16.mxu0 0
    %2726 = vmatpush1.bf16.msra.mxu0 0
    %2727 = vmatprep.subr.bf16.mxu0 0
    %2728 = vmatpush1.bf16.msra.mxu0 0
    %2729 = vmatprep.subr.bf16.mxu0 0
    %2730 = vmatpush1.bf16.msra.mxu0 0
    %2731 = vmatprep.subr.bf16.mxu0 0
    %2732 = vmatpush1.bf16.msra.mxu0 0
    %2733 = vmatprep.subr.bf16.mxu0 0
    %2734 = vmatpush1.bf16.msra.mxu0 0
    %2735 = vmatprep.subr.bf16.mxu0 0
    %2736 = vmatpush1.bf16.msra.mxu0 0
    %2737 = vmatprep.subr.bf16.mxu0 0
    %2738 = vmatpush1.bf16.msra.mxu0 %v2718
    %2739 = vmatprep.subr.bf16.mxu0 0
    %2740 = vmatpush2.bf16.msra.mxu0 0
    %2741 = vmatprep.subr.bf16.mxu0 0
    %2742 = vmatpush2.bf16.msra.mxu0 0
    %2743 = vmatprep.subr.bf16.mxu0 0
    %2744 = vmatpush2.bf16.msra.mxu0 0
    %2745 = vmatprep.subr.bf16.mxu0 0
    %2746 = vmatpush2.bf16.msra.mxu0 0
    %2747 = vmatprep.subr.bf16.mxu0 0
    %2748 = vmatpush2.bf16.msra.mxu0 0
    %2749 = vmatprep.subr.bf16.mxu0 0
    %2750 = vmatpush2.bf16.msra.mxu0 0
    %2751 = vmatprep.subr.bf16.mxu0 0
    %2752 = vmatpush2.bf16.msra.mxu0 0
    %2753 = vmatprep.subr.bf16.mxu0 0
    %2754 = vmatpush2.bf16.msra.mxu0 0
    %2755 = vmatprep.mubr.bf16.mxu0 0
    %2756 = vmatmul.mubr.bf16.gmra.mxu0 %v2721
    %v2757 = vpop.f32.mrf.mxu0
    %v2758 = vadd.f32 %v2708, %v2757
    %v2759 = vpop.f32.mrf.mxu0
    %v2760 = vpop.f32.mrf.mxu0
    %v2761 = vadd.f32 %v2711, %v2760
    %v2762 = vpop.f32.mrf.mxu0
    %2763 = vdwg.mxu0
    %v2764 = vld [vmem:[#allocation7 + $0x20] sm:$0x1]
    %v2765 = vlaneseq
    %v2766 = vshrl.u32 %v2765, 7
    %v2767 = vsub.s32 0, %v2766
    %v2768 = vrot.slane %v2764, %v2767
    %v2769 = vadd.f32 %v2758, %v2768
    %v2770 = vadd.f32 %v2761, %v2768
    %v2771 = vadd.f32 %v1632, %v2769
    %v2772 = vadd.f32 %v1633, %v2770
    %v2773 = vld [vmem:[#allocation7 + $0x23] sm:$0x1]
    %v2774 = vld [vmem:[#allocation7 + $0x24] sm:$0x1]
    %v2775 = vsel %vm170, %v2771, 0.0
    %2776 = vadd.xlane.f32.xlu0 %v2775
    %v2777 = vpop.xlane.xlu0 %2776
    %v2778 = vsel %vm170, %v2772, 0.0
    %2779 = vadd.xlane.f32.xlu0 %v2778
    %v2780 = vpop.xlane.xlu0 %2779
    %v2781 = vmul.f32 %v2777, %v177
    %v2782 = vmul.f32 %v2780, %v177
    %v2783 = vsub.f32 %v2771, %v2781
    %v2784 = vsub.f32 %v2772, %v2782
    %v2785 = vmul.f32 %v2783, %v2783
    %v2786 = vmul.f32 %v2784, %v2784
    %v2787 = vsel %vm170, %v2785, 0.0
    %2788 = vadd.xlane.f32.xlu0 %v2787
    %v2789 = vpop.xlane.xlu0 %2788
    %v2790 = vsel %vm170, %v2786, 0.0
    %2791 = vadd.xlane.f32.xlu0 %v2790
    %v2792 = vpop.xlane.xlu0 %2791
    %v2793 = vmul.f32 %v2789, %v177
    %v2794 = vmul.f32 %v2792, %v177
    %v2795 = vadd.f32 %v2793, 1e-12
    %v2796 = vadd.f32 %v2794, 1e-12
    %v2797 = vrsqrt.pop %v2795
    %v2798 = vrsqrt.pop %v2796
    %v2799 = vmul.f32 %v2783, %v2797
    %v2800 = vmul.f32 %v2784, %v2798
    %v2801 = vlaneseq
    %v2802 = vshrl.u32 %v2801, 7
    %v2803 = vsub.s32 0, %v2802
    %v2804 = vrot.slane %v2773, %v2803
    %v2805 = vmul.f32 %v2799, %v2804
    %v2806 = vmul.f32 %v2800, %v2804
    %v2807 = vlaneseq
    %v2808 = vshrl.u32 %v2807, 7
    %v2809 = vsub.s32 0, %v2808
    %v2810 = vrot.slane %v2774, %v2809
    %v2811 = vadd.f32 %v2805, %v2810
    %v2812 = vadd.f32 %v2806, %v2810
    %v2813 = vpack.c.bf16 %v2812, %v2811
    %v2814 = vld [vmem:[#allocation5 + $0x130] sm:$0xf]
    %v2815 = vld [vmem:[#allocation5 + $0x134] sm:$0xf]
    %v2816 = vld [vmem:[#allocation5 + $0x138] sm:$0xf]
    %v2817 = vld [vmem:[#allocation5 + $0x13c] sm:$0xf]
    %v2818 = vld [vmem:[#allocation7 + $0x21] sm:$0x1]
    %v2819 = vlaneseq
    %v2820 = vshrl.u32 %v2819, 7
    %v2821 = vsub.s32 0, %v2820
    %v2822 = vrot.slane %v2818, %v2821
    %v2827 = vunpack.c.l.b16 %v2814
    %v2828 = vunpack.c.l.b16 %v2815
    %v2829 = vunpack.c.l.b16 %v2816
    %v2830 = vunpack.c.l.b16 %v2817
    %v2831 = vpack.c.b16 %v2828, %v2827
    %v2832 = vpack.c.b16 %v2830, %v2829
    %v2836 = vsel %vm170, %v2813, 0
    %2838 = vmatprep.subr.bf16.mxu0 0
    %2839 = vmatpush1.bf16.msra.mxu0 0
    %2840 = vmatprep.subr.bf16.mxu0 0
    %2841 = vmatpush1.bf16.msra.mxu0 0
    %2842 = vmatprep.subr.bf16.mxu0 0
    %2843 = vmatpush1.bf16.msra.mxu0 0
    %2844 = vmatprep.subr.bf16.mxu0 0
    %2845 = vmatpush1.bf16.msra.mxu0 0
    %2846 = vmatprep.subr.bf16.mxu0 0
    %2847 = vmatpush1.bf16.msra.mxu0 0
    %2848 = vmatprep.subr.bf16.mxu0 0
    %2849 = vmatpush1.bf16.msra.mxu0 0
    %2850 = vmatprep.subr.bf16.mxu0 0
    %2851 = vmatpush1.bf16.msra.mxu0 %v2832
    %2852 = vmatprep.subr.bf16.mxu0 0
    %2853 = vmatpush1.bf16.msra.mxu0 %v2831
    %2854 = vmatprep.subr.bf16.mxu0 0
    %2855 = vmatpush2.bf16.msra.mxu0 0
    %2856 = vmatprep.subr.bf16.mxu0 0
    %2857 = vmatpush2.bf16.msra.mxu0 0
    %2858 = vmatprep.subr.bf16.mxu0 0
    %2859 = vmatpush2.bf16.msra.mxu0 0
    %2860 = vmatprep.subr.bf16.mxu0 0
    %2861 = vmatpush2.bf16.msra.mxu0 0
    %2862 = vmatprep.subr.bf16.mxu0 0
    %2863 = vmatpush2.bf16.msra.mxu0 0
    %2864 = vmatprep.subr.bf16.mxu0 0
    %2865 = vmatpush2.bf16.msra.mxu0 0
    %2866 = vmatprep.subr.bf16.mxu0 0
    %2867 = vmatpush2.bf16.msra.mxu0 0
    %2868 = vmatprep.subr.bf16.mxu0 0
    %2869 = vmatpush2.bf16.msra.mxu0 0
    %2870 = vmatprep.mubr.bf16.mxu0 0
    %2871 = vmatmul.mubr.bf16.gmra.mxu0 %v2836
    %v2872 = vpop.f32.mrf.mxu0
    %v2873 = vadd.f32 %v2822, %v2872
    %v2874 = vpop.f32.mrf.mxu0
    %v2875 = vpop.f32.mrf.mxu0
    %v2876 = vadd.f32 %v2822, %v2875
    %v2877 = vpop.f32.mrf.mxu0
    %2878 = vdwg.mxu0
    %v2879 = vmul.f32 %v2873, %v2873
    %v2880 = vmul.f32 %v2876, %v2876
    %v2881 = vmul.f32 %v2873, %v2879
    %v2882 = vmul.f32 %v2876, %v2880
    %v2883 = vmul.f32 %v2881, 0.044715
    %v2884 = vmul.f32 %v2882, 0.044715
    %v2885 = vadd.f32 %v2873, %v2883
    %v2886 = vadd.f32 %v2876, %v2884
    %v2887 = vmul.f32 %v2885, 0.7978846
    %v2888 = vmul.f32 %v2886, 0.7978846
    %v2889 = vtanh.pop %v2887
    %v2890 = vtanh.pop %v2888
    %v2891 = vadd.f32 %v2889, 1.0
    %v2892 = vadd.f32 %v2890, 1.0
    %v2893 = vmul.f32 %v2891, 0.5
    %v2894 = vmul.f32 %v2892, 0.5
    %v2895 = vmul.f32 %v2873, %v2893
    %v2896 = vmul.f32 %v2876, %v2894
    %v2897 = vpack.c.bf16 %v2896, %v2895
    %v2898 = vld [vmem:[#allocation5 + $0x140] sm:$0xf]
    %v2899 = vld [vmem:[#allocation5 + $0x144] sm:$0xf]
    %v2900 = vld [vmem:[#allocation5 + $0x148] sm:$0xf]
    %v2901 = vld [vmem:[#allocation5 + $0x14c] sm:$0xf]
    %v2902 = vld [vmem:[#allocation5 + $0x150] sm:$0xf]
    %v2903 = vld [vmem:[#allocation5 + $0x154] sm:$0xf]
    %v2904 = vld [vmem:[#allocation5 + $0x158] sm:$0xf]
    %v2905 = vld [vmem:[#allocation5 + $0x15c] sm:$0xf]
    %v2906 = vld [vmem:[#allocation7 + $0x22] sm:$0x1]
    %v2907 = vlaneseq
    %v2908 = vshrl.u32 %v2907, 7
    %v2909 = vsub.s32 0, %v2908
    %v2910 = vrot.slane %v2906, %v2909
    %v2919 = vunpack.c.l.b16 %v2898
    %v2920 = vunpack.c.l.b16 %v2899
    %v2921 = vunpack.c.l.b16 %v2900
    %v2922 = vunpack.c.l.b16 %v2901
    %v2923 = vunpack.c.l.b16 %v2902
    %v2924 = vunpack.c.l.b16 %v2903
    %v2925 = vunpack.c.l.b16 %v2904
    %v2926 = vunpack.c.l.b16 %v2905
    %v2927 = vpack.c.b16 %v2920, %v2919
    %v2928 = vpack.c.b16 %v2922, %v2921
    %v2929 = vpack.c.b16 %v2924, %v2923
    %v2930 = vpack.c.b16 %v2926, %v2925
    %v2936 = vsel %vm123, %v2897, 0
    %2938 = vmatprep.subr.bf16.mxu0 0
    %2939 = vmatpush1.bf16.msra.mxu0 0
    %2940 = vmatprep.subr.bf16.mxu0 0
    %2941 = vmatpush1.bf16.msra.mxu0 0
    %2942 = vmatprep.subr.bf16.mxu0 0
    %2943 = vmatpush1.bf16.msra.mxu0 0
    %2944 = vmatprep.subr.bf16.mxu0 0
    %2945 = vmatpush1.bf16.msra.mxu0 0
    %2946 = vmatprep.subr.bf16.mxu0 0
    %2947 = vmatpush1.bf16.msra.mxu0 %v2930
    %2948 = vmatprep.subr.bf16.mxu0 0
    %2949 = vmatpush1.bf16.msra.mxu0 %v2929
    %2950 = vmatprep.subr.bf16.mxu0 0
    %2951 = vmatpush1.bf16.msra.mxu0 %v2928
    %2952 = vmatprep.subr.bf16.mxu0 0
    %2953 = vmatpush1.bf16.msra.mxu0 %v2927
    %2954 = vmatprep.subr.bf16.mxu0 0
    %2955 = vmatpush2.bf16.msra.mxu0 0
    %2956 = vmatprep.subr.bf16.mxu0 0
    %2957 = vmatpush2.bf16.msra.mxu0 0
    %2958 = vmatprep.subr.bf16.mxu0 0
    %2959 = vmatpush2.bf16.msra.mxu0 0
    %2960 = vmatprep.subr.bf16.mxu0 0
    %2961 = vmatpush2.bf16.msra.mxu0 0
    %2962 = vmatprep.subr.bf16.mxu0 0
    %2963 = vmatpush2.bf16.msra.mxu0 0
    %2964 = vmatprep.subr.bf16.mxu0 0
    %2965 = vmatpush2.bf16.msra.mxu0 0
    %2966 = vmatprep.subr.bf16.mxu0 0
    %2967 = vmatpush2.bf16.msra.mxu0 0
    %2968 = vmatprep.subr.bf16.mxu0 0
    %2969 = vmatpush2.bf16.msra.mxu0 0
    %2970 = vmatprep.mubr.bf16.mxu0 0
    %2971 = vmatmul.mubr.bf16.gmra.mxu0 %v2936
    %v2972 = vpop.f32.mrf.mxu0
    %v2973 = vadd.f32 %v2910, %v2972
    %v2974 = vpop.f32.mrf.mxu0
    %v2975 = vpop.f32.mrf.mxu0
    %v2976 = vadd.f32 %v2910, %v2975
    %v2977 = vpop.f32.mrf.mxu0
    %2978 = vdwg.mxu0
    %v2979 = vadd.f32 %v2811, %v2973
    %v2980 = vadd.f32 %v2812, %v2976
    %v2981 = vld [vmem:[#allocation7 + $0x25] sm:$0x1]
    %v2982 = vld [vmem:[#allocation7 + $0x26] sm:$0x1]
    %v2983 = vsel %vm170, %v2979, 0.0
    %2984 = vadd.xlane.f32.xlu0 %v2983
    %v2985 = vpop.xlane.xlu0 %2984
    %v2986 = vsel %vm170, %v2980, 0.0
    %2987 = vadd.xlane.f32.xlu0 %v2986
    %v2988 = vpop.xlane.xlu0 %2987
    %v2989 = vmul.f32 %v2985, %v177
    %v2990 = vmul.f32 %v2988, %v177
    %v2991 = vsub.f32 %v2979, %v2989
    %v2992 = vsub.f32 %v2980, %v2990
    %v2993 = vmul.f32 %v2991, %v2991
    %v2994 = vmul.f32 %v2992, %v2992
    %v2995 = vsel %vm170, %v2993, 0.0
    %2996 = vadd.xlane.f32.xlu0 %v2995
    %v2997 = vpop.xlane.xlu0 %2996
    %v2998 = vsel %vm170, %v2994, 0.0
    %2999 = vadd.xlane.f32.xlu0 %v2998
    %v3000 = vpop.xlane.xlu0 %2999
    %v3001 = vmul.f32 %v2997, %v177
    %v3002 = vmul.f32 %v3000, %v177
    %v3003 = vadd.f32 %v3001, 1e-12
    %v3004 = vadd.f32 %v3002, 1e-12
    %v3005 = vrsqrt.pop %v3003
    %v3006 = vrsqrt.pop %v3004
    %v3007 = vmul.f32 %v2991, %v3005
    %v3008 = vmul.f32 %v2992, %v3006
    %v3009 = vlaneseq
    %v3010 = vshrl.u32 %v3009, 7
    %v3011 = vsub.s32 0, %v3010
    %v3012 = vrot.slane %v2981, %v3011
    %v3013 = vmul.f32 %v3007, %v3012
    %v3014 = vmul.f32 %v3008, %v3012
    %v3015 = vlaneseq
    %v3016 = vshrl.u32 %v3015, 7
    %v3017 = vsub.s32 0, %v3016
    %v3018 = vrot.slane %v2982, %v3017
    %v3019 = vadd.f32 %v3013, %v3018
    %v3020 = vadd.f32 %v3014, %v3018
    %v3021 = vpack.c.bf16 %v3019, %v3019
    %v3022 = vpack.c.bf16 %v3020, %v3020
    %v3023 = vld [vmem:[#allocation5 + $0x160] sm:$0xf]
    %v3024 = vld [vmem:[#allocation5 + $0x164] sm:$0xf]
    %v3025 = vld [vmem:[#allocation5 + $0x168] sm:$0xf]
    %v3026 = vld [vmem:[#allocation5 + $0x16c] sm:$0xf]
    %v3027 = vld [vmem:[#allocation7 + $0x2] sm:$0x1]
    %v3028 = vlaneseq
    %v3029 = vshrl.u32 %v3028, 7
    %v3030 = vsub.s32 0, %v3029
    %v3031 = vrot.slane %v3027, %v3030
    %v3034 = vunpack.c.l.b16 %v3021
    %v3035 = vunpack.c.l.b16 %v3022
    %v3036 = vrot.slane %v3035, 7
    %vm3037 = vcmask 1041409
    %v3038 = vsel %vm3037, %v3036, %v3034
    %v3039 = vpack.c.b16 %v3038, %v3038
    %v3044 = vunpack.c.l.b16 %v3023
    %v3045 = vunpack.c.l.b16 %v3024
    %v3046 = vunpack.c.l.b16 %v3025
    %v3047 = vunpack.c.l.b16 %v3026
    %v3048 = vpack.c.b16 %v3045, %v3044
    %v3049 = vpack.c.b16 %v3047, %v3046
    %v3053 = vsel %vm170, %v3039, 0
    %3055 = vmatprep.subr.bf16.mxu0 0
    %3056 = vmatpush1.bf16.msra.mxu0 0
    %3057 = vmatprep.subr.bf16.mxu0 0
    %3058 = vmatpush1.bf16.msra.mxu0 0
    %3059 = vmatprep.subr.bf16.mxu0 0
    %3060 = vmatpush1.bf16.msra.mxu0 0
    %3061 = vmatprep.subr.bf16.mxu0 0
    %3062 = vmatpush1.bf16.msra.mxu0 0
    %3063 = vmatprep.subr.bf16.mxu0 0
    %3064 = vmatpush1.bf16.msra.mxu0 0
    %3065 = vmatprep.subr.bf16.mxu0 0
    %3066 = vmatpush1.bf16.msra.mxu0 0
    %3067 = vmatprep.subr.bf16.mxu0 0
    %3068 = vmatpush1.bf16.msra.mxu0 %v3049
    %3069 = vmatprep.subr.bf16.mxu0 0
    %3070 = vmatpush1.bf16.msra.mxu0 %v3048
    %3071 = vmatprep.subr.bf16.mxu0 0
    %3072 = vmatpush2.bf16.msra.mxu0 0
    %3073 = vmatprep.subr.bf16.mxu0 0
    %3074 = vmatpush2.bf16.msra.mxu0 0
    %3075 = vmatprep.subr.bf16.mxu0 0
    %3076 = vmatpush2.bf16.msra.mxu0 0
    %3077 = vmatprep.subr.bf16.mxu0 0
    %3078 = vmatpush2.bf16.msra.mxu0 0
    %3079 = vmatprep.subr.bf16.mxu0 0
    %3080 = vmatpush2.bf16.msra.mxu0 0
    %3081 = vmatprep.subr.bf16.mxu0 0
    %3082 = vmatpush2.bf16.msra.mxu0 0
    %3083 = vmatprep.subr.bf16.mxu0 0
    %3084 = vmatpush2.bf16.msra.mxu0 0
    %3085 = vmatprep.subr.bf16.mxu0 0
    %3086 = vmatpush2.bf16.msra.mxu0 0
    %3087 = vmatprep.mubr.bf16.mxu0 0
    %3088 = vmatmul.mubr.bf16.gmra.mxu0 %v3053
    %v3089 = vpop.f32.mrf.mxu0
    %v3090 = vadd.f32 %v3031, %v3089
    %v3091 = vpop.f32.mrf.mxu0
    %v3092 = vpop.f32.mrf.mxu0
    %v3093 = vpop.f32.mrf.mxu0
    %3094 = vdwg.mxu0
    %v3095 = vtanh.pop %v3090
    %v3096 = vpack.c.bf16 %v3095, %v3095
    %v3097 = vld [vmem:[#allocation5 + $0x170] sm:$0xf]
    %v3098 = vld [vmem:[#allocation5 + $0x174] sm:$0xf]
    %v3099 = vld [vmem:[#allocation5 + $0x178] sm:$0xf]
    %v3100 = vld [vmem:[#allocation5 + $0x17c] sm:$0xf]
    %v3101 = vld [vmem:[#allocation7 + $0x3] sm:$0x1]
    %v3102 = vlaneseq
    %v3103 = vshrl.u32 %v3102, 7
    %v3104 = vsub.s32 0, %v3103
    %v3105 = vrot.slane %v3101, %v3104
    %v3110 = vunpack.c.l.b16 %v3097
    %v3111 = vunpack.c.l.b16 %v3098
    %v3112 = vunpack.c.l.b16 %v3099
    %v3113 = vunpack.c.l.b16 %v3100
    %v3114 = vpack.c.b16 %v3111, %v3110
    %v3115 = vpack.c.b16 %v3113, %v3112
    %v3119 = vsel %vm170, %v3096, 0
    %3121 = vmatprep.subr.bf16.mxu0 0
    %3122 = vmatpush1.bf16.msra.mxu0 0
    %3123 = vmatprep.subr.bf16.mxu0 0
    %3124 = vmatpush1.bf16.msra.mxu0 0
    %3125 = vmatprep.subr.bf16.mxu0 0
    %3126 = vmatpush1.bf16.msra.mxu0 0
    %3127 = vmatprep.subr.bf16.mxu0 0
    %3128 = vmatpush1.bf16.msra.mxu0 0
    %3129 = vmatprep.subr.bf16.mxu0 0
    %3130 = vmatpush1.bf16.msra.mxu0 0
    %3131 = vmatprep.subr.bf16.mxu0 0
    %3132 = vmatpush1.bf16.msra.mxu0 0
    %3133 = vmatprep.subr.bf16.mxu0 0
    %3134 = vmatpush1.bf16.msra.mxu0 %v3115
    %3135 = vmatprep.subr.bf16.mxu0 0
    %3136 = vmatpush1.bf16.msra.mxu0 %v3114
    %3137 = vmatprep.subr.bf16.mxu0 0
    %3138 = vmatpush2.bf16.msra.mxu0 0
    %3139 = vmatprep.subr.bf16.mxu0 0
    %3140 = vmatpush2.bf16.msra.mxu0 0
    %3141 = vmatprep.subr.bf16.mxu0 0
    %3142 = vmatpush2.bf16.msra.mxu0 0
    %3143 = vmatprep.subr.bf16.mxu0 0
    %3144 = vmatpush2.bf16.msra.mxu0 0
    %3145 = vmatprep.subr.bf16.mxu0 0
    %3146 = vmatpush2.bf16.msra.mxu0 0
    %3147 = vmatprep.subr.bf16.mxu0 0
    %3148 = vmatpush2.bf16.msra.mxu0 0
    %3149 = vmatprep.subr.bf16.mxu0 0
    %3150 = vmatpush2.bf16.msra.mxu0 0
    %3151 = vmatprep.subr.bf16.mxu0 0
    %3152 = vmatpush2.bf16.msra.mxu0 0
    %3153 = vmatprep.mubr.bf16.mxu0 0
    %3154 = vmatmul.mubr.bf16.gmra.mxu0 %v3119
    %v3155 = vpop.f32.mrf.mxu0
    %v3156 = vadd.f32 %v3105, %v3155
    %v3157 = vpop.f32.mrf.mxu0
    %v3158 = vpop.f32.mrf.mxu0
    %v3159 = vpop.f32.mrf.mxu0
    %3160 = vdwg.mxu0
    %v3161 = vpack.c.bf16 %v3156, %v3156
    %v3162 = vld [vmem:[#allocation5 + $0x180] sm:$0xf]
    %v3163 = vld [vmem:[#allocation5 + $0x184] sm:$0xf]
    %v3164 = vld [vmem:[#allocation5 + $0x188] sm:$0xf]
    %v3165 = vld [vmem:[#allocation5 + $0x18c] sm:$0xf]
    %v3166 = vld [vmem:[#allocation7 + $0x4] sm:$0x1]
    %v3167 = vlaneseq
    %v3168 = vshrl.u32 %v3167, 7
    %v3169 = vsub.s32 0, %v3168
    %v3170 = vrot.slane %v3166, %v3169
    %v3175 = vunpack.c.l.b16 %v3162
    %v3176 = vunpack.c.l.b16 %v3163
    %v3177 = vunpack.c.l.b16 %v3164
    %v3178 = vunpack.c.l.b16 %v3165
    %v3179 = vpack.c.b16 %v3176, %v3175
    %v3180 = vpack.c.b16 %v3178, %v3177
    %v3184 = vsel %vm170, %v3161, 0
    %3186 = vmatprep.subr.bf16.mxu0 0
    %3187 = vmatpush1.bf16.msra.mxu0 0
    %3188 = vmatprep.subr.bf16.mxu0 0
    %3189 = vmatpush1.bf16.msra.mxu0 0
    %3190 = vmatprep.subr.bf16.mxu0 0
    %3191 = vmatpush1.bf16.msra.mxu0 0
    %3192 = vmatprep.subr.bf16.mxu0 0
    %3193 = vmatpush1.bf16.msra.mxu0 0
    %3194 = vmatprep.subr.bf16.mxu0 0
    %3195 = vmatpush1.bf16.msra.mxu0 0
    %3196 = vmatprep.subr.bf16.mxu0 0
    %3197 = vmatpush1.bf16.msra.mxu0 0
    %3198 = vmatprep.subr.bf16.mxu0 0
    %3199 = vmatpush1.bf16.msra.mxu0 %v3180
    %3200 = vmatprep.subr.bf16.mxu0 0
    %3201 = vmatpush1.bf16.msra.mxu0 %v3179
    %3202 = vmatprep.subr.bf16.mxu0 0
    %3203 = vmatpush2.bf16.msra.mxu0 0
    %3204 = vmatprep.subr.bf16.mxu0 0
    %3205 = vmatpush2.bf16.msra.mxu0 0
    %3206 = vmatprep.subr.bf16.mxu0 0
    %3207 = vmatpush2.bf16.msra.mxu0 0
    %3208 = vmatprep.subr.bf16.mxu0 0
    %3209 = vmatpush2.bf16.msra.mxu0 0
    %3210 = vmatprep.subr.bf16.mxu0 0
    %3211 = vmatpush2.bf16.msra.mxu0 0
    %3212 = vmatprep.subr.bf16.mxu0 0
    %3213 = vmatpush2.bf16.msra.mxu0 0
    %3214 = vmatprep.subr.bf16.mxu0 0
    %3215 = vmatpush2.bf16.msra.mxu0 0
    %3216 = vmatprep.subr.bf16.mxu0 0
    %3217 = vmatpush2.bf16.msra.mxu0 0
    %3218 = vmatprep.mubr.bf16.mxu0 0
    %3219 = vmatmul.mubr.bf16.gmra.mxu0 %v3184
    %v3220 = vpop.f32.mrf.mxu0
    %v3221 = vadd.f32 %v3170, %v3220
    %v3222 = vpop.f32.mrf.mxu0
    %v3223 = vpop.f32.mrf.mxu0
    %v3224 = vpop.f32.mrf.mxu0
    %3225 = vdwg.mxu0
    %3226 = vst [vmem:[#allocation8] sm:$0x3] %v3221
    // Predicated region
    $region26: #{tpu_custom_call.1} parent=1 // pred_check
      _
    $region27: #{tpu_custom_call.1} parent=1 // pred_check_branch
      %3228 = sbr.rel (0) target = $region29
    $region28: #{tpu_custom_call.1} parent=1 // pred_region
      %s3230 = ssub.s32 32, 32
      %3231 = vsyncadd [#allocation4], %s3230
      %s3233 = sshll.u32 [#allocation8], 4
      %s3234 = int_to_ptr.vmem [resolvable:$true] %s3233
      %3236 = dma.vmem_to_hbm [thread:$0]  %s3234, 32, %s3, [#allocation4]
    $region29: #{tpu_custom_call.1} parent=1 // pred_fallthru
      _
    // Predicated region
    $region30: #{tpu_custom_call.1} parent=1 // pred_check
      _
    $region31: #{tpu_custom_call.1} parent=1 // pred_check_branch
      %3238 = sbr.rel (0) target = $region33
    $region32: #{tpu_custom_call.1} parent=1 // pred_region
      %3239 = dma.done [#allocation4], 32
    $region33: #{tpu_custom_call.1} parent=1 // pred_fallthru
      _
    %3240 = vsyncpa [#allocation3], 1
    %3241 = vsyncpa [#allocation6], 1
    %3242 = vsyncpa [#allocation4], 1

</llo_original>
